<compile_context>
chip_gen: v5e
topology: v5e:2x2
jax: 0.10.0
libtpu: 0.0.40
codegen_flags: <defaults>
</compile_context>

<pallas_src>
import math

import jax
import jax.numpy as jnp
from jax.experimental import pallas as pl
from jax.experimental.pallas import tpu as pltpu

INPUT_DIM = 15
D_MODEL = 64
NHEAD = 4
HEAD_DIM = D_MODEL // NHEAD
NUM_LAYERS = 2
DIM_FF = 128
FC1_DIM = 128
NUM_CLASSES = 45
NUM_CLASSES_PAD = 128   # lane-dense classifier output; sliced back to 45 in the wrapper
QKV_PAD = 4 * D_MODEL   # fused QKV output padded to 256 lanes (two full vregs)
LN_EPS = 1e-5

# MXU operand dtype: bf16 operands, f32 accumulation (preferred_element_type). LayerNorm /
# softmax / residual math stays float32. ~1e-2 relative drift vs PyTorch fp32.
MXU_DTYPE = jnp.bfloat16


def _mm(a, b):
    """MXU matmul: bf16 operands, f32 accumulation."""
    return jnp.dot(a.astype(MXU_DTYPE), b.astype(MXU_DTYPE),
                   preferred_element_type=jnp.float32)


def _layer_norm(x, g, b):
    mu = jnp.mean(x, axis=-1, keepdims=True)
    var = jnp.mean((x - mu) ** 2, axis=-1, keepdims=True)
    return (x - mu) * jax.lax.rsqrt(var + LN_EPS) * g + b


def transformer_kernel(x_ref, win_ref, bin_ref, pe_ref,
                       wqkv_ref, bqkv_ref, wo_ref, bo_ref,
                       ln1g_ref, ln1b_ref, w1_ref, b1_ref,
                       w2_ref, b2_ref, ln2g_ref, ln2b_ref,
                       wfc1_ref, bfc1_ref, wfc2_ref, bfc2_ref,
                       out_ref):
    tb, S, _ = x_ref.shape           # TB sequences per grid step (static)
    M = tb * S                       # rows of the flattened activation slab

    # --- input projection + positional encoding (one tall matmul for the whole tile) ---
    x2 = x_ref[...].reshape(M, INPUT_DIM)
    h = _mm(x2, win_ref[...]) + bin_ref[...]                       # (M, D_MODEL) f32
    h = (h.reshape(tb, S, D_MODEL) + pe_ref[...]).reshape(M, D_MODEL)

    # --- transformer encoder layers (post-norm, ReLU FFN) ---
    for l in range(NUM_LAYERS):
        # Fused QKV: one (M, 64) @ (64, 256) MXU pass. Lane layout [Q | K | V | zero-pad];
        # the 1/sqrt(head_dim) attention scale is folded into the Q columns / bias.
        qkv = _mm(h, wqkv_ref[l]) + bqkv_ref[l]                    # (M, 256) f32
        q3 = qkv[:, 0:D_MODEL].reshape(tb, S, D_MODEL)
        k3 = qkv[:, D_MODEL:2 * D_MODEL].reshape(tb, S, D_MODEL)
        v3 = qkv[:, 2 * D_MODEL:3 * D_MODEL].reshape(tb, S, D_MODEL)

        # Per-sequence attention, batched over the TB sequences with 3-D batched dots.
        # Heads combined via per-head output-projection matmuls summed in f32.
        attn = None
        for hd in range(NHEAD):
            lo = hd * HEAD_DIM
            qh = q3[:, :, lo:lo + HEAD_DIM]
            kh = k3[:, :, lo:lo + HEAD_DIM]
            vh = v3[:, :, lo:lo + HEAD_DIM]
            s = jnp.einsum('bqd,bkd->bqk',
                           qh.astype(MXU_DTYPE), kh.astype(MXU_DTYPE),
                           preferred_element_type=jnp.float32)      # (tb, S, S)
            s = s - jnp.max(s, axis=-1, keepdims=True)
            p = jnp.exp(s)
            # reciprocal on the EUP slot (free vs. VALU divide)
            p = p * pl.reciprocal(jnp.sum(p, axis=-1, keepdims=True), approx=True)
            ctx = jnp.einsum('bqk,bkd->bqd',
                             p.astype(MXU_DTYPE), vh.astype(MXU_DTYPE),
                             preferred_element_type=jnp.float32)    # (tb, S, HEAD_DIM)
            part = _mm(ctx.reshape(M, HEAD_DIM), wo_ref[l, hd])     # (M, D_MODEL)
            attn = part if attn is None else attn + part
        attn = attn + bo_ref[l]

        h = _layer_norm(h + attn, ln1g_ref[l], ln1b_ref[l])

        ff = _mm(h, w1_ref[l]) + b1_ref[l]
        ff = jnp.maximum(ff, 0.0)
        ff = _mm(ff, w2_ref[l]) + b2_ref[l]

        h = _layer_norm(h + ff, ln2g_ref[l], ln2b_ref[l])

    # --- pool over sequence (1/S folded into wfc1), classifier head (128-lane output) ---
    pooled = jnp.sum(h.reshape(tb, S, D_MODEL), axis=1)             # (tb, D_MODEL)
    z = _mm(pooled, wfc1_ref[...]) + bfc1_ref[...]
    z = jnp.maximum(z, 0.0)
    out = _mm(z, wfc2_ref[...]) + bfc2_ref[...]                     # (tb, NUM_CLASSES_PAD)
    out_ref[...] = out


def transformer_forward(x, params, tb=None):
    B, S, _ = x.shape
    if tb is None:
        # One max-size tile when the whole batch fits (single grid step; best on the 1-TC
        # v5e/v6e). Otherwise 256-row tiles (multiple of 8) -> >= 2 "parallel" grid steps,
        # which also shards the batch across v7x's two TensorCores. Per-step activations at
        # tb=256 are only a few MiB, comfortably inside v7x's 64 MiB physical VMEM.
        tb = B if B <= 256 else 256
    grid_b = pl.cdiv(B, tb)
    Bp = grid_b * tb
    if Bp != B:
        x = jnp.pad(x, ((0, Bp - B), (0, 0), (0, 0)))

    def full_spec(a):
        nd = a.ndim
        # constant index_map: weights stay resident across grid steps (fetched once).
        return pl.BlockSpec(a.shape, lambda b, _nd=nd: (0,) * _nd)

    in_specs = [pl.BlockSpec((tb, S, INPUT_DIM), lambda b: (b, 0, 0))]
    in_specs += [full_spec(p) for p in params]
    out_specs = pl.BlockSpec((tb, NUM_CLASSES_PAD), lambda b: (b, 0))

    out = pl.pallas_call(
        transformer_kernel,
        out_shape=jax.ShapeDtypeStruct((Bp, NUM_CLASSES_PAD), jnp.float32),
        grid=(grid_b,),
        in_specs=in_specs,
        out_specs=out_specs,
        compiler_params=pltpu.CompilerParams(
            dimension_semantics=("parallel",),
            # 32 MiB is within the scoped-VMEM budget of all of v5e/v6e/v7x; raise toward
            # 64-100 MiB on v5e/v6e only if tb is pushed well past 256.
            vmem_limit_bytes=32 * 1024 * 1024),
    )(x, *params)
    return out[:B, :NUM_CLASSES]


def positional_encoding(seq_len, d_model):
    pos = jnp.arange(seq_len, dtype=jnp.float32)[:, None]
    div = jnp.exp(jnp.arange(0, d_model, 2, dtype=jnp.float32)
                  * (-math.log(10000.0) / d_model))
    pe = jnp.zeros((seq_len, d_model), jnp.float32)
    pe = pe.at[:, 0::2].set(jnp.sin(pos * div))
    pe = pe.at[:, 1::2].set(jnp.cos(pos * div))
    return pe


def init_params(key, seq_len):
    """Random params, stored directly in the kernel layout ([in, out] weights)."""
    ks = jax.random.split(key, 14)

    def w(k, shape, scale=0.05):
        return jax.random.normal(k, shape, jnp.float32) * scale

    win  = w(ks[0], (INPUT_DIM, D_MODEL))
    binp = w(ks[1], (1, D_MODEL))
    pe   = positional_encoding(seq_len, D_MODEL)

    # Fused QKV weights, lane layout [Q | K | V | zero-pad] -> (L, D_MODEL, 256).
    # Fold the 1/sqrt(head_dim) attention scale into the Q columns / bias:
    # (x Wq + bq) * s == x (s*Wq) + s*bq.
    scale = 1.0 / math.sqrt(HEAD_DIM)
    wq = w(ks[2], (NUM_LAYERS, D_MODEL, D_MODEL)) * scale
    wk = w(ks[3], (NUM_LAYERS, D_MODEL, D_MODEL))
    wv = w(ks[4], (NUM_LAYERS, D_MODEL, D_MODEL))
    wqkv = jnp.zeros((NUM_LAYERS, D_MODEL, QKV_PAD), jnp.float32)
    wqkv = wqkv.at[:, :, 0:D_MODEL].set(wq)
    wqkv = wqkv.at[:, :, D_MODEL:2 * D_MODEL].set(wk)
    wqkv = wqkv.at[:, :, 2 * D_MODEL:3 * D_MODEL].set(wv)
    bq = w(ks[5], (NUM_LAYERS, 1, D_MODEL)) * scale
    bk = w(ks[6], (NUM_LAYERS, 1, D_MODEL))
    bv = w(ks[7], (NUM_LAYERS, 1, D_MODEL))
    bqkv = jnp.zeros((NUM_LAYERS, 1, QKV_PAD), jnp.float32)
    bqkv = bqkv.at[:, :, 0:D_MODEL].set(bq)
    bqkv = bqkv.at[:, :, D_MODEL:2 * D_MODEL].set(bk)
    bqkv = bqkv.at[:, :, 2 * D_MODEL:3 * D_MODEL].set(bv)

    # Output projection stored per-head: concat(heads) @ Wo == sum_h ctx_h @ Wo[h].
    wo   = w(ks[8], (NUM_LAYERS, D_MODEL, D_MODEL)).reshape(
               NUM_LAYERS, NHEAD, HEAD_DIM, D_MODEL)
    bo   = w(ks[9], (NUM_LAYERS, 1, D_MODEL))

    ln1g = jnp.ones((NUM_LAYERS, 1, D_MODEL), jnp.float32)
    ln1b = jnp.zeros((NUM_LAYERS, 1, D_MODEL), jnp.float32)
    w1   = w(ks[10], (NUM_LAYERS, D_MODEL, DIM_FF))
    b1   = w(ks[11], (NUM_LAYERS, 1, DIM_FF))
    w2   = w(ks[12], (NUM_LAYERS, DIM_FF, D_MODEL))
    b2   = w(ks[13], (NUM_LAYERS, 1, D_MODEL))
    ln2g = jnp.ones((NUM_LAYERS, 1, D_MODEL), jnp.float32)
    ln2b = jnp.zeros((NUM_LAYERS, 1, D_MODEL), jnp.float32)

    ks2 = jax.random.split(jax.random.fold_in(key, 7), 4)
    # Mean-pool 1/S folded into fc1 weights: mean(h) @ W == sum(h) @ (W / S).
    wfc1 = w(ks2[0], (D_MODEL, FC1_DIM)) / float(seq_len)
    bfc1 = w(ks2[1], (1, FC1_DIM))
    # Classifier padded to 128 lanes (classes 45..127 are zero; sliced off in the wrapper).
    wfc2 = jnp.zeros((FC1_DIM, NUM_CLASSES_PAD), jnp.float32)
    wfc2 = wfc2.at[:, :NUM_CLASSES].set(w(ks2[2], (FC1_DIM, NUM_CLASSES)))
    bfc2 = jnp.zeros((1, NUM_CLASSES_PAD), jnp.float32)
    bfc2 = bfc2.at[:, :NUM_CLASSES].set(w(ks2[3], (1, NUM_CLASSES)))

    return [win, binp, pe, wqkv, bqkv, wo, bo, ln1g, ln1b,
            w1, b1, w2, b2, ln2g, ln2b, wfc1, bfc1, wfc2, bfc2]


if __name__ == "__main__":
    B, S = 2, 8
    key = jax.random.PRNGKey(0)
    kx, kp = jax.random.split(key)
    x = jax.random.normal(kx, (B, S, INPUT_DIM), jnp.float32)
    params = init_params(kp, S)

    out = transformer_forward(x, params)
    out = jax.block_until_ready(out)
    assert out.shape == (B, NUM_CLASSES), out.shape
    assert bool(jnp.all(jnp.isfinite(out)))
    print("KERNEL_OK")
</pallas_src>

<mosaic_0001>
module attributes {stable_mosaic.version = 11 : i64} {
  func.func @transformer_kernel(%arg0: i32, %arg1: memref<2x8x15xf32, #tpu.memory_space<vmem>>, %arg2: memref<15x64xf32, #tpu.memory_space<vmem>>, %arg3: memref<1x64xf32, #tpu.memory_space<vmem>>, %arg4: memref<8x64xf32, #tpu.memory_space<vmem>>, %arg5: memref<2x64x256xf32, #tpu.memory_space<vmem>>, %arg6: memref<2x1x256xf32, #tpu.memory_space<vmem>>, %arg7: memref<2x4x16x64xf32, #tpu.memory_space<vmem>>, %arg8: memref<2x1x64xf32, #tpu.memory_space<vmem>>, %arg9: memref<2x1x64xf32, #tpu.memory_space<vmem>>, %arg10: memref<2x1x64xf32, #tpu.memory_space<vmem>>, %arg11: memref<2x64x128xf32, #tpu.memory_space<vmem>>, %arg12: memref<2x1x128xf32, #tpu.memory_space<vmem>>, %arg13: memref<2x128x64xf32, #tpu.memory_space<vmem>>, %arg14: memref<2x1x64xf32, #tpu.memory_space<vmem>>, %arg15: memref<2x1x64xf32, #tpu.memory_space<vmem>>, %arg16: memref<2x1x64xf32, #tpu.memory_space<vmem>>, %arg17: memref<64x128xf32, #tpu.memory_space<vmem>>, %arg18: memref<1x128xf32, #tpu.memory_space<vmem>>, %arg19: memref<128x128xf32, #tpu.memory_space<vmem>>, %arg20: memref<1x128xf32, #tpu.memory_space<vmem>>, %arg21: memref<2x128xf32, #tpu.memory_space<vmem>>) attributes {dimension_semantics = [#tpu.dimension_semantics<parallel>], iteration_bounds = array<i64: 1>, scalar_prefetch = 0 : i64, scratch_operands = 0 : i64, tpu.core_type = #tpu.core_type<tc>, window_params = [{transform_indices = @transform_0, window_bounds = array<i64: 2, 8, 15>}, {pipeline_mode = #tpu.pipeline_mode<synchronous>, transform_indices = @transform_1, window_bounds = array<i64: 15, 64>}, {pipeline_mode = #tpu.pipeline_mode<synchronous>, transform_indices = @transform_2, window_bounds = array<i64: 1, 64>}, {pipeline_mode = #tpu.pipeline_mode<synchronous>, transform_indices = @transform_3, window_bounds = array<i64: 8, 64>}, {pipeline_mode = #tpu.pipeline_mode<synchronous>, transform_indices = @transform_4, window_bounds = array<i64: 2, 64, 256>}, {pipeline_mode = #tpu.pipeline_mode<synchronous>, transform_indices = @transform_5, window_bounds = array<i64: 2, 1, 256>}, {pipeline_mode = #tpu.pipeline_mode<synchronous>, transform_indices = @transform_6, window_bounds = array<i64: 2, 4, 16, 64>}, {pipeline_mode = #tpu.pipeline_mode<synchronous>, transform_indices = @transform_7, window_bounds = array<i64: 2, 1, 64>}, {pipeline_mode = #tpu.pipeline_mode<synchronous>, transform_indices = @transform_8, window_bounds = array<i64: 2, 1, 64>}, {pipeline_mode = #tpu.pipeline_mode<synchronous>, transform_indices = @transform_9, window_bounds = array<i64: 2, 1, 64>}, {pipeline_mode = #tpu.pipeline_mode<synchronous>, transform_indices = @transform_10, window_bounds = array<i64: 2, 64, 128>}, {pipeline_mode = #tpu.pipeline_mode<synchronous>, transform_indices = @transform_11, window_bounds = array<i64: 2, 1, 128>}, {pipeline_mode = #tpu.pipeline_mode<synchronous>, transform_indices = @transform_12, window_bounds = array<i64: 2, 128, 64>}, {pipeline_mode = #tpu.pipeline_mode<synchronous>, transform_indices = @transform_13, window_bounds = array<i64: 2, 1, 64>}, {pipeline_mode = #tpu.pipeline_mode<synchronous>, transform_indices = @transform_14, window_bounds = array<i64: 2, 1, 64>}, {pipeline_mode = #tpu.pipeline_mode<synchronous>, transform_indices = @transform_15, window_bounds = array<i64: 2, 1, 64>}, {pipeline_mode = #tpu.pipeline_mode<synchronous>, transform_indices = @transform_16, window_bounds = array<i64: 64, 128>}, {pipeline_mode = #tpu.pipeline_mode<synchronous>, transform_indices = @transform_17, window_bounds = array<i64: 1, 128>}, {pipeline_mode = #tpu.pipeline_mode<synchronous>, transform_indices = @transform_18, window_bounds = array<i64: 128, 128>}, {pipeline_mode = #tpu.pipeline_mode<synchronous>, transform_indices = @transform_19, window_bounds = array<i64: 1, 128>}, {transform_indices = @transform_20, window_bounds = array<i64: 2, 128>}]} {
    %c0 = arith.constant 0 : index
    %c0_0 = arith.constant 0 : index
    %c0_1 = arith.constant 0 : index
    %0 = vector.load %arg1[%c0, %c0_0, %c0_1] : memref<2x8x15xf32, #tpu.memory_space<vmem>>, vector<2x8x15xf32>
    %1 = vector.shape_cast %0 : vector<2x8x15xf32> to vector<16x15xf32>
    %c0_2 = arith.constant 0 : index
    %c0_3 = arith.constant 0 : index
    %2 = vector.load %arg2[%c0_2, %c0_3] : memref<15x64xf32, #tpu.memory_space<vmem>>, vector<15x64xf32>
    %3 = arith.truncf %1 : vector<16x15xf32> to vector<16x15xbf16>
    %4 = arith.truncf %2 : vector<15x64xf32> to vector<15x64xbf16>
    %cst = arith.constant dense<0.000000e+00> : vector<16x64xf32>
    %5 = tpu.matmul %3, %4, %cst {dimension_numbers = #tpu.dot_dimension_numbers<[1], [0], [0], [1], [0, 0, 1, 1], [], []>} : vector<16x15xbf16>, vector<15x64xbf16>, vector<16x64xf32> -> vector<16x64xf32>
    %c0_4 = arith.constant 0 : index
    %c0_5 = arith.constant 0 : index
    %6 = vector.load %arg3[%c0_4, %c0_5] : memref<1x64xf32, #tpu.memory_space<vmem>>, vector<1x64xf32>
    %7 = vector.broadcast %6 : vector<1x64xf32> to vector<16x64xf32>
    %8 = arith.addf %5, %7 : vector<16x64xf32>
    %9 = vector.shape_cast %8 : vector<16x64xf32> to vector<2x8x64xf32>
    %c0_6 = arith.constant 0 : index
    %c0_7 = arith.constant 0 : index
    %10 = vector.load %arg4[%c0_6, %c0_7] : memref<8x64xf32, #tpu.memory_space<vmem>>, vector<8x64xf32>
    %11 = vector.shape_cast %10 : vector<8x64xf32> to vector<1x8x64xf32>
    %12 = vector.broadcast %11 : vector<1x8x64xf32> to vector<2x8x64xf32>
    %13 = arith.addf %9, %12 : vector<2x8x64xf32>
    %14 = vector.shape_cast %13 : vector<2x8x64xf32> to vector<16x64xf32>
    %c0_8 = arith.constant 0 : index
    %c0_9 = arith.constant 0 : index
    %c0_10 = arith.constant 0 : index
    %15 = vector.load %arg5[%c0_8, %c0_9, %c0_10] : memref<2x64x256xf32, #tpu.memory_space<vmem>>, vector<1x64x256xf32>
    %16 = vector.shape_cast %15 : vector<1x64x256xf32> to vector<64x256xf32>
    %17 = arith.truncf %14 : vector<16x64xf32> to vector<16x64xbf16>
    %18 = arith.truncf %16 : vector<64x256xf32> to vector<64x256xbf16>
    %cst_11 = arith.constant dense<0.000000e+00> : vector<16x256xf32>
    %19 = tpu.matmul %17, %18, %cst_11 {dimension_numbers = #tpu.dot_dimension_numbers<[1], [0], [0], [1], [0, 0, 1, 1], [], []>} : vector<16x64xbf16>, vector<64x256xbf16>, vector<16x256xf32> -> vector<16x256xf32>
    %c0_12 = arith.constant 0 : index
    %c0_13 = arith.constant 0 : index
    %c0_14 = arith.constant 0 : index
    %20 = vector.load %arg6[%c0_12, %c0_13, %c0_14] : memref<2x1x256xf32, #tpu.memory_space<vmem>>, vector<1x1x256xf32>
    %21 = vector.shape_cast %20 : vector<1x1x256xf32> to vector<1x256xf32>
    %22 = vector.broadcast %21 : vector<1x256xf32> to vector<16x256xf32>
    %23 = arith.addf %19, %22 : vector<16x256xf32>
    %24 = vector.extract_strided_slice %23 {offsets = [0, 0], sizes = [16, 64], strides = [1, 1]} : vector<16x256xf32> to vector<16x64xf32>
    %25 = vector.shape_cast %24 : vector<16x64xf32> to vector<2x8x64xf32>
    %26 = vector.extract_strided_slice %23 {offsets = [0, 64], sizes = [16, 64], strides = [1, 1]} : vector<16x256xf32> to vector<16x64xf32>
    %27 = vector.shape_cast %26 : vector<16x64xf32> to vector<2x8x64xf32>
    %28 = vector.extract_strided_slice %23 {offsets = [0, 128], sizes = [16, 64], strides = [1, 1]} : vector<16x256xf32> to vector<16x64xf32>
    %29 = vector.shape_cast %28 : vector<16x64xf32> to vector<2x8x64xf32>
    %30 = vector.extract_strided_slice %25 {offsets = [0, 0, 0], sizes = [2, 8, 16], strides = [1, 1, 1]} : vector<2x8x64xf32> to vector<2x8x16xf32>
    %31 = vector.extract_strided_slice %27 {offsets = [0, 0, 0], sizes = [2, 8, 16], strides = [1, 1, 1]} : vector<2x8x64xf32> to vector<2x8x16xf32>
    %32 = vector.extract_strided_slice %29 {offsets = [0, 0, 0], sizes = [2, 8, 16], strides = [1, 1, 1]} : vector<2x8x64xf32> to vector<2x8x16xf32>
    %33 = arith.truncf %30 : vector<2x8x16xf32> to vector<2x8x16xbf16>
    %34 = arith.truncf %31 : vector<2x8x16xf32> to vector<2x8x16xbf16>
    "tpu.trace_start"() <{level = 10 : i32, message = "bqd,bkd->bqk"}> : () -> ()
    %cst_15 = arith.constant dense<0.000000e+00> : vector<2x8x8xf32>
    %35 = tpu.matmul %33, %34, %cst_15 {dimension_numbers = #tpu.dot_dimension_numbers<[2], [2], [1], [1], [0, 0, 0, 1, 1, 1], [0], [0]>} : vector<2x8x16xbf16>, vector<2x8x16xbf16>, vector<2x8x8xf32> -> vector<2x8x8xf32>
    "tpu.trace_stop"() : () -> ()
    %cst_16 = arith.constant dense<0xFF800000> : vector<2x8xf32>
    %36 = vector.multi_reduction <maximumf>, %35, %cst_16 [2] : vector<2x8x8xf32> to vector<2x8xf32>
    %37 = vector.shape_cast %36 : vector<2x8xf32> to vector<2x8x1xf32>
    %38 = vector.broadcast %37 : vector<2x8x1xf32> to vector<2x8x8xf32>
    %39 = arith.subf %35, %38 : vector<2x8x8xf32>
    %40 = math.exp %39 : vector<2x8x8xf32>
    %cst_17 = arith.constant dense<0.000000e+00> : vector<2x8xf32>
    %41 = vector.multi_reduction <add>, %40, %cst_17 [2] : vector<2x8x8xf32> to vector<2x8xf32>
    %42 = vector.shape_cast %41 : vector<2x8xf32> to vector<2x8x1xf32>
    %43 = tpu.reciprocal %42 {approx = true} : vector<2x8x1xf32> -> vector<2x8x1xf32>
    %44 = vector.broadcast %43 : vector<2x8x1xf32> to vector<2x8x8xf32>
    %45 = arith.mulf %40, %44 : vector<2x8x8xf32>
    %46 = arith.truncf %45 : vector<2x8x8xf32> to vector<2x8x8xbf16>
    %47 = arith.truncf %32 : vector<2x8x16xf32> to vector<2x8x16xbf16>
    "tpu.trace_start"() <{level = 10 : i32, message = "bqk,bkd->bqd"}> : () -> ()
    %cst_18 = arith.constant dense<0.000000e+00> : vector<2x8x16xf32>
    %48 = tpu.matmul %46, %47, %cst_18 {dimension_numbers = #tpu.dot_dimension_numbers<[2], [1], [1], [2], [0, 0, 0, 1, 1, 2], [0], [0]>} : vector<2x8x8xbf16>, vector<2x8x16xbf16>, vector<2x8x16xf32> -> vector<2x8x16xf32>
    "tpu.trace_stop"() : () -> ()
    %49 = vector.shape_cast %48 : vector<2x8x16xf32> to vector<16x16xf32>
    %c0_19 = arith.constant 0 : index
    %c0_20 = arith.constant 0 : index
    %c0_21 = arith.constant 0 : index
    %c0_22 = arith.constant 0 : index
    %50 = vector.load %arg7[%c0_19, %c0_20, %c0_21, %c0_22] : memref<2x4x16x64xf32, #tpu.memory_space<vmem>>, vector<1x1x16x64xf32>
    %51 = vector.shape_cast %50 : vector<1x1x16x64xf32> to vector<16x64xf32>
    %52 = arith.truncf %49 : vector<16x16xf32> to vector<16x16xbf16>
    %53 = arith.truncf %51 : vector<16x64xf32> to vector<16x64xbf16>
    %cst_23 = arith.constant dense<0.000000e+00> : vector<16x64xf32>
    %54 = tpu.matmul %52, %53, %cst_23 {dimension_numbers = #tpu.dot_dimension_numbers<[1], [0], [0], [1], [0, 0, 1, 1], [], []>} : vector<16x16xbf16>, vector<16x64xbf16>, vector<16x64xf32> -> vector<16x64xf32>
    %55 = vector.extract_strided_slice %25 {offsets = [0, 0, 16], sizes = [2, 8, 16], strides = [1, 1, 1]} : vector<2x8x64xf32> to vector<2x8x16xf32>
    %56 = vector.extract_strided_slice %27 {offsets = [0, 0, 16], sizes = [2, 8, 16], strides = [1, 1, 1]} : vector<2x8x64xf32> to vector<2x8x16xf32>
    %57 = vector.extract_strided_slice %29 {offsets = [0, 0, 16], sizes = [2, 8, 16], strides = [1, 1, 1]} : vector<2x8x64xf32> to vector<2x8x16xf32>
    %58 = arith.truncf %55 : vector<2x8x16xf32> to vector<2x8x16xbf16>
    %59 = arith.truncf %56 : vector<2x8x16xf32> to vector<2x8x16xbf16>
    "tpu.trace_start"() <{level = 10 : i32, message = "bqd,bkd->bqk"}> : () -> ()
    %cst_24 = arith.constant dense<0.000000e+00> : vector<2x8x8xf32>
    %60 = tpu.matmul %58, %59, %cst_24 {dimension_numbers = #tpu.dot_dimension_numbers<[2], [2], [1], [1], [0, 0, 0, 1, 1, 1], [0], [0]>} : vector<2x8x16xbf16>, vector<2x8x16xbf16>, vector<2x8x8xf32> -> vector<2x8x8xf32>
    "tpu.trace_stop"() : () -> ()
    %cst_25 = arith.constant dense<0xFF800000> : vector<2x8xf32>
    %61 = vector.multi_reduction <maximumf>, %60, %cst_25 [2] : vector<2x8x8xf32> to vector<2x8xf32>
    %62 = vector.shape_cast %61 : vector<2x8xf32> to vector<2x8x1xf32>
    %63 = vector.broadcast %62 : vector<2x8x1xf32> to vector<2x8x8xf32>
    %64 = arith.subf %60, %63 : vector<2x8x8xf32>
    %65 = math.exp %64 : vector<2x8x8xf32>
    %cst_26 = arith.constant dense<0.000000e+00> : vector<2x8xf32>
    %66 = vector.multi_reduction <add>, %65, %cst_26 [2] : vector<2x8x8xf32> to vector<2x8xf32>
    %67 = vector.shape_cast %66 : vector<2x8xf32> to vector<2x8x1xf32>
    %68 = tpu.reciprocal %67 {approx = true} : vector<2x8x1xf32> -> vector<2x8x1xf32>
    %69 = vector.broadcast %68 : vector<2x8x1xf32> to vector<2x8x8xf32>
    %70 = arith.mulf %65, %69 : vector<2x8x8xf32>
    %71 = arith.truncf %70 : vector<2x8x8xf32> to vector<2x8x8xbf16>
    %72 = arith.truncf %57 : vector<2x8x16xf32> to vector<2x8x16xbf16>
    "tpu.trace_start"() <{level = 10 : i32, message = "bqk,bkd->bqd"}> : () -> ()
    %cst_27 = arith.constant dense<0.000000e+00> : vector<2x8x16xf32>
    %73 = tpu.matmul %71, %72, %cst_27 {dimension_numbers = #tpu.dot_dimension_numbers<[2], [1], [1], [2], [0, 0, 0, 1, 1, 2], [0], [0]>} : vector<2x8x8xbf16>, vector<2x8x16xbf16>, vector<2x8x16xf32> -> vector<2x8x16xf32>
    "tpu.trace_stop"() : () -> ()
    %74 = vector.shape_cast %73 : vector<2x8x16xf32> to vector<16x16xf32>
    %c0_28 = arith.constant 0 : index
    %c1 = arith.constant 1 : index
    %c0_29 = arith.constant 0 : index
    %c0_30 = arith.constant 0 : index
    %75 = vector.load %arg7[%c0_28, %c1, %c0_29, %c0_30] : memref<2x4x16x64xf32, #tpu.memory_space<vmem>>, vector<1x1x16x64xf32>
    %76 = vector.shape_cast %75 : vector<1x1x16x64xf32> to vector<16x64xf32>
    %77 = arith.truncf %74 : vector<16x16xf32> to vector<16x16xbf16>
    %78 = arith.truncf %76 : vector<16x64xf32> to vector<16x64xbf16>
    %cst_31 = arith.constant dense<0.000000e+00> : vector<16x64xf32>
    %79 = tpu.matmul %77, %78, %cst_31 {dimension_numbers = #tpu.dot_dimension_numbers<[1], [0], [0], [1], [0, 0, 1, 1], [], []>} : vector<16x16xbf16>, vector<16x64xbf16>, vector<16x64xf32> -> vector<16x64xf32>
    %80 = arith.addf %54, %79 : vector<16x64xf32>
    %81 = vector.extract_strided_slice %25 {offsets = [0, 0, 32], sizes = [2, 8, 16], strides = [1, 1, 1]} : vector<2x8x64xf32> to vector<2x8x16xf32>
    %82 = vector.extract_strided_slice %27 {offsets = [0, 0, 32], sizes = [2, 8, 16], strides = [1, 1, 1]} : vector<2x8x64xf32> to vector<2x8x16xf32>
    %83 = vector.extract_strided_slice %29 {offsets = [0, 0, 32], sizes = [2, 8, 16], strides = [1, 1, 1]} : vector<2x8x64xf32> to vector<2x8x16xf32>
    %84 = arith.truncf %81 : vector<2x8x16xf32> to vector<2x8x16xbf16>
    %85 = arith.truncf %82 : vector<2x8x16xf32> to vector<2x8x16xbf16>
    "tpu.trace_start"() <{level = 10 : i32, message = "bqd,bkd->bqk"}> : () -> ()
    %cst_32 = arith.constant dense<0.000000e+00> : vector<2x8x8xf32>
    %86 = tpu.matmul %84, %85, %cst_32 {dimension_numbers = #tpu.dot_dimension_numbers<[2], [2], [1], [1], [0, 0, 0, 1, 1, 1], [0], [0]>} : vector<2x8x16xbf16>, vector<2x8x16xbf16>, vector<2x8x8xf32> -> vector<2x8x8xf32>
    "tpu.trace_stop"() : () -> ()
    %cst_33 = arith.constant dense<0xFF800000> : vector<2x8xf32>
    %87 = vector.multi_reduction <maximumf>, %86, %cst_33 [2] : vector<2x8x8xf32> to vector<2x8xf32>
    %88 = vector.shape_cast %87 : vector<2x8xf32> to vector<2x8x1xf32>
    %89 = vector.broadcast %88 : vector<2x8x1xf32> to vector<2x8x8xf32>
    %90 = arith.subf %86, %89 : vector<2x8x8xf32>
    %91 = math.exp %90 : vector<2x8x8xf32>
    %cst_34 = arith.constant dense<0.000000e+00> : vector<2x8xf32>
    %92 = vector.multi_reduction <add>, %91, %cst_34 [2] : vector<2x8x8xf32> to vector<2x8xf32>
    %93 = vector.shape_cast %92 : vector<2x8xf32> to vector<2x8x1xf32>
    %94 = tpu.reciprocal %93 {approx = true} : vector<2x8x1xf32> -> vector<2x8x1xf32>
    %95 = vector.broadcast %94 : vector<2x8x1xf32> to vector<2x8x8xf32>
    %96 = arith.mulf %91, %95 : vector<2x8x8xf32>
    %97 = arith.truncf %96 : vector<2x8x8xf32> to vector<2x8x8xbf16>
    %98 = arith.truncf %83 : vector<2x8x16xf32> to vector<2x8x16xbf16>
    "tpu.trace_start"() <{level = 10 : i32, message = "bqk,bkd->bqd"}> : () -> ()
    %cst_35 = arith.constant dense<0.000000e+00> : vector<2x8x16xf32>
    %99 = tpu.matmul %97, %98, %cst_35 {dimension_numbers = #tpu.dot_dimension_numbers<[2], [1], [1], [2], [0, 0, 0, 1, 1, 2], [0], [0]>} : vector<2x8x8xbf16>, vector<2x8x16xbf16>, vector<2x8x16xf32> -> vector<2x8x16xf32>
    "tpu.trace_stop"() : () -> ()
    %100 = vector.shape_cast %99 : vector<2x8x16xf32> to vector<16x16xf32>
    %c0_36 = arith.constant 0 : index
    %c2 = arith.constant 2 : index
    %c0_37 = arith.constant 0 : index
    %c0_38 = arith.constant 0 : index
    %101 = vector.load %arg7[%c0_36, %c2, %c0_37, %c0_38] : memref<2x4x16x64xf32, #tpu.memory_space<vmem>>, vector<1x1x16x64xf32>
    %102 = vector.shape_cast %101 : vector<1x1x16x64xf32> to vector<16x64xf32>
    %103 = arith.truncf %100 : vector<16x16xf32> to vector<16x16xbf16>
    %104 = arith.truncf %102 : vector<16x64xf32> to vector<16x64xbf16>
    %cst_39 = arith.constant dense<0.000000e+00> : vector<16x64xf32>
    %105 = tpu.matmul %103, %104, %cst_39 {dimension_numbers = #tpu.dot_dimension_numbers<[1], [0], [0], [1], [0, 0, 1, 1], [], []>} : vector<16x16xbf16>, vector<16x64xbf16>, vector<16x64xf32> -> vector<16x64xf32>
    %106 = arith.addf %80, %105 : vector<16x64xf32>
    %107 = vector.extract_strided_slice %25 {offsets = [0, 0, 48], sizes = [2, 8, 16], strides = [1, 1, 1]} : vector<2x8x64xf32> to vector<2x8x16xf32>
    %108 = vector.extract_strided_slice %27 {offsets = [0, 0, 48], sizes = [2, 8, 16], strides = [1, 1, 1]} : vector<2x8x64xf32> to vector<2x8x16xf32>
    %109 = vector.extract_strided_slice %29 {offsets = [0, 0, 48], sizes = [2, 8, 16], strides = [1, 1, 1]} : vector<2x8x64xf32> to vector<2x8x16xf32>
    %110 = arith.truncf %107 : vector<2x8x16xf32> to vector<2x8x16xbf16>
    %111 = arith.truncf %108 : vector<2x8x16xf32> to vector<2x8x16xbf16>
    "tpu.trace_start"() <{level = 10 : i32, message = "bqd,bkd->bqk"}> : () -> ()
    %cst_40 = arith.constant dense<0.000000e+00> : vector<2x8x8xf32>
    %112 = tpu.matmul %110, %111, %cst_40 {dimension_numbers = #tpu.dot_dimension_numbers<[2], [2], [1], [1], [0, 0, 0, 1, 1, 1], [0], [0]>} : vector<2x8x16xbf16>, vector<2x8x16xbf16>, vector<2x8x8xf32> -> vector<2x8x8xf32>
    "tpu.trace_stop"() : () -> ()
    %cst_41 = arith.constant dense<0xFF800000> : vector<2x8xf32>
    %113 = vector.multi_reduction <maximumf>, %112, %cst_41 [2] : vector<2x8x8xf32> to vector<2x8xf32>
    %114 = vector.shape_cast %113 : vector<2x8xf32> to vector<2x8x1xf32>
    %115 = vector.broadcast %114 : vector<2x8x1xf32> to vector<2x8x8xf32>
    %116 = arith.subf %112, %115 : vector<2x8x8xf32>
    %117 = math.exp %116 : vector<2x8x8xf32>
    %cst_42 = arith.constant dense<0.000000e+00> : vector<2x8xf32>
    %118 = vector.multi_reduction <add>, %117, %cst_42 [2] : vector<2x8x8xf32> to vector<2x8xf32>
    %119 = vector.shape_cast %118 : vector<2x8xf32> to vector<2x8x1xf32>
    %120 = tpu.reciprocal %119 {approx = true} : vector<2x8x1xf32> -> vector<2x8x1xf32>
    %121 = vector.broadcast %120 : vector<2x8x1xf32> to vector<2x8x8xf32>
    %122 = arith.mulf %117, %121 : vector<2x8x8xf32>
    %123 = arith.truncf %122 : vector<2x8x8xf32> to vector<2x8x8xbf16>
    %124 = arith.truncf %109 : vector<2x8x16xf32> to vector<2x8x16xbf16>
    "tpu.trace_start"() <{level = 10 : i32, message = "bqk,bkd->bqd"}> : () -> ()
    %cst_43 = arith.constant dense<0.000000e+00> : vector<2x8x16xf32>
    %125 = tpu.matmul %123, %124, %cst_43 {dimension_numbers = #tpu.dot_dimension_numbers<[2], [1], [1], [2], [0, 0, 0, 1, 1, 2], [0], [0]>} : vector<2x8x8xbf16>, vector<2x8x16xbf16>, vector<2x8x16xf32> -> vector<2x8x16xf32>
    "tpu.trace_stop"() : () -> ()
    %126 = vector.shape_cast %125 : vector<2x8x16xf32> to vector<16x16xf32>
    %c0_44 = arith.constant 0 : index
    %c3 = arith.constant 3 : index
    %c0_45 = arith.constant 0 : index
    %c0_46 = arith.constant 0 : index
    %127 = vector.load %arg7[%c0_44, %c3, %c0_45, %c0_46] : memref<2x4x16x64xf32, #tpu.memory_space<vmem>>, vector<1x1x16x64xf32>
    %128 = vector.shape_cast %127 : vector<1x1x16x64xf32> to vector<16x64xf32>
    %129 = arith.truncf %126 : vector<16x16xf32> to vector<16x16xbf16>
    %130 = arith.truncf %128 : vector<16x64xf32> to vector<16x64xbf16>
    %cst_47 = arith.constant dense<0.000000e+00> : vector<16x64xf32>
    %131 = tpu.matmul %129, %130, %cst_47 {dimension_numbers = #tpu.dot_dimension_numbers<[1], [0], [0], [1], [0, 0, 1, 1], [], []>} : vector<16x16xbf16>, vector<16x64xbf16>, vector<16x64xf32> -> vector<16x64xf32>
    %132 = arith.addf %106, %131 : vector<16x64xf32>
    %c0_48 = arith.constant 0 : index
    %c0_49 = arith.constant 0 : index
    %c0_50 = arith.constant 0 : index
    %133 = vector.load %arg8[%c0_48, %c0_49, %c0_50] : memref<2x1x64xf32, #tpu.memory_space<vmem>>, vector<1x1x64xf32>
    %134 = vector.shape_cast %133 : vector<1x1x64xf32> to vector<1x64xf32>
    %135 = vector.broadcast %134 : vector<1x64xf32> to vector<16x64xf32>
    %136 = arith.addf %132, %135 : vector<16x64xf32>
    %137 = arith.addf %14, %136 : vector<16x64xf32>
    %c0_51 = arith.constant 0 : index
    %c0_52 = arith.constant 0 : index
    %c0_53 = arith.constant 0 : index
    %138 = vector.load %arg9[%c0_51, %c0_52, %c0_53] : memref<2x1x64xf32, #tpu.memory_space<vmem>>, vector<1x1x64xf32>
    %139 = vector.shape_cast %138 : vector<1x1x64xf32> to vector<1x64xf32>
    %c0_54 = arith.constant 0 : index
    %c0_55 = arith.constant 0 : index
    %c0_56 = arith.constant 0 : index
    %140 = vector.load %arg10[%c0_54, %c0_55, %c0_56] : memref<2x1x64xf32, #tpu.memory_space<vmem>>, vector<1x1x64xf32>
    %141 = vector.shape_cast %140 : vector<1x1x64xf32> to vector<1x64xf32>
    %cst_57 = arith.constant dense<0.000000e+00> : vector<16xf32>
    %142 = vector.multi_reduction <add>, %137, %cst_57 [1] : vector<16x64xf32> to vector<16xf32>
    %143 = vector.shape_cast %142 : vector<16xf32> to vector<16x1xf32>
    %cst_58 = arith.constant 6.400000e+01 : f32
    %144 = vector.broadcast %cst_58 : f32 to vector<16x1xf32>
    %145 = arith.divf %143, %144 : vector<16x1xf32>
    %146 = vector.broadcast %145 : vector<16x1xf32> to vector<16x64xf32>
    %147 = arith.subf %137, %146 : vector<16x64xf32>
    %148 = arith.mulf %147, %147 : vector<16x64xf32>
    %cst_59 = arith.constant dense<0.000000e+00> : vector<16xf32>
    %149 = vector.multi_reduction <add>, %148, %cst_59 [1] : vector<16x64xf32> to vector<16xf32>
    %150 = vector.shape_cast %149 : vector<16xf32> to vector<16x1xf32>
    %cst_60 = arith.constant 6.400000e+01 : f32
    %151 = vector.broadcast %cst_60 : f32 to vector<16x1xf32>
    %152 = arith.divf %150, %151 : vector<16x1xf32>
    %153 = vector.broadcast %145 : vector<16x1xf32> to vector<16x64xf32>
    %154 = arith.subf %137, %153 : vector<16x64xf32>
    %cst_61 = arith.constant 9.99999974E-6 : f32
    %155 = vector.broadcast %cst_61 : f32 to vector<16x1xf32>
    %156 = arith.addf %152, %155 : vector<16x1xf32>
    %157 = math.rsqrt %156 : vector<16x1xf32>
    %158 = vector.broadcast %157 : vector<16x1xf32> to vector<16x64xf32>
    %159 = arith.mulf %154, %158 : vector<16x64xf32>
    %160 = vector.broadcast %139 : vector<1x64xf32> to vector<16x64xf32>
    %161 = arith.mulf %159, %160 : vector<16x64xf32>
    %162 = vector.broadcast %141 : vector<1x64xf32> to vector<16x64xf32>
    %163 = arith.addf %161, %162 : vector<16x64xf32>
    %c0_62 = arith.constant 0 : index
    %c0_63 = arith.constant 0 : index
    %c0_64 = arith.constant 0 : index
    %164 = vector.load %arg11[%c0_62, %c0_63, %c0_64] : memref<2x64x128xf32, #tpu.memory_space<vmem>>, vector<1x64x128xf32>
    %165 = vector.shape_cast %164 : vector<1x64x128xf32> to vector<64x128xf32>
    %166 = arith.truncf %163 : vector<16x64xf32> to vector<16x64xbf16>
    %167 = arith.truncf %165 : vector<64x128xf32> to vector<64x128xbf16>
    %cst_65 = arith.constant dense<0.000000e+00> : vector<16x128xf32>
    %168 = tpu.matmul %166, %167, %cst_65 {dimension_numbers = #tpu.dot_dimension_numbers<[1], [0], [0], [1], [0, 0, 1, 1], [], []>} : vector<16x64xbf16>, vector<64x128xbf16>, vector<16x128xf32> -> vector<16x128xf32>
    %c0_66 = arith.constant 0 : index
    %c0_67 = arith.constant 0 : index
    %c0_68 = arith.constant 0 : index
    %169 = vector.load %arg12[%c0_66, %c0_67, %c0_68] : memref<2x1x128xf32, #tpu.memory_space<vmem>>, vector<1x1x128xf32>
    %170 = vector.shape_cast %169 : vector<1x1x128xf32> to vector<1x128xf32>
    %171 = vector.broadcast %170 : vector<1x128xf32> to vector<16x128xf32>
    %172 = arith.addf %168, %171 : vector<16x128xf32>
    %cst_69 = arith.constant 0.000000e+00 : f32
    %173 = vector.broadcast %cst_69 : f32 to vector<16x128xf32>
    %174 = arith.maximumf %172, %173 : vector<16x128xf32>
    %c0_70 = arith.constant 0 : index
    %c0_71 = arith.constant 0 : index
    %c0_72 = arith.constant 0 : index
    %175 = vector.load %arg13[%c0_70, %c0_71, %c0_72] : memref<2x128x64xf32, #tpu.memory_space<vmem>>, vector<1x128x64xf32>
    %176 = vector.shape_cast %175 : vector<1x128x64xf32> to vector<128x64xf32>
    %177 = arith.truncf %174 : vector<16x128xf32> to vector<16x128xbf16>
    %178 = arith.truncf %176 : vector<128x64xf32> to vector<128x64xbf16>
    %cst_73 = arith.constant dense<0.000000e+00> : vector<16x64xf32>
    %179 = tpu.matmul %177, %178, %cst_73 {dimension_numbers = #tpu.dot_dimension_numbers<[1], [0], [0], [1], [0, 0, 1, 1], [], []>} : vector<16x128xbf16>, vector<128x64xbf16>, vector<16x64xf32> -> vector<16x64xf32>
    %c0_74 = arith.constant 0 : index
    %c0_75 = arith.constant 0 : index
    %c0_76 = arith.constant 0 : index
    %180 = vector.load %arg14[%c0_74, %c0_75, %c0_76] : memref<2x1x64xf32, #tpu.memory_space<vmem>>, vector<1x1x64xf32>
    %181 = vector.shape_cast %180 : vector<1x1x64xf32> to vector<1x64xf32>
    %182 = vector.broadcast %181 : vector<1x64xf32> to vector<16x64xf32>
    %183 = arith.addf %179, %182 : vector<16x64xf32>
    %184 = arith.addf %163, %183 : vector<16x64xf32>
    %c0_77 = arith.constant 0 : index
    %c0_78 = arith.constant 0 : index
    %c0_79 = arith.constant 0 : index
    %185 = vector.load %arg15[%c0_77, %c0_78, %c0_79] : memref<2x1x64xf32, #tpu.memory_space<vmem>>, vector<1x1x64xf32>
    %186 = vector.shape_cast %185 : vector<1x1x64xf32> to vector<1x64xf32>
    %c0_80 = arith.constant 0 : index
    %c0_81 = arith.constant 0 : index
    %c0_82 = arith.constant 0 : index
    %187 = vector.load %arg16[%c0_80, %c0_81, %c0_82] : memref<2x1x64xf32, #tpu.memory_space<vmem>>, vector<1x1x64xf32>
    %188 = vector.shape_cast %187 : vector<1x1x64xf32> to vector<1x64xf32>
    %cst_83 = arith.constant dense<0.000000e+00> : vector<16xf32>
    %189 = vector.multi_reduction <add>, %184, %cst_83 [1] : vector<16x64xf32> to vector<16xf32>
    %190 = vector.shape_cast %189 : vector<16xf32> to vector<16x1xf32>
    %cst_84 = arith.constant 6.400000e+01 : f32
    %191 = vector.broadcast %cst_84 : f32 to vector<16x1xf32>
    %192 = arith.divf %190, %191 : vector<16x1xf32>
    %193 = vector.broadcast %192 : vector<16x1xf32> to vector<16x64xf32>
    %194 = arith.subf %184, %193 : vector<16x64xf32>
    %195 = arith.mulf %194, %194 : vector<16x64xf32>
    %cst_85 = arith.constant dense<0.000000e+00> : vector<16xf32>
    %196 = vector.multi_reduction <add>, %195, %cst_85 [1] : vector<16x64xf32> to vector<16xf32>
    %197 = vector.shape_cast %196 : vector<16xf32> to vector<16x1xf32>
    %cst_86 = arith.constant 6.400000e+01 : f32
    %198 = vector.broadcast %cst_86 : f32 to vector<16x1xf32>
    %199 = arith.divf %197, %198 : vector<16x1xf32>
    %200 = vector.broadcast %192 : vector<16x1xf32> to vector<16x64xf32>
    %201 = arith.subf %184, %200 : vector<16x64xf32>
    %cst_87 = arith.constant 9.99999974E-6 : f32
    %202 = vector.broadcast %cst_87 : f32 to vector<16x1xf32>
    %203 = arith.addf %199, %202 : vector<16x1xf32>
    %204 = math.rsqrt %203 : vector<16x1xf32>
    %205 = vector.broadcast %204 : vector<16x1xf32> to vector<16x64xf32>
    %206 = arith.mulf %201, %205 : vector<16x64xf32>
    %207 = vector.broadcast %186 : vector<1x64xf32> to vector<16x64xf32>
    %208 = arith.mulf %206, %207 : vector<16x64xf32>
    %209 = vector.broadcast %188 : vector<1x64xf32> to vector<16x64xf32>
    %210 = arith.addf %208, %209 : vector<16x64xf32>
    %c1_88 = arith.constant 1 : index
    %c0_89 = arith.constant 0 : index
    %c0_90 = arith.constant 0 : index
    %211 = vector.load %arg5[%c1_88, %c0_89, %c0_90] : memref<2x64x256xf32, #tpu.memory_space<vmem>>, vector<1x64x256xf32>
    %212 = vector.shape_cast %211 : vector<1x64x256xf32> to vector<64x256xf32>
    %213 = arith.truncf %210 : vector<16x64xf32> to vector<16x64xbf16>
    %214 = arith.truncf %212 : vector<64x256xf32> to vector<64x256xbf16>
    %cst_91 = arith.constant dense<0.000000e+00> : vector<16x256xf32>
    %215 = tpu.matmul %213, %214, %cst_91 {dimension_numbers = #tpu.dot_dimension_numbers<[1], [0], [0], [1], [0, 0, 1, 1], [], []>} : vector<16x64xbf16>, vector<64x256xbf16>, vector<16x256xf32> -> vector<16x256xf32>
    %c1_92 = arith.constant 1 : index
    %c0_93 = arith.constant 0 : index
    %c0_94 = arith.constant 0 : index
    %216 = vector.load %arg6[%c1_92, %c0_93, %c0_94] : memref<2x1x256xf32, #tpu.memory_space<vmem>>, vector<1x1x256xf32>
    %217 = vector.shape_cast %216 : vector<1x1x256xf32> to vector<1x256xf32>
    %218 = vector.broadcast %217 : vector<1x256xf32> to vector<16x256xf32>
    %219 = arith.addf %215, %218 : vector<16x256xf32>
    %220 = vector.extract_strided_slice %219 {offsets = [0, 0], sizes = [16, 64], strides = [1, 1]} : vector<16x256xf32> to vector<16x64xf32>
    %221 = vector.shape_cast %220 : vector<16x64xf32> to vector<2x8x64xf32>
    %222 = vector.extract_strided_slice %219 {offsets = [0, 64], sizes = [16, 64], strides = [1, 1]} : vector<16x256xf32> to vector<16x64xf32>
    %223 = vector.shape_cast %222 : vector<16x64xf32> to vector<2x8x64xf32>
    %224 = vector.extract_strided_slice %219 {offsets = [0, 128], sizes = [16, 64], strides = [1, 1]} : vector<16x256xf32> to vector<16x64xf32>
    %225 = vector.shape_cast %224 : vector<16x64xf32> to vector<2x8x64xf32>
    %226 = vector.extract_strided_slice %221 {offsets = [0, 0, 0], sizes = [2, 8, 16], strides = [1, 1, 1]} : vector<2x8x64xf32> to vector<2x8x16xf32>
    %227 = vector.extract_strided_slice %223 {offsets = [0, 0, 0], sizes = [2, 8, 16], strides = [1, 1, 1]} : vector<2x8x64xf32> to vector<2x8x16xf32>
    %228 = vector.extract_strided_slice %225 {offsets = [0, 0, 0], sizes = [2, 8, 16], strides = [1, 1, 1]} : vector<2x8x64xf32> to vector<2x8x16xf32>
    %229 = arith.truncf %226 : vector<2x8x16xf32> to vector<2x8x16xbf16>
    %230 = arith.truncf %227 : vector<2x8x16xf32> to vector<2x8x16xbf16>
    "tpu.trace_start"() <{level = 10 : i32, message = "bqd,bkd->bqk"}> : () -> ()
    %cst_95 = arith.constant dense<0.000000e+00> : vector<2x8x8xf32>
    %231 = tpu.matmul %229, %230, %cst_95 {dimension_numbers = #tpu.dot_dimension_numbers<[2], [2], [1], [1], [0, 0, 0, 1, 1, 1], [0], [0]>} : vector<2x8x16xbf16>, vector<2x8x16xbf16>, vector<2x8x8xf32> -> vector<2x8x8xf32>
    "tpu.trace_stop"() : () -> ()
    %cst_96 = arith.constant dense<0xFF800000> : vector<2x8xf32>
    %232 = vector.multi_reduction <maximumf>, %231, %cst_96 [2] : vector<2x8x8xf32> to vector<2x8xf32>
    %233 = vector.shape_cast %232 : vector<2x8xf32> to vector<2x8x1xf32>
    %234 = vector.broadcast %233 : vector<2x8x1xf32> to vector<2x8x8xf32>
    %235 = arith.subf %231, %234 : vector<2x8x8xf32>
    %236 = math.exp %235 : vector<2x8x8xf32>
    %cst_97 = arith.constant dense<0.000000e+00> : vector<2x8xf32>
    %237 = vector.multi_reduction <add>, %236, %cst_97 [2] : vector<2x8x8xf32> to vector<2x8xf32>
    %238 = vector.shape_cast %237 : vector<2x8xf32> to vector<2x8x1xf32>
    %239 = tpu.reciprocal %238 {approx = true} : vector<2x8x1xf32> -> vector<2x8x1xf32>
    %240 = vector.broadcast %239 : vector<2x8x1xf32> to vector<2x8x8xf32>
    %241 = arith.mulf %236, %240 : vector<2x8x8xf32>
    %242 = arith.truncf %241 : vector<2x8x8xf32> to vector<2x8x8xbf16>
    %243 = arith.truncf %228 : vector<2x8x16xf32> to vector<2x8x16xbf16>
    "tpu.trace_start"() <{level = 10 : i32, message = "bqk,bkd->bqd"}> : () -> ()
    %cst_98 = arith.constant dense<0.000000e+00> : vector<2x8x16xf32>
    %244 = tpu.matmul %242, %243, %cst_98 {dimension_numbers = #tpu.dot_dimension_numbers<[2], [1], [1], [2], [0, 0, 0, 1, 1, 2], [0], [0]>} : vector<2x8x8xbf16>, vector<2x8x16xbf16>, vector<2x8x16xf32> -> vector<2x8x16xf32>
    "tpu.trace_stop"() : () -> ()
    %245 = vector.shape_cast %244 : vector<2x8x16xf32> to vector<16x16xf32>
    %c1_99 = arith.constant 1 : index
    %c0_100 = arith.constant 0 : index
    %c0_101 = arith.constant 0 : index
    %c0_102 = arith.constant 0 : index
    %246 = vector.load %arg7[%c1_99, %c0_100, %c0_101, %c0_102] : memref<2x4x16x64xf32, #tpu.memory_space<vmem>>, vector<1x1x16x64xf32>
    %247 = vector.shape_cast %246 : vector<1x1x16x64xf32> to vector<16x64xf32>
    %248 = arith.truncf %245 : vector<16x16xf32> to vector<16x16xbf16>
    %249 = arith.truncf %247 : vector<16x64xf32> to vector<16x64xbf16>
    %cst_103 = arith.constant dense<0.000000e+00> : vector<16x64xf32>
    %250 = tpu.matmul %248, %249, %cst_103 {dimension_numbers = #tpu.dot_dimension_numbers<[1], [0], [0], [1], [0, 0, 1, 1], [], []>} : vector<16x16xbf16>, vector<16x64xbf16>, vector<16x64xf32> -> vector<16x64xf32>
    %251 = vector.extract_strided_slice %221 {offsets = [0, 0, 16], sizes = [2, 8, 16], strides = [1, 1, 1]} : vector<2x8x64xf32> to vector<2x8x16xf32>
    %252 = vector.extract_strided_slice %223 {offsets = [0, 0, 16], sizes = [2, 8, 16], strides = [1, 1, 1]} : vector<2x8x64xf32> to vector<2x8x16xf32>
    %253 = vector.extract_strided_slice %225 {offsets = [0, 0, 16], sizes = [2, 8, 16], strides = [1, 1, 1]} : vector<2x8x64xf32> to vector<2x8x16xf32>
    %254 = arith.truncf %251 : vector<2x8x16xf32> to vector<2x8x16xbf16>
    %255 = arith.truncf %252 : vector<2x8x16xf32> to vector<2x8x16xbf16>
    "tpu.trace_start"() <{level = 10 : i32, message = "bqd,bkd->bqk"}> : () -> ()
    %cst_104 = arith.constant dense<0.000000e+00> : vector<2x8x8xf32>
    %256 = tpu.matmul %254, %255, %cst_104 {dimension_numbers = #tpu.dot_dimension_numbers<[2], [2], [1], [1], [0, 0, 0, 1, 1, 1], [0], [0]>} : vector<2x8x16xbf16>, vector<2x8x16xbf16>, vector<2x8x8xf32> -> vector<2x8x8xf32>
    "tpu.trace_stop"() : () -> ()
    %cst_105 = arith.constant dense<0xFF800000> : vector<2x8xf32>
    %257 = vector.multi_reduction <maximumf>, %256, %cst_105 [2] : vector<2x8x8xf32> to vector<2x8xf32>
    %258 = vector.shape_cast %257 : vector<2x8xf32> to vector<2x8x1xf32>
    %259 = vector.broadcast %258 : vector<2x8x1xf32> to vector<2x8x8xf32>
    %260 = arith.subf %256, %259 : vector<2x8x8xf32>
    %261 = math.exp %260 : vector<2x8x8xf32>
    %cst_106 = arith.constant dense<0.000000e+00> : vector<2x8xf32>
    %262 = vector.multi_reduction <add>, %261, %cst_106 [2] : vector<2x8x8xf32> to vector<2x8xf32>
    %263 = vector.shape_cast %262 : vector<2x8xf32> to vector<2x8x1xf32>
    %264 = tpu.reciprocal %263 {approx = true} : vector<2x8x1xf32> -> vector<2x8x1xf32>
    %265 = vector.broadcast %264 : vector<2x8x1xf32> to vector<2x8x8xf32>
    %266 = arith.mulf %261, %265 : vector<2x8x8xf32>
    %267 = arith.truncf %266 : vector<2x8x8xf32> to vector<2x8x8xbf16>
    %268 = arith.truncf %253 : vector<2x8x16xf32> to vector<2x8x16xbf16>
    "tpu.trace_start"() <{level = 10 : i32, message = "bqk,bkd->bqd"}> : () -> ()
    %cst_107 = arith.constant dense<0.000000e+00> : vector<2x8x16xf32>
    %269 = tpu.matmul %267, %268, %cst_107 {dimension_numbers = #tpu.dot_dimension_numbers<[2], [1], [1], [2], [0, 0, 0, 1, 1, 2], [0], [0]>} : vector<2x8x8xbf16>, vector<2x8x16xbf16>, vector<2x8x16xf32> -> vector<2x8x16xf32>
    "tpu.trace_stop"() : () -> ()
    %270 = vector.shape_cast %269 : vector<2x8x16xf32> to vector<16x16xf32>
    %c1_108 = arith.constant 1 : index
    %c1_109 = arith.constant 1 : index
    %c0_110 = arith.constant 0 : index
    %c0_111 = arith.constant 0 : index
    %271 = vector.load %arg7[%c1_108, %c1_109, %c0_110, %c0_111] : memref<2x4x16x64xf32, #tpu.memory_space<vmem>>, vector<1x1x16x64xf32>
    %272 = vector.shape_cast %271 : vector<1x1x16x64xf32> to vector<16x64xf32>
    %273 = arith.truncf %270 : vector<16x16xf32> to vector<16x16xbf16>
    %274 = arith.truncf %272 : vector<16x64xf32> to vector<16x64xbf16>
    %cst_112 = arith.constant dense<0.000000e+00> : vector<16x64xf32>
    %275 = tpu.matmul %273, %274, %cst_112 {dimension_numbers = #tpu.dot_dimension_numbers<[1], [0], [0], [1], [0, 0, 1, 1], [], []>} : vector<16x16xbf16>, vector<16x64xbf16>, vector<16x64xf32> -> vector<16x64xf32>
    %276 = arith.addf %250, %275 : vector<16x64xf32>
    %277 = vector.extract_strided_slice %221 {offsets = [0, 0, 32], sizes = [2, 8, 16], strides = [1, 1, 1]} : vector<2x8x64xf32> to vector<2x8x16xf32>
    %278 = vector.extract_strided_slice %223 {offsets = [0, 0, 32], sizes = [2, 8, 16], strides = [1, 1, 1]} : vector<2x8x64xf32> to vector<2x8x16xf32>
    %279 = vector.extract_strided_slice %225 {offsets = [0, 0, 32], sizes = [2, 8, 16], strides = [1, 1, 1]} : vector<2x8x64xf32> to vector<2x8x16xf32>
    %280 = arith.truncf %277 : vector<2x8x16xf32> to vector<2x8x16xbf16>
    %281 = arith.truncf %278 : vector<2x8x16xf32> to vector<2x8x16xbf16>
    "tpu.trace_start"() <{level = 10 : i32, message = "bqd,bkd->bqk"}> : () -> ()
    %cst_113 = arith.constant dense<0.000000e+00> : vector<2x8x8xf32>
    %282 = tpu.matmul %280, %281, %cst_113 {dimension_numbers = #tpu.dot_dimension_numbers<[2], [2], [1], [1], [0, 0, 0, 1, 1, 1], [0], [0]>} : vector<2x8x16xbf16>, vector<2x8x16xbf16>, vector<2x8x8xf32> -> vector<2x8x8xf32>
    "tpu.trace_stop"() : () -> ()
    %cst_114 = arith.constant dense<0xFF800000> : vector<2x8xf32>
    %283 = vector.multi_reduction <maximumf>, %282, %cst_114 [2] : vector<2x8x8xf32> to vector<2x8xf32>
    %284 = vector.shape_cast %283 : vector<2x8xf32> to vector<2x8x1xf32>
    %285 = vector.broadcast %284 : vector<2x8x1xf32> to vector<2x8x8xf32>
    %286 = arith.subf %282, %285 : vector<2x8x8xf32>
    %287 = math.exp %286 : vector<2x8x8xf32>
    %cst_115 = arith.constant dense<0.000000e+00> : vector<2x8xf32>
    %288 = vector.multi_reduction <add>, %287, %cst_115 [2] : vector<2x8x8xf32> to vector<2x8xf32>
    %289 = vector.shape_cast %288 : vector<2x8xf32> to vector<2x8x1xf32>
    %290 = tpu.reciprocal %289 {approx = true} : vector<2x8x1xf32> -> vector<2x8x1xf32>
    %291 = vector.broadcast %290 : vector<2x8x1xf32> to vector<2x8x8xf32>
    %292 = arith.mulf %287, %291 : vector<2x8x8xf32>
    %293 = arith.truncf %292 : vector<2x8x8xf32> to vector<2x8x8xbf16>
    %294 = arith.truncf %279 : vector<2x8x16xf32> to vector<2x8x16xbf16>
    "tpu.trace_start"() <{level = 10 : i32, message = "bqk,bkd->bqd"}> : () -> ()
    %cst_116 = arith.constant dense<0.000000e+00> : vector<2x8x16xf32>
    %295 = tpu.matmul %293, %294, %cst_116 {dimension_numbers = #tpu.dot_dimension_numbers<[2], [1], [1], [2], [0, 0, 0, 1, 1, 2], [0], [0]>} : vector<2x8x8xbf16>, vector<2x8x16xbf16>, vector<2x8x16xf32> -> vector<2x8x16xf32>
    "tpu.trace_stop"() : () -> ()
    %296 = vector.shape_cast %295 : vector<2x8x16xf32> to vector<16x16xf32>
    %c1_117 = arith.constant 1 : index
    %c2_118 = arith.constant 2 : index
    %c0_119 = arith.constant 0 : index
    %c0_120 = arith.constant 0 : index
    %297 = vector.load %arg7[%c1_117, %c2_118, %c0_119, %c0_120] : memref<2x4x16x64xf32, #tpu.memory_space<vmem>>, vector<1x1x16x64xf32>
    %298 = vector.shape_cast %297 : vector<1x1x16x64xf32> to vector<16x64xf32>
    %299 = arith.truncf %296 : vector<16x16xf32> to vector<16x16xbf16>
    %300 = arith.truncf %298 : vector<16x64xf32> to vector<16x64xbf16>
    %cst_121 = arith.constant dense<0.000000e+00> : vector<16x64xf32>
    %301 = tpu.matmul %299, %300, %cst_121 {dimension_numbers = #tpu.dot_dimension_numbers<[1], [0], [0], [1], [0, 0, 1, 1], [], []>} : vector<16x16xbf16>, vector<16x64xbf16>, vector<16x64xf32> -> vector<16x64xf32>
    %302 = arith.addf %276, %301 : vector<16x64xf32>
    %303 = vector.extract_strided_slice %221 {offsets = [0, 0, 48], sizes = [2, 8, 16], strides = [1, 1, 1]} : vector<2x8x64xf32> to vector<2x8x16xf32>
    %304 = vector.extract_strided_slice %223 {offsets = [0, 0, 48], sizes = [2, 8, 16], strides = [1, 1, 1]} : vector<2x8x64xf32> to vector<2x8x16xf32>
    %305 = vector.extract_strided_slice %225 {offsets = [0, 0, 48], sizes = [2, 8, 16], strides = [1, 1, 1]} : vector<2x8x64xf32> to vector<2x8x16xf32>
    %306 = arith.truncf %303 : vector<2x8x16xf32> to vector<2x8x16xbf16>
    %307 = arith.truncf %304 : vector<2x8x16xf32> to vector<2x8x16xbf16>
    "tpu.trace_start"() <{level = 10 : i32, message = "bqd,bkd->bqk"}> : () -> ()
    %cst_122 = arith.constant dense<0.000000e+00> : vector<2x8x8xf32>
    %308 = tpu.matmul %306, %307, %cst_122 {dimension_numbers = #tpu.dot_dimension_numbers<[2], [2], [1], [1], [0, 0, 0, 1, 1, 1], [0], [0]>} : vector<2x8x16xbf16>, vector<2x8x16xbf16>, vector<2x8x8xf32> -> vector<2x8x8xf32>
    "tpu.trace_stop"() : () -> ()
    %cst_123 = arith.constant dense<0xFF800000> : vector<2x8xf32>
    %309 = vector.multi_reduction <maximumf>, %308, %cst_123 [2] : vector<2x8x8xf32> to vector<2x8xf32>
    %310 = vector.shape_cast %309 : vector<2x8xf32> to vector<2x8x1xf32>
    %311 = vector.broadcast %310 : vector<2x8x1xf32> to vector<2x8x8xf32>
    %312 = arith.subf %308, %311 : vector<2x8x8xf32>
    %313 = math.exp %312 : vector<2x8x8xf32>
    %cst_124 = arith.constant dense<0.000000e+00> : vector<2x8xf32>
    %314 = vector.multi_reduction <add>, %313, %cst_124 [2] : vector<2x8x8xf32> to vector<2x8xf32>
    %315 = vector.shape_cast %314 : vector<2x8xf32> to vector<2x8x1xf32>
    %316 = tpu.reciprocal %315 {approx = true} : vector<2x8x1xf32> -> vector<2x8x1xf32>
    %317 = vector.broadcast %316 : vector<2x8x1xf32> to vector<2x8x8xf32>
    %318 = arith.mulf %313, %317 : vector<2x8x8xf32>
    %319 = arith.truncf %318 : vector<2x8x8xf32> to vector<2x8x8xbf16>
    %320 = arith.truncf %305 : vector<2x8x16xf32> to vector<2x8x16xbf16>
    "tpu.trace_start"() <{level = 10 : i32, message = "bqk,bkd->bqd"}> : () -> ()
    %cst_125 = arith.constant dense<0.000000e+00> : vector<2x8x16xf32>
    %321 = tpu.matmul %319, %320, %cst_125 {dimension_numbers = #tpu.dot_dimension_numbers<[2], [1], [1], [2], [0, 0, 0, 1, 1, 2], [0], [0]>} : vector<2x8x8xbf16>, vector<2x8x16xbf16>, vector<2x8x16xf32> -> vector<2x8x16xf32>
    "tpu.trace_stop"() : () -> ()
    %322 = vector.shape_cast %321 : vector<2x8x16xf32> to vector<16x16xf32>
    %c1_126 = arith.constant 1 : index
    %c3_127 = arith.constant 3 : index
    %c0_128 = arith.constant 0 : index
    %c0_129 = arith.constant 0 : index
    %323 = vector.load %arg7[%c1_126, %c3_127, %c0_128, %c0_129] : memref<2x4x16x64xf32, #tpu.memory_space<vmem>>, vector<1x1x16x64xf32>
    %324 = vector.shape_cast %323 : vector<1x1x16x64xf32> to vector<16x64xf32>
    %325 = arith.truncf %322 : vector<16x16xf32> to vector<16x16xbf16>
    %326 = arith.truncf %324 : vector<16x64xf32> to vector<16x64xbf16>
    %cst_130 = arith.constant dense<0.000000e+00> : vector<16x64xf32>
    %327 = tpu.matmul %325, %326, %cst_130 {dimension_numbers = #tpu.dot_dimension_numbers<[1], [0], [0], [1], [0, 0, 1, 1], [], []>} : vector<16x16xbf16>, vector<16x64xbf16>, vector<16x64xf32> -> vector<16x64xf32>
    %328 = arith.addf %302, %327 : vector<16x64xf32>
    %c1_131 = arith.constant 1 : index
    %c0_132 = arith.constant 0 : index
    %c0_133 = arith.constant 0 : index
    %329 = vector.load %arg8[%c1_131, %c0_132, %c0_133] : memref<2x1x64xf32, #tpu.memory_space<vmem>>, vector<1x1x64xf32>
    %330 = vector.shape_cast %329 : vector<1x1x64xf32> to vector<1x64xf32>
    %331 = vector.broadcast %330 : vector<1x64xf32> to vector<16x64xf32>
    %332 = arith.addf %328, %331 : vector<16x64xf32>
    %333 = arith.addf %210, %332 : vector<16x64xf32>
    %c1_134 = arith.constant 1 : index
    %c0_135 = arith.constant 0 : index
    %c0_136 = arith.constant 0 : index
    %334 = vector.load %arg9[%c1_134, %c0_135, %c0_136] : memref<2x1x64xf32, #tpu.memory_space<vmem>>, vector<1x1x64xf32>
    %335 = vector.shape_cast %334 : vector<1x1x64xf32> to vector<1x64xf32>
    %c1_137 = arith.constant 1 : index
    %c0_138 = arith.constant 0 : index
    %c0_139 = arith.constant 0 : index
    %336 = vector.load %arg10[%c1_137, %c0_138, %c0_139] : memref<2x1x64xf32, #tpu.memory_space<vmem>>, vector<1x1x64xf32>
    %337 = vector.shape_cast %336 : vector<1x1x64xf32> to vector<1x64xf32>
    %cst_140 = arith.constant dense<0.000000e+00> : vector<16xf32>
    %338 = vector.multi_reduction <add>, %333, %cst_140 [1] : vector<16x64xf32> to vector<16xf32>
    %339 = vector.shape_cast %338 : vector<16xf32> to vector<16x1xf32>
    %cst_141 = arith.constant 6.400000e+01 : f32
    %340 = vector.broadcast %cst_141 : f32 to vector<16x1xf32>
    %341 = arith.divf %339, %340 : vector<16x1xf32>
    %342 = vector.broadcast %341 : vector<16x1xf32> to vector<16x64xf32>
    %343 = arith.subf %333, %342 : vector<16x64xf32>
    %344 = arith.mulf %343, %343 : vector<16x64xf32>
    %cst_142 = arith.constant dense<0.000000e+00> : vector<16xf32>
    %345 = vector.multi_reduction <add>, %344, %cst_142 [1] : vector<16x64xf32> to vector<16xf32>
    %346 = vector.shape_cast %345 : vector<16xf32> to vector<16x1xf32>
    %cst_143 = arith.constant 6.400000e+01 : f32
    %347 = vector.broadcast %cst_143 : f32 to vector<16x1xf32>
    %348 = arith.divf %346, %347 : vector<16x1xf32>
    %349 = vector.broadcast %341 : vector<16x1xf32> to vector<16x64xf32>
    %350 = arith.subf %333, %349 : vector<16x64xf32>
    %cst_144 = arith.constant 9.99999974E-6 : f32
    %351 = vector.broadcast %cst_144 : f32 to vector<16x1xf32>
    %352 = arith.addf %348, %351 : vector<16x1xf32>
    %353 = math.rsqrt %352 : vector<16x1xf32>
    %354 = vector.broadcast %353 : vector<16x1xf32> to vector<16x64xf32>
    %355 = arith.mulf %350, %354 : vector<16x64xf32>
    %356 = vector.broadcast %335 : vector<1x64xf32> to vector<16x64xf32>
    %357 = arith.mulf %355, %356 : vector<16x64xf32>
    %358 = vector.broadcast %337 : vector<1x64xf32> to vector<16x64xf32>
    %359 = arith.addf %357, %358 : vector<16x64xf32>
    %c1_145 = arith.constant 1 : index
    %c0_146 = arith.constant 0 : index
    %c0_147 = arith.constant 0 : index
    %360 = vector.load %arg11[%c1_145, %c0_146, %c0_147] : memref<2x64x128xf32, #tpu.memory_space<vmem>>, vector<1x64x128xf32>
    %361 = vector.shape_cast %360 : vector<1x64x128xf32> to vector<64x128xf32>
    %362 = arith.truncf %359 : vector<16x64xf32> to vector<16x64xbf16>
    %363 = arith.truncf %361 : vector<64x128xf32> to vector<64x128xbf16>
    %cst_148 = arith.constant dense<0.000000e+00> : vector<16x128xf32>
    %364 = tpu.matmul %362, %363, %cst_148 {dimension_numbers = #tpu.dot_dimension_numbers<[1], [0], [0], [1], [0, 0, 1, 1], [], []>} : vector<16x64xbf16>, vector<64x128xbf16>, vector<16x128xf32> -> vector<16x128xf32>
    %c1_149 = arith.constant 1 : index
    %c0_150 = arith.constant 0 : index
    %c0_151 = arith.constant 0 : index
    %365 = vector.load %arg12[%c1_149, %c0_150, %c0_151] : memref<2x1x128xf32, #tpu.memory_space<vmem>>, vector<1x1x128xf32>
    %366 = vector.shape_cast %365 : vector<1x1x128xf32> to vector<1x128xf32>
    %367 = vector.broadcast %366 : vector<1x128xf32> to vector<16x128xf32>
    %368 = arith.addf %364, %367 : vector<16x128xf32>
    %cst_152 = arith.constant 0.000000e+00 : f32
    %369 = vector.broadcast %cst_152 : f32 to vector<16x128xf32>
    %370 = arith.maximumf %368, %369 : vector<16x128xf32>
    %c1_153 = arith.constant 1 : index
    %c0_154 = arith.constant 0 : index
    %c0_155 = arith.constant 0 : index
    %371 = vector.load %arg13[%c1_153, %c0_154, %c0_155] : memref<2x128x64xf32, #tpu.memory_space<vmem>>, vector<1x128x64xf32>
    %372 = vector.shape_cast %371 : vector<1x128x64xf32> to vector<128x64xf32>
    %373 = arith.truncf %370 : vector<16x128xf32> to vector<16x128xbf16>
    %374 = arith.truncf %372 : vector<128x64xf32> to vector<128x64xbf16>
    %cst_156 = arith.constant dense<0.000000e+00> : vector<16x64xf32>
    %375 = tpu.matmul %373, %374, %cst_156 {dimension_numbers = #tpu.dot_dimension_numbers<[1], [0], [0], [1], [0, 0, 1, 1], [], []>} : vector<16x128xbf16>, vector<128x64xbf16>, vector<16x64xf32> -> vector<16x64xf32>
    %c1_157 = arith.constant 1 : index
    %c0_158 = arith.constant 0 : index
    %c0_159 = arith.constant 0 : index
    %376 = vector.load %arg14[%c1_157, %c0_158, %c0_159] : memref<2x1x64xf32, #tpu.memory_space<vmem>>, vector<1x1x64xf32>
    %377 = vector.shape_cast %376 : vector<1x1x64xf32> to vector<1x64xf32>
    %378 = vector.broadcast %377 : vector<1x64xf32> to vector<16x64xf32>
    %379 = arith.addf %375, %378 : vector<16x64xf32>
    %380 = arith.addf %359, %379 : vector<16x64xf32>
    %c1_160 = arith.constant 1 : index
    %c0_161 = arith.constant 0 : index
    %c0_162 = arith.constant 0 : index
    %381 = vector.load %arg15[%c1_160, %c0_161, %c0_162] : memref<2x1x64xf32, #tpu.memory_space<vmem>>, vector<1x1x64xf32>
    %382 = vector.shape_cast %381 : vector<1x1x64xf32> to vector<1x64xf32>
    %c1_163 = arith.constant 1 : index
    %c0_164 = arith.constant 0 : index
    %c0_165 = arith.constant 0 : index
    %383 = vector.load %arg16[%c1_163, %c0_164, %c0_165] : memref<2x1x64xf32, #tpu.memory_space<vmem>>, vector<1x1x64xf32>
    %384 = vector.shape_cast %383 : vector<1x1x64xf32> to vector<1x64xf32>
    %cst_166 = arith.constant dense<0.000000e+00> : vector<16xf32>
    %385 = vector.multi_reduction <add>, %380, %cst_166 [1] : vector<16x64xf32> to vector<16xf32>
    %386 = vector.shape_cast %385 : vector<16xf32> to vector<16x1xf32>
    %cst_167 = arith.constant 6.400000e+01 : f32
    %387 = vector.broadcast %cst_167 : f32 to vector<16x1xf32>
    %388 = arith.divf %386, %387 : vector<16x1xf32>
    %389 = vector.broadcast %388 : vector<16x1xf32> to vector<16x64xf32>
    %390 = arith.subf %380, %389 : vector<16x64xf32>
    %391 = arith.mulf %390, %390 : vector<16x64xf32>
    %cst_168 = arith.constant dense<0.000000e+00> : vector<16xf32>
    %392 = vector.multi_reduction <add>, %391, %cst_168 [1] : vector<16x64xf32> to vector<16xf32>
    %393 = vector.shape_cast %392 : vector<16xf32> to vector<16x1xf32>
    %cst_169 = arith.constant 6.400000e+01 : f32
    %394 = vector.broadcast %cst_169 : f32 to vector<16x1xf32>
    %395 = arith.divf %393, %394 : vector<16x1xf32>
    %396 = vector.broadcast %388 : vector<16x1xf32> to vector<16x64xf32>
    %397 = arith.subf %380, %396 : vector<16x64xf32>
    %cst_170 = arith.constant 9.99999974E-6 : f32
    %398 = vector.broadcast %cst_170 : f32 to vector<16x1xf32>
    %399 = arith.addf %395, %398 : vector<16x1xf32>
    %400 = math.rsqrt %399 : vector<16x1xf32>
    %401 = vector.broadcast %400 : vector<16x1xf32> to vector<16x64xf32>
    %402 = arith.mulf %397, %401 : vector<16x64xf32>
    %403 = vector.broadcast %382 : vector<1x64xf32> to vector<16x64xf32>
    %404 = arith.mulf %402, %403 : vector<16x64xf32>
    %405 = vector.broadcast %384 : vector<1x64xf32> to vector<16x64xf32>
    %406 = arith.addf %404, %405 : vector<16x64xf32>
    %407 = vector.shape_cast %406 : vector<16x64xf32> to vector<2x8x64xf32>
    %cst_171 = arith.constant dense<0.000000e+00> : vector<2x64xf32>
    %408 = vector.multi_reduction <add>, %407, %cst_171 [1] : vector<2x8x64xf32> to vector<2x64xf32>
    %c0_172 = arith.constant 0 : index
    %c0_173 = arith.constant 0 : index
    %409 = vector.load %arg17[%c0_172, %c0_173] : memref<64x128xf32, #tpu.memory_space<vmem>>, vector<64x128xf32>
    %410 = arith.truncf %408 : vector<2x64xf32> to vector<2x64xbf16>
    %411 = arith.truncf %409 : vector<64x128xf32> to vector<64x128xbf16>
    %cst_174 = arith.constant dense<0.000000e+00> : vector<2x128xf32>
    %412 = tpu.matmul %410, %411, %cst_174 {dimension_numbers = #tpu.dot_dimension_numbers<[1], [0], [0], [1], [0, 0, 1, 1], [], []>} : vector<2x64xbf16>, vector<64x128xbf16>, vector<2x128xf32> -> vector<2x128xf32>
    %c0_175 = arith.constant 0 : index
    %c0_176 = arith.constant 0 : index
    %413 = vector.load %arg18[%c0_175, %c0_176] : memref<1x128xf32, #tpu.memory_space<vmem>>, vector<1x128xf32>
    %414 = vector.broadcast %413 : vector<1x128xf32> to vector<2x128xf32>
    %415 = arith.addf %412, %414 : vector<2x128xf32>
    %cst_177 = arith.constant 0.000000e+00 : f32
    %416 = vector.broadcast %cst_177 : f32 to vector<2x128xf32>
    %417 = arith.maximumf %415, %416 : vector<2x128xf32>
    %c0_178 = arith.constant 0 : index
    %c0_179 = arith.constant 0 : index
    %418 = vector.load %arg19[%c0_178, %c0_179] : memref<128x128xf32, #tpu.memory_space<vmem>>, vector<128x128xf32>
    %419 = arith.truncf %417 : vector<2x128xf32> to vector<2x128xbf16>
    %420 = arith.truncf %418 : vector<128x128xf32> to vector<128x128xbf16>
    %cst_180 = arith.constant dense<0.000000e+00> : vector<2x128xf32>
    %421 = tpu.matmul %419, %420, %cst_180 {dimension_numbers = #tpu.dot_dimension_numbers<[1], [0], [0], [1], [0, 0, 1, 1], [], []>} : vector<2x128xbf16>, vector<128x128xbf16>, vector<2x128xf32> -> vector<2x128xf32>
    %c0_181 = arith.constant 0 : index
    %c0_182 = arith.constant 0 : index
    %422 = vector.load %arg20[%c0_181, %c0_182] : memref<1x128xf32, #tpu.memory_space<vmem>>, vector<1x128xf32>
    %423 = vector.broadcast %422 : vector<1x128xf32> to vector<2x128xf32>
    %424 = arith.addf %421, %423 : vector<2x128xf32>
    %c0_183 = arith.constant 0 : index
    %c0_184 = arith.constant 0 : index
    %425 = vector.load %arg21[%c0_183, %c0_184] : memref<2x128xf32, #tpu.memory_space<vmem>>, vector<2x128xf32>
    tpu.vector_store %arg21[%c0_183, %c0_184], %424 {strides = array<i32>} : memref<2x128xf32, #tpu.memory_space<vmem>>, vector<2x128xf32>,
    return
  }
  func.func @transform_0(%arg0: i32) -> (i32, i32, i32) {
    %c0_i32 = arith.constant 0 : i32
    %c0_i32_0 = arith.constant 0 : i32
    %c0_i32_1 = arith.constant 0 : i32
    return %arg0, %c0_i32, %c0_i32_0 : i32, i32, i32
  }
  func.func @transform_1(%arg0: i32) -> (i32, i32) {
    %c0_i32 = arith.constant 0 : i32
    %c0_i32_0 = arith.constant 0 : i32
    %c0_i32_1 = arith.constant 0 : i32
    return %c0_i32, %c0_i32_0 : i32, i32
  }
  func.func @transform_2(%arg0: i32) -> (i32, i32) {
    %c0_i32 = arith.constant 0 : i32
    %c0_i32_0 = arith.constant 0 : i32
    %c0_i32_1 = arith.constant 0 : i32
    return %c0_i32, %c0_i32_0 : i32, i32
  }
  func.func @transform_3(%arg0: i32) -> (i32, i32) {
    %c0_i32 = arith.constant 0 : i32
    %c0_i32_0 = arith.constant 0 : i32
    %c0_i32_1 = arith.constant 0 : i32
    return %c0_i32, %c0_i32_0 : i32, i32
  }
  func.func @transform_4(%arg0: i32) -> (i32, i32, i32) {
    %c0_i32 = arith.constant 0 : i32
    %c0_i32_0 = arith.constant 0 : i32
    %c0_i32_1 = arith.constant 0 : i32
    %c0_i32_2 = arith.constant 0 : i32
    return %c0_i32, %c0_i32_0, %c0_i32_1 : i32, i32, i32
  }
  func.func @transform_5(%arg0: i32) -> (i32, i32, i32) {
    %c0_i32 = arith.constant 0 : i32
    %c0_i32_0 = arith.constant 0 : i32
    %c0_i32_1 = arith.constant 0 : i32
    %c0_i32_2 = arith.constant 0 : i32
    return %c0_i32, %c0_i32_0, %c0_i32_1 : i32, i32, i32
  }
  func.func @transform_6(%arg0: i32) -> (i32, i32, i32, i32) {
    %c0_i32 = arith.constant 0 : i32
    %c0_i32_0 = arith.constant 0 : i32
    %c0_i32_1 = arith.constant 0 : i32
    %c0_i32_2 = arith.constant 0 : i32
    %c0_i32_3 = arith.constant 0 : i32
    return %c0_i32, %c0_i32_0, %c0_i32_1, %c0_i32_2 : i32, i32, i32, i32
  }
  func.func @transform_7(%arg0: i32) -> (i32, i32, i32) {
    %c0_i32 = arith.constant 0 : i32
    %c0_i32_0 = arith.constant 0 : i32
    %c0_i32_1 = arith.constant 0 : i32
    %c0_i32_2 = arith.constant 0 : i32
    return %c0_i32, %c0_i32_0, %c0_i32_1 : i32, i32, i32
  }
  func.func @transform_8(%arg0: i32) -> (i32, i32, i32) {
    %c0_i32 = arith.constant 0 : i32
    %c0_i32_0 = arith.constant 0 : i32
    %c0_i32_1 = arith.constant 0 : i32
    %c0_i32_2 = arith.constant 0 : i32
    return %c0_i32, %c0_i32_0, %c0_i32_1 : i32, i32, i32
  }
  func.func @transform_9(%arg0: i32) -> (i32, i32, i32) {
    %c0_i32 = arith.constant 0 : i32
    %c0_i32_0 = arith.constant 0 : i32
    %c0_i32_1 = arith.constant 0 : i32
    %c0_i32_2 = arith.constant 0 : i32
    return %c0_i32, %c0_i32_0, %c0_i32_1 : i32, i32, i32
  }
  func.func @transform_10(%arg0: i32) -> (i32, i32, i32) {
    %c0_i32 = arith.constant 0 : i32
    %c0_i32_0 = arith.constant 0 : i32
    %c0_i32_1 = arith.constant 0 : i32
    %c0_i32_2 = arith.constant 0 : i32
    return %c0_i32, %c0_i32_0, %c0_i32_1 : i32, i32, i32
  }
  func.func @transform_11(%arg0: i32) -> (i32, i32, i32) {
    %c0_i32 = arith.constant 0 : i32
    %c0_i32_0 = arith.constant 0 : i32
    %c0_i32_1 = arith.constant 0 : i32
    %c0_i32_2 = arith.constant 0 : i32
    return %c0_i32, %c0_i32_0, %c0_i32_1 : i32, i32, i32
  }
  func.func @transform_12(%arg0: i32) -> (i32, i32, i32) {
    %c0_i32 = arith.constant 0 : i32
    %c0_i32_0 = arith.constant 0 : i32
    %c0_i32_1 = arith.constant 0 : i32
    %c0_i32_2 = arith.constant 0 : i32
    return %c0_i32, %c0_i32_0, %c0_i32_1 : i32, i32, i32
  }
  func.func @transform_13(%arg0: i32) -> (i32, i32, i32) {
    %c0_i32 = arith.constant 0 : i32
    %c0_i32_0 = arith.constant 0 : i32
    %c0_i32_1 = arith.constant 0 : i32
    %c0_i32_2 = arith.constant 0 : i32
    return %c0_i32, %c0_i32_0, %c0_i32_1 : i32, i32, i32
  }
  func.func @transform_14(%arg0: i32) -> (i32, i32, i32) {
    %c0_i32 = arith.constant 0 : i32
    %c0_i32_0 = arith.constant 0 : i32
    %c0_i32_1 = arith.constant 0 : i32
    %c0_i32_2 = arith.constant 0 : i32
    return %c0_i32, %c0_i32_0, %c0_i32_1 : i32, i32, i32
  }
  func.func @transform_15(%arg0: i32) -> (i32, i32, i32) {
    %c0_i32 = arith.constant 0 : i32
    %c0_i32_0 = arith.constant 0 : i32
    %c0_i32_1 = arith.constant 0 : i32
    %c0_i32_2 = arith.constant 0 : i32
    return %c0_i32, %c0_i32_0, %c0_i32_1 : i32, i32, i32
  }
  func.func @transform_16(%arg0: i32) -> (i32, i32) {
    %c0_i32 = arith.constant 0 : i32
    %c0_i32_0 = arith.constant 0 : i32
    %c0_i32_1 = arith.constant 0 : i32
    return %c0_i32, %c0_i32_0 : i32, i32
  }
  func.func @transform_17(%arg0: i32) -> (i32, i32) {
    %c0_i32 = arith.constant 0 : i32
    %c0_i32_0 = arith.constant 0 : i32
    %c0_i32_1 = arith.constant 0 : i32
    return %c0_i32, %c0_i32_0 : i32, i32
  }
  func.func @transform_18(%arg0: i32) -> (i32, i32) {
    %c0_i32 = arith.constant 0 : i32
    %c0_i32_0 = arith.constant 0 : i32
    %c0_i32_1 = arith.constant 0 : i32
    return %c0_i32, %c0_i32_0 : i32, i32
  }
  func.func @transform_19(%arg0: i32) -> (i32, i32) {
    %c0_i32 = arith.constant 0 : i32
    %c0_i32_0 = arith.constant 0 : i32
    %c0_i32_1 = arith.constant 0 : i32
    return %c0_i32, %c0_i32_0 : i32, i32
  }
  func.func @transform_20(%arg0: i32) -> (i32, i32) {
    %c0_i32 = arith.constant 0 : i32
    %c0_i32_0 = arith.constant 0 : i32
    return %arg0, %c0_i32 : i32, i32
  }
}

</mosaic_0001>

<llo_original>
// kernel: tpu_custom_call.1
$region0: #{tpu_custom_call.1}
  #allocation0 [shape = 'u32[]', space=smem, size = 0x4, offset = 0x4, fixed_abs, tag = 'smem constant byte address 0x4 - core index']
  #allocation1 [shape = 'u32[72,128]{1,0:T(1,128)}', space=vmem, size = 0x9000, scoped, tag = 'internal scratch']
  %s0 = inlined_call_operand.hbm [shape: f32[2,8,15], index: 0, kind: input, shape index: {}]
  %s1 = inlined_call_operand.hbm [shape: f32[15,64], index: 1, kind: input, shape index: {}]
  %s2 = inlined_call_operand.hbm [shape: f32[1,64], index: 2, kind: input, shape index: {}]
  %s3 = inlined_call_operand.hbm [shape: f32[8,64], index: 3, kind: input, shape index: {}]
  %s4 = inlined_call_operand.vmem [shape: f32[2,64,256], index: 4, kind: input, shape index: {}]
  %s5 = inlined_call_operand.vmem [shape: f32[2,1,256], index: 5, kind: input, shape index: {}]
  %s6 = inlined_call_operand.vmem [shape: f32[2,4,16,64], index: 6, kind: input, shape index: {}]
  %s7 = inlined_call_operand.hbm [shape: f32[2,1,64], index: 7, kind: input, shape index: {}]
  %s8 = inlined_call_operand.hbm [shape: f32[2,1,64], index: 8, kind: input, shape index: {}]
  %s9 = inlined_call_operand.hbm [shape: f32[2,1,64], index: 9, kind: input, shape index: {}]
  %s10 = inlined_call_operand.hbm [shape: f32[2,64,128], index: 10, kind: input, shape index: {}]
  %s11 = inlined_call_operand.vmem [shape: f32[2,1,128], index: 11, kind: input, shape index: {}]
  %s12 = inlined_call_operand.vmem [shape: f32[2,128,64], index: 12, kind: input, shape index: {}]
  %s13 = inlined_call_operand.vmem [shape: f32[2,1,64], index: 13, kind: input, shape index: {}]
  %s14 = inlined_call_operand.hbm [shape: f32[2,1,64], index: 14, kind: input, shape index: {}]
  %s15 = inlined_call_operand.vmem [shape: f32[2,1,64], index: 15, kind: input, shape index: {}]
  %s16 = inlined_call_operand.hbm [shape: f32[64,128], index: 16, kind: input, shape index: {}]
  %s17 = inlined_call_operand.vmem [shape: f32[1,128], index: 17, kind: input, shape index: {}]
  %s18 = inlined_call_operand.hbm [shape: f32[128,128], index: 18, kind: input, shape index: {}]
  %s19 = inlined_call_operand.vmem [shape: f32[1,128], index: 19, kind: input, shape index: {}]
  %s20 = inlined_call_operand.hbm [shape: f32[2,128], index: 20, kind: output, shape index: {}]
  %s21 = sld [smem:[#allocation0]]
  $region134: #{tpu_custom_call.1} parent=0
    _
  %s23 = ssub.s32 1, %s21
  %s24 = scalar_select 0, %s23, %s21
  $region1: #{tpu_custom_call.1} parent=0
    #allocation2 [shape = 'u8[8192]{0}', space=vmem, size = 0x2000, scoped, tag = 'input window, operand 0, single buffered']
    #allocation3 [shape = 's32[1]{0}', space=sflag, size = 0x4, scoped, tag = 'scoped memory for tpu_custom_call.1']
    #allocation4 [shape = 's32[1]{0}', space=sflag, size = 0x4, scoped, tag = 'scoped memory for tpu_custom_call.1']
    #allocation5 [shape = 'u8[8192]{0}', space=vmem, size = 0x2000, scoped, tag = 'input window, operand 1, single buffered']
    #allocation6 [shape = 's32[1]{0}', space=sflag, size = 0x4, scoped, tag = 'scoped memory for tpu_custom_call.1']
    #allocation7 [shape = 'u8[512]{0}', space=vmem, size = 0x400, scoped, tag = 'input window, operand 2, single buffered']
    #allocation8 [shape = 'u8[4096]{0}', space=vmem, size = 0x1000, scoped, tag = 'input window, operand 3, single buffered']
    #allocation9 [shape = 's32[1]{0}', space=sflag, size = 0x4, scoped, tag = 'scoped memory for tpu_custom_call.1']
    #allocation10 [shape = 'u8[1024]{0}', space=vmem, size = 0x400, scoped, tag = 'input window, operand 7, single buffered']
    #allocation11 [shape = 'u8[1024]{0}', space=vmem, size = 0x400, scoped, tag = 'input window, operand 8, single buffered']
    #allocation12 [shape = 's32[1]{0}', space=sflag, size = 0x4, scoped, tag = 'scoped memory for tpu_custom_call.1']
    #allocation13 [shape = 'u8[1024]{0}', space=vmem, size = 0x400, scoped, tag = 'input window, operand 9, single buffered']
    #allocation14 [shape = 'u8[65536]{0}', space=vmem, size = 0x10000, scoped, tag = 'input window, operand 10, single buffered']
    #allocation15 [shape = 's32[1]{0}', space=sflag, size = 0x4, scoped, tag = 'scoped memory for tpu_custom_call.1']
    #allocation16 [shape = 'u8[1024]{0}', space=vmem, size = 0x400, scoped, tag = 'input window, operand 14, single buffered']
    #allocation17 [shape = 'u8[32768]{0}', space=vmem, size = 0x8000, scoped, tag = 'input window, operand 16, single buffered']
    #allocation18 [shape = 's32[1]{0}', space=sflag, size = 0x4, scoped, tag = 'scoped memory for tpu_custom_call.1']
    #allocation19 [shape = 'u8[65536]{0}', space=vmem, size = 0x10000, scoped, tag = 'input window, operand 18, single buffered']
    #allocation20 [shape = 'u8[1024]{0}', space=vmem, size = 0x400, scoped, tag = 'output window, operand 0, single buffered']
    %25 = vsyncpa [#allocation3], 0
    %26 = vsyncpa [#allocation6], 0
    %27 = vsyncpa [#allocation9], 0
    %28 = vsyncpa [#allocation12], 0
    %29 = vsyncpa [#allocation15], 0
    %30 = vsyncpa [#allocation18], 0
    %31 = vsyncpa [#allocation4], 0
    // Predicated region
    $region2: #{tpu_custom_call.1} parent=1 // pred_check
      _
    $region3: #{tpu_custom_call.1} parent=1 // pred_check_branch
      %33 = sbr.rel (0) target = $region5
    $region4: #{tpu_custom_call.1} parent=1 // pred_region
      %35 = vsyncadd [#allocation3], 0
      %s36 = sshll.u32 %s0, 4
      %s37 = int_to_ptr.hbm [resolvable:$true] %s36
      %s38 = sshll.u32 [#allocation2], 4
      %s39 = int_to_ptr.vmem [resolvable:$true] %s38
      %44 = dma.hbm_to_vmem [thread:$0]  %s37, 256, %s39, [#allocation3], 128, 128, 8
    $region5: #{tpu_custom_call.1} parent=1 // pred_fallthru
      _
    // Predicated region
    $region6: #{tpu_custom_call.1} parent=1 // pred_check
      _
    $region7: #{tpu_custom_call.1} parent=1 // pred_check_branch
      %46 = sbr.rel (0) target = $region9
    $region8: #{tpu_custom_call.1} parent=1 // pred_region
      %48 = vsyncadd [#allocation6], 0
      %s49 = sshll.u32 %s1, 4
      %s50 = int_to_ptr.hbm [resolvable:$true] %s49
      %s51 = sshll.u32 [#allocation5], 4
      %s52 = int_to_ptr.vmem [resolvable:$true] %s51
      %57 = dma.hbm_to_vmem [thread:$0]  %s50, 256, %s52, [#allocation6], 128, 128, 8
    $region9: #{tpu_custom_call.1} parent=1 // pred_fallthru
      _
    // Predicated region
    $region10: #{tpu_custom_call.1} parent=1 // pred_check
      _
    $region11: #{tpu_custom_call.1} parent=1 // pred_check_branch
      %59 = sbr.rel (0) target = $region13
    $region12: #{tpu_custom_call.1} parent=1 // pred_region
      %61 = vsyncadd [#allocation6], 0
      %s63 = sshll.u32 %s2, 4
      %s64 = int_to_ptr.hbm [resolvable:$true] %s63
      %s65 = sshll.u32 [#allocation7], 4
      %s66 = int_to_ptr.vmem [resolvable:$true] %s65
      %68 = dma.hbm_to_vmem [thread:$0]  %s64, 16, %s66, [#allocation6]
    $region13: #{tpu_custom_call.1} parent=1 // pred_fallthru
      _
    // Predicated region
    $region14: #{tpu_custom_call.1} parent=1 // pred_check
      _
    $region15: #{tpu_custom_call.1} parent=1 // pred_check_branch
      %70 = sbr.rel (0) target = $region17
    $region16: #{tpu_custom_call.1} parent=1 // pred_region
      %72 = vsyncadd [#allocation9], 0
      %s74 = sshll.u32 %s3, 4
      %s75 = int_to_ptr.hbm [resolvable:$true] %s74
      %s76 = sshll.u32 [#allocation8], 4
      %s77 = int_to_ptr.vmem [resolvable:$true] %s76
      %79 = dma.hbm_to_vmem [thread:$0]  %s75, 128, %s77, [#allocation9]
    $region17: #{tpu_custom_call.1} parent=1 // pred_fallthru
      _
    // Predicated region
    $region18: #{tpu_custom_call.1} parent=1 // pred_check
      _
    $region19: #{tpu_custom_call.1} parent=1 // pred_check_branch
      %81 = sbr.rel (0) target = $region21
    $region20: #{tpu_custom_call.1} parent=1 // pred_region
      _
    $region21: #{tpu_custom_call.1} parent=1 // pred_fallthru
      _
    // Predicated region
    $region22: #{tpu_custom_call.1} parent=1 // pred_check
      _
    $region23: #{tpu_custom_call.1} parent=1 // pred_check_branch
      %83 = sbr.rel (0) target = $region25
    $region24: #{tpu_custom_call.1} parent=1 // pred_region
      _
    $region25: #{tpu_custom_call.1} parent=1 // pred_fallthru
      _
    // Predicated region
    $region26: #{tpu_custom_call.1} parent=1 // pred_check
      _
    $region27: #{tpu_custom_call.1} parent=1 // pred_check_branch
      %85 = sbr.rel (0) target = $region29
    $region28: #{tpu_custom_call.1} parent=1 // pred_region
      _
    $region29: #{tpu_custom_call.1} parent=1 // pred_fallthru
      _
    // Predicated region
    $region30: #{tpu_custom_call.1} parent=1 // pred_check
      _
    $region31: #{tpu_custom_call.1} parent=1 // pred_check_branch
      %87 = sbr.rel (0) target = $region33
    $region32: #{tpu_custom_call.1} parent=1 // pred_region
      %89 = vsyncadd [#allocation9], 0
      %s90 = sshll.u32 %s7, 4
      %s91 = int_to_ptr.hbm [resolvable:$true] %s90
      %s92 = sshll.u32 [#allocation10], 4
      %s93 = int_to_ptr.vmem [resolvable:$true] %s92
      %98 = dma.hbm_to_vmem [thread:$0]  %s91, 32, %s93, [#allocation9], 16, 16, 1
    $region33: #{tpu_custom_call.1} parent=1 // pred_fallthru
      _
    // Predicated region
    $region34: #{tpu_custom_call.1} parent=1 // pred_check
      _
    $region35: #{tpu_custom_call.1} parent=1 // pred_check_branch
      %100 = sbr.rel (0) target = $region37
    $region36: #{tpu_custom_call.1} parent=1 // pred_region
      %102 = vsyncadd [#allocation12], 0
      %s103 = sshll.u32 %s8, 4
      %s104 = int_to_ptr.hbm [resolvable:$true] %s103
      %s105 = sshll.u32 [#allocation11], 4
      %s106 = int_to_ptr.vmem [resolvable:$true] %s105
      %111 = dma.hbm_to_vmem [thread:$0]  %s104, 32, %s106, [#allocation12], 16, 16, 1
    $region37: #{tpu_custom_call.1} parent=1 // pred_fallthru
      _
    // Predicated region
    $region38: #{tpu_custom_call.1} parent=1 // pred_check
      _
    $region39: #{tpu_custom_call.1} parent=1 // pred_check_branch
      %113 = sbr.rel (0) target = $region41
    $region40: #{tpu_custom_call.1} parent=1 // pred_region
      %115 = vsyncadd [#allocation12], 0
      %s116 = sshll.u32 %s9, 4
      %s117 = int_to_ptr.hbm [resolvable:$true] %s116
      %s118 = sshll.u32 [#allocation13], 4
      %s119 = int_to_ptr.vmem [resolvable:$true] %s118
      %124 = dma.hbm_to_vmem [thread:$0]  %s117, 32, %s119, [#allocation12], 16, 16, 1
    $region41: #{tpu_custom_call.1} parent=1 // pred_fallthru
      _
    // Predicated region
    $region42: #{tpu_custom_call.1} parent=1 // pred_check
      _
    $region43: #{tpu_custom_call.1} parent=1 // pred_check_branch
      %126 = sbr.rel (0) target = $region45
    $region44: #{tpu_custom_call.1} parent=1 // pred_region
      %128 = vsyncadd [#allocation15], 0
      %s129 = sshll.u32 %s10, 4
      %s130 = int_to_ptr.hbm [resolvable:$true] %s129
      %s131 = sshll.u32 [#allocation14], 4
      %s132 = int_to_ptr.vmem [resolvable:$true] %s131
      %137 = dma.hbm_to_vmem [thread:$0]  %s130, 2048, %s132, [#allocation15], 128, 128, 8
    $region45: #{tpu_custom_call.1} parent=1 // pred_fallthru
      _
    // Predicated region
    $region46: #{tpu_custom_call.1} parent=1 // pred_check
      _
    $region47: #{tpu_custom_call.1} parent=1 // pred_check_branch
      %139 = sbr.rel (0) target = $region49
    $region48: #{tpu_custom_call.1} parent=1 // pred_region
      _
    $region49: #{tpu_custom_call.1} parent=1 // pred_fallthru
      _
    // Predicated region
    $region50: #{tpu_custom_call.1} parent=1 // pred_check
      _
    $region51: #{tpu_custom_call.1} parent=1 // pred_check_branch
      %141 = sbr.rel (0) target = $region53
    $region52: #{tpu_custom_call.1} parent=1 // pred_region
      _
    $region53: #{tpu_custom_call.1} parent=1 // pred_fallthru
      _
    // Predicated region
    $region54: #{tpu_custom_call.1} parent=1 // pred_check
      _
    $region55: #{tpu_custom_call.1} parent=1 // pred_check_branch
      %143 = sbr.rel (0) target = $region57
    $region56: #{tpu_custom_call.1} parent=1 // pred_region
      _
    $region57: #{tpu_custom_call.1} parent=1 // pred_fallthru
      _
    // Predicated region
    $region58: #{tpu_custom_call.1} parent=1 // pred_check
      _
    $region59: #{tpu_custom_call.1} parent=1 // pred_check_branch
      %145 = sbr.rel (0) target = $region61
    $region60: #{tpu_custom_call.1} parent=1 // pred_region
      %147 = vsyncadd [#allocation15], 0
      %s148 = sshll.u32 %s14, 4
      %s149 = int_to_ptr.hbm [resolvable:$true] %s148
      %s150 = sshll.u32 [#allocation16], 4
      %s151 = int_to_ptr.vmem [resolvable:$true] %s150
      %156 = dma.hbm_to_vmem [thread:$0]  %s149, 32, %s151, [#allocation15], 16, 16, 1
    $region61: #{tpu_custom_call.1} parent=1 // pred_fallthru
      _
    // Predicated region
    $region62: #{tpu_custom_call.1} parent=1 // pred_check
      _
    $region63: #{tpu_custom_call.1} parent=1 // pred_check_branch
      %158 = sbr.rel (0) target = $region65
    $region64: #{tpu_custom_call.1} parent=1 // pred_region
      _
    $region65: #{tpu_custom_call.1} parent=1 // pred_fallthru
      _
    // Predicated region
    $region66: #{tpu_custom_call.1} parent=1 // pred_check
      _
    $region67: #{tpu_custom_call.1} parent=1 // pred_check_branch
      %160 = sbr.rel (0) target = $region69
    $region68: #{tpu_custom_call.1} parent=1 // pred_region
      %162 = vsyncadd [#allocation18], 0
      %s163 = sshll.u32 %s16, 4
      %s164 = int_to_ptr.hbm [resolvable:$true] %s163
      %s165 = sshll.u32 [#allocation17], 4
      %s166 = int_to_ptr.vmem [resolvable:$true] %s165
      %171 = dma.hbm_to_vmem [thread:$0]  %s164, 1024, %s166, [#allocation18], 128, 128, 8
    $region69: #{tpu_custom_call.1} parent=1 // pred_fallthru
      _
    // Predicated region
    $region70: #{tpu_custom_call.1} parent=1 // pred_check
      _
    $region71: #{tpu_custom_call.1} parent=1 // pred_check_branch
      %173 = sbr.rel (0) target = $region73
    $region72: #{tpu_custom_call.1} parent=1 // pred_region
      _
    $region73: #{tpu_custom_call.1} parent=1 // pred_fallthru
      _
    // Predicated region
    $region74: #{tpu_custom_call.1} parent=1 // pred_check
      _
    $region75: #{tpu_custom_call.1} parent=1 // pred_check_branch
      %175 = sbr.rel (0) target = $region77
    $region76: #{tpu_custom_call.1} parent=1 // pred_region
      %177 = vsyncadd [#allocation18], 0
      %s178 = sshll.u32 %s18, 4
      %s179 = int_to_ptr.hbm [resolvable:$true] %s178
      %s180 = sshll.u32 [#allocation19], 4
      %s181 = int_to_ptr.vmem [resolvable:$true] %s180
      %186 = dma.hbm_to_vmem [thread:$0]  %s179, 2048, %s181, [#allocation18], 128, 128, 8
    $region77: #{tpu_custom_call.1} parent=1 // pred_fallthru
      _
    // Predicated region
    $region78: #{tpu_custom_call.1} parent=1 // pred_check
      _
    $region79: #{tpu_custom_call.1} parent=1 // pred_check_branch
      %188 = sbr.rel (0) target = $region81
    $region80: #{tpu_custom_call.1} parent=1 // pred_region
      _
    $region81: #{tpu_custom_call.1} parent=1 // pred_fallthru
      _
    // Predicated region
    $region82: #{tpu_custom_call.1} parent=1 // pred_check
      _
    $region83: #{tpu_custom_call.1} parent=1 // pred_check_branch
      %190 = sbr.rel (0) target = $region85
    $region84: #{tpu_custom_call.1} parent=1 // pred_region
      %192 = dma.done [#allocation3], 256
    $region85: #{tpu_custom_call.1} parent=1 // pred_fallthru
      _
    // Predicated region
    $region86: #{tpu_custom_call.1} parent=1 // pred_check
      _
    $region87: #{tpu_custom_call.1} parent=1 // pred_check_branch
      %194 = sbr.rel (0) target = $region89
    $region88: #{tpu_custom_call.1} parent=1 // pred_region
      %196 = dma.done [#allocation6], 256
    $region89: #{tpu_custom_call.1} parent=1 // pred_fallthru
      _
    // Predicated region
    $region90: #{tpu_custom_call.1} parent=1 // pred_check
      _
    $region91: #{tpu_custom_call.1} parent=1 // pred_check_branch
      %198 = sbr.rel (0) target = $region93
    $region92: #{tpu_custom_call.1} parent=1 // pred_region
      %200 = dma.done [#allocation6], 16
    $region93: #{tpu_custom_call.1} parent=1 // pred_fallthru
      _
    // Predicated region
    $region94: #{tpu_custom_call.1} parent=1 // pred_check
      _
    $region95: #{tpu_custom_call.1} parent=1 // pred_check_branch
      %202 = sbr.rel (0) target = $region97
    $region96: #{tpu_custom_call.1} parent=1 // pred_region
      %204 = dma.done [#allocation9], 128
    $region97: #{tpu_custom_call.1} parent=1 // pred_fallthru
      _
    // Predicated region
    $region98: #{tpu_custom_call.1} parent=1 // pred_check
      _
    $region99: #{tpu_custom_call.1} parent=1 // pred_check_branch
      %206 = sbr.rel (0) target = $region101
    $region100: #{tpu_custom_call.1} parent=1 // pred_region
      %208 = dma.done [#allocation9], 32
    $region101: #{tpu_custom_call.1} parent=1 // pred_fallthru
      _
    // Predicated region
    $region102: #{tpu_custom_call.1} parent=1 // pred_check
      _
    $region103: #{tpu_custom_call.1} parent=1 // pred_check_branch
      %210 = sbr.rel (0) target = $region105
    $region104: #{tpu_custom_call.1} parent=1 // pred_region
      %212 = dma.done [#allocation12], 32
    $region105: #{tpu_custom_call.1} parent=1 // pred_fallthru
      _
    // Predicated region
    $region106: #{tpu_custom_call.1} parent=1 // pred_check
      _
    $region107: #{tpu_custom_call.1} parent=1 // pred_check_branch
      %214 = sbr.rel (0) target = $region109
    $region108: #{tpu_custom_call.1} parent=1 // pred_region
      %216 = dma.done [#allocation12], 32
    $region109: #{tpu_custom_call.1} parent=1 // pred_fallthru
      _
    // Predicated region
    $region110: #{tpu_custom_call.1} parent=1 // pred_check
      _
    $region111: #{tpu_custom_call.1} parent=1 // pred_check_branch
      %218 = sbr.rel (0) target = $region113
    $region112: #{tpu_custom_call.1} parent=1 // pred_region
      %220 = dma.done [#allocation15], 2048
    $region113: #{tpu_custom_call.1} parent=1 // pred_fallthru
      _
    // Predicated region
    $region114: #{tpu_custom_call.1} parent=1 // pred_check
      _
    $region115: #{tpu_custom_call.1} parent=1 // pred_check_branch
      %222 = sbr.rel (0) target = $region117
    $region116: #{tpu_custom_call.1} parent=1 // pred_region
      %224 = dma.done [#allocation15], 32
    $region117: #{tpu_custom_call.1} parent=1 // pred_fallthru
      _
    // Predicated region
    $region118: #{tpu_custom_call.1} parent=1 // pred_check
      _
    $region119: #{tpu_custom_call.1} parent=1 // pred_check_branch
      %226 = sbr.rel (0) target = $region121
    $region120: #{tpu_custom_call.1} parent=1 // pred_region
      %228 = dma.done [#allocation18], 1024
    $region121: #{tpu_custom_call.1} parent=1 // pred_fallthru
      _
    // Predicated region
    $region122: #{tpu_custom_call.1} parent=1 // pred_check
      _
    $region123: #{tpu_custom_call.1} parent=1 // pred_check_branch
      %230 = sbr.rel (0) target = $region125
    $region124: #{tpu_custom_call.1} parent=1 // pred_region
      %232 = dma.done [#allocation18], 2048
    $region125: #{tpu_custom_call.1} parent=1 // pred_fallthru
      _
    %v234 = vld [vmem:[#allocation2] sm:$0xff]
    %v235 = vld [vmem:[#allocation2 + $0x8] sm:$0xff]
    %v236 = vld [vmem:[#allocation5] sm:$0xff]
    %v237 = vld [vmem:[#allocation5 + $0x8] sm:$0x7f]
    %v238 = vpack.c.bf16 %v235, %v234
    %v239 = vpack.c.bf16 %v237, %v236
    %v240 = vld [vmem:[#allocation7] sm:$0x1]
    %v242 = vperm.slane %v240, 0
    %vm244 = vcmask 121856
    %v246 = vsel %vm244, %v238, 0
    %vm248 = vcmask 1046528
    %vm249 = vcmask 1047552
    %v250 = vsel %vm248, 4294967295, 65535
    %v251 = vsel %vm249, %v250, 0
    %v253 = vand.u32 %v239, %v251
    %255 = vmatpush.bf16.msra.mxu0 0
    %256 = vmatpush.bf16.msra.mxu0 0
    %257 = vmatpush.bf16.msra.mxu0 0
    %258 = vmatpush.bf16.msra.mxu0 0
    %259 = vmatpush.bf16.msra.mxu0 0
    %260 = vmatpush.bf16.msra.mxu0 0
    %261 = vmatpush.bf16.msra.mxu0 0
    %262 = vmatpush.bf16.msra.mxu0 %v253
    %263 = vmatmul.bf16.gmra.mxu0 %v246
    %v264 = vpop.f32.mrf.mxu0
    %v265 = vadd.f32 %v242, %v264
    %v266 = vpop.f32.mrf.mxu0
    %v267 = vadd.f32 %v242, %v266
    %268 = vdwg.mxu0
    %v269 = vld [vmem:[#allocation8] sm:$0xff]
    %v270 = vadd.f32 %v265, %v269
    %v271 = vadd.f32 %v267, %v269
    %v272 = vld [vmem:[%s4] sm:$0xff]
    %v273 = vld [vmem:[%s4 + $0x8] sm:$0xff]
    %v274 = vld [vmem:[%s4 + $0x10] sm:$0xff]
    %v275 = vld [vmem:[%s4 + $0x18] sm:$0xff]
    %v276 = vld [vmem:[%s4 + $0x20] sm:$0xff]
    %v277 = vld [vmem:[%s4 + $0x28] sm:$0xff]
    %v278 = vld [vmem:[%s4 + $0x30] sm:$0xff]
    %v279 = vld [vmem:[%s4 + $0x38] sm:$0xff]
    %v280 = vld [vmem:[%s4 + $0x40] sm:$0xff]
    %v281 = vld [vmem:[%s4 + $0x48] sm:$0xff]
    %v282 = vld [vmem:[%s4 + $0x50] sm:$0xff]
    %v283 = vld [vmem:[%s4 + $0x58] sm:$0xff]
    %v284 = vld [vmem:[%s4 + $0x60] sm:$0xff]
    %v285 = vld [vmem:[%s4 + $0x68] sm:$0xff]
    %v286 = vld [vmem:[%s4 + $0x70] sm:$0xff]
    %v287 = vld [vmem:[%s4 + $0x78] sm:$0xff]
    %v288 = vpack.c.bf16 %v271, %v270
    %v289 = vpack.c.bf16 %v274, %v272
    %v290 = vpack.c.bf16 %v275, %v273
    %v291 = vpack.c.bf16 %v278, %v276
    %v292 = vpack.c.bf16 %v279, %v277
    %v293 = vpack.c.bf16 %v282, %v280
    %v294 = vpack.c.bf16 %v283, %v281
    %v295 = vpack.c.bf16 %v286, %v284
    %v296 = vpack.c.bf16 %v287, %v285
    %v297 = vld [vmem:[%s5] sm:$0x3]
    %v299 = vperm.slane %v297, 0
    %v300 = vperm.slane %v297, 1
    %vm303 = vcmask 523264
    %v305 = vsel %vm303, %v288, 0
    %307 = vmatpush.bf16.msra.mxu0 0
    %308 = vmatpush.bf16.msra.mxu0 0
    %309 = vmatpush.bf16.msra.mxu0 0
    %310 = vmatpush.bf16.msra.mxu0 0
    %311 = vmatpush.bf16.msra.mxu0 %v295
    %312 = vmatpush.bf16.msra.mxu0 %v293
    %313 = vmatpush.bf16.msra.mxu0 %v291
    %314 = vmatpush.bf16.msra.mxu0 %v289
    %315 = vmatmul.bf16.gmra.mxu0 %v305
    %v316 = vpop.f32.mrf.mxu0
    %v317 = vadd.f32 %v299, %v316
    %v318 = vpop.f32.mrf.mxu0
    %v319 = vadd.f32 %v299, %v318
    %320 = vdwg.mxu0
    %321 = vmatpush.bf16.msra.mxu0 0
    %322 = vmatpush.bf16.msra.mxu0 0
    %323 = vmatpush.bf16.msra.mxu0 0
    %324 = vmatpush.bf16.msra.mxu0 0
    %325 = vmatpush.bf16.msra.mxu0 %v296
    %326 = vmatpush.bf16.msra.mxu0 %v294
    %327 = vmatpush.bf16.msra.mxu0 %v292
    %328 = vmatpush.bf16.msra.mxu0 %v290
    %329 = vmatmul.bf16.gmra.mxu0 %v305
    %v330 = vpop.f32.mrf.mxu0
    %v331 = vadd.f32 %v300, %v330
    %v332 = vpop.f32.mrf.mxu0
    %v333 = vadd.f32 %v300, %v332
    %334 = vdwg.mxu0
    %v335 = vpack.c.bf16 %v317, %v317
    %v336 = vpack.c.bf16 %v319, %v319
    %v338 = vunpack.c.l.b16 %v335
    %v339 = vpack.c.b16 %v338, %v338
    %340 = vrot.lane.b32.xlu0 %v339, 64
    %v341 = vpop.permute.xlu0 %340
    %vm342 = vcmask 130048
    %v344 = vsel %vm342, %v335, 0
    %v347 = vsel %vm342, %v341, 0
    %349 = vmatpush.bf16.xpose.msra.mxu0 0
    %350 = vmatpush.bf16.xpose.msra.mxu0 0
    %351 = vmatpush.bf16.xpose.msra.mxu0 0
    %352 = vmatpush.bf16.xpose.msra.mxu0 0
    %353 = vmatpush.bf16.xpose.msra.mxu0 0
    %354 = vmatpush.bf16.xpose.msra.mxu0 0
    %355 = vmatpush.bf16.xpose.msra.mxu0 0
    %356 = vmatpush.bf16.xpose.msra.mxu0 %v347
    %357 = vmatmul.bf16.gmra.mxu0 %v344
    %v358 = vpop.f32.mrf.mxu0
    %v359 = vadd.f32 0.0, %v358
    %v360 = vpop.f32.mrf.mxu0
    %361 = vdwg.mxu0
    %v363 = vunpack.c.l.b16 %v336
    %v364 = vpack.c.b16 %v363, %v363
    %365 = vrot.lane.b32.xlu0 %v364, 64
    %v366 = vpop.permute.xlu0 %365
    %v368 = vsel %vm342, %v336, 0
    %v371 = vsel %vm342, %v366, 0
    %373 = vmatpush.bf16.xpose.msra.mxu0 0
    %374 = vmatpush.bf16.xpose.msra.mxu0 0
    %375 = vmatpush.bf16.xpose.msra.mxu0 0
    %376 = vmatpush.bf16.xpose.msra.mxu0 0
    %377 = vmatpush.bf16.xpose.msra.mxu0 0
    %378 = vmatpush.bf16.xpose.msra.mxu0 0
    %379 = vmatpush.bf16.xpose.msra.mxu0 0
    %380 = vmatpush.bf16.xpose.msra.mxu0 %v371
    %381 = vmatmul.bf16.gmra.mxu0 %v368
    %v382 = vpop.f32.mrf.mxu0
    %v383 = vadd.f32 0.0, %v382
    %v384 = vpop.f32.mrf.mxu0
    %385 = vdwg.mxu0
    %vm386 = vcmask 64512
    %v387 = vsel %vm386, %v359, -inf
    %388 = vmax.xlane.f32.xlu0 %v387
    %v389 = vpop.xlane.xlu0 %388
    %v390 = vsel %vm386, %v383, -inf
    %391 = vmax.xlane.f32.xlu0 %v390
    %v392 = vpop.xlane.xlu0 %391
    %v393 = vsub.f32 %v359, %v389
    %v394 = vsub.f32 %v383, %v392
    %v395 = vmul.f32 %v393, 1.442695
    %v396 = vpow.pop %v395
    %v397 = vmul.f32 %v394, 1.442695
    %v398 = vpow.pop %v397
    %v399 = vsel %vm386, %v396, 0.0
    %400 = vadd.xlane.f32.xlu0 %v399
    %v401 = vpop.xlane.xlu0 %400
    %v402 = vsel %vm386, %v398, 0.0
    %403 = vadd.xlane.f32.xlu0 %v402
    %v404 = vpop.xlane.xlu0 %403
    %v405 = vrcp.pop %v401
    %v406 = vrcp.pop %v404
    %v407 = vmul.f32 %v396, %v405
    %v408 = vmul.f32 %v398, %v406
    %v409 = vpack.c.bf16 %v407, %v407
    %v410 = vpack.c.bf16 %v408, %v408
    %v411 = vpack.c.bf16 %v331, %v331
    %v412 = vpack.c.bf16 %v333, %v333
    %v414 = vsel %vm386, %v409, 0
    %vm416 = vcmask 1043456
    %v418 = vsel %vm416, %v411, 0
    %420 = vmatpush.bf16.msra.mxu0 0
    %421 = vmatpush.bf16.msra.mxu0 0
    %422 = vmatpush.bf16.msra.mxu0 0
    %423 = vmatpush.bf16.msra.mxu0 0
    %424 = vmatpush.bf16.msra.mxu0 0
    %425 = vmatpush.bf16.msra.mxu0 0
    %426 = vmatpush.bf16.msra.mxu0 0
    %427 = vmatpush.bf16.msra.mxu0 %v418
    %428 = vmatmul.bf16.gmra.mxu0 %v414
    %v429 = vpop.f32.mrf.mxu0
    %v430 = vadd.f32 0.0, %v429
    %v431 = vpop.f32.mrf.mxu0
    %432 = vdwg.mxu0
    %v434 = vsel %vm386, %v410, 0
    %v437 = vsel %vm416, %v412, 0
    %439 = vmatpush.bf16.msra.mxu0 0
    %440 = vmatpush.bf16.msra.mxu0 0
    %441 = vmatpush.bf16.msra.mxu0 0
    %442 = vmatpush.bf16.msra.mxu0 0
    %443 = vmatpush.bf16.msra.mxu0 0
    %444 = vmatpush.bf16.msra.mxu0 0
    %445 = vmatpush.bf16.msra.mxu0 0
    %446 = vmatpush.bf16.msra.mxu0 %v437
    %447 = vmatmul.bf16.gmra.mxu0 %v434
    %v448 = vpop.f32.mrf.mxu0
    %v449 = vadd.f32 0.0, %v448
    %v450 = vpop.f32.mrf.mxu0
    %451 = vdwg.mxu0
    %v452 = vld [vmem:[%s6] sm:$0xff]
    %v453 = vld [vmem:[%s6 + $0x8] sm:$0xff]
    %v454 = vpack.c.bf16 %v449, %v430
    %v455 = vpack.c.bf16 %v453, %v452
    %456 = vrot.lane.b32.xlu0 %v339, 112
    %v457 = vpop.permute.xlu0 %456
    %458 = vrot.lane.b32.xlu0 %v339, 48
    %v459 = vpop.permute.xlu0 %458
    %v461 = vsel %vm342, %v457, 0
    %v464 = vsel %vm342, %v459, 0
    %466 = vmatpush.bf16.xpose.msra.mxu0 0
    %467 = vmatpush.bf16.xpose.msra.mxu0 0
    %468 = vmatpush.bf16.xpose.msra.mxu0 0
    %469 = vmatpush.bf16.xpose.msra.mxu0 0
    %470 = vmatpush.bf16.xpose.msra.mxu0 0
    %471 = vmatpush.bf16.xpose.msra.mxu0 0
    %472 = vmatpush.bf16.xpose.msra.mxu0 0
    %473 = vmatpush.bf16.xpose.msra.mxu0 %v464
    %474 = vmatmul.bf16.gmra.mxu0 %v461
    %v475 = vpop.f32.mrf.mxu0
    %v476 = vadd.f32 0.0, %v475
    %v477 = vpop.f32.mrf.mxu0
    %478 = vdwg.mxu0
    %479 = vrot.lane.b32.xlu0 %v364, 112
    %v480 = vpop.permute.xlu0 %479
    %481 = vrot.lane.b32.xlu0 %v364, 48
    %v482 = vpop.permute.xlu0 %481
    %v484 = vsel %vm342, %v480, 0
    %v487 = vsel %vm342, %v482, 0
    %489 = vmatpush.bf16.xpose.msra.mxu0 0
    %490 = vmatpush.bf16.xpose.msra.mxu0 0
    %491 = vmatpush.bf16.xpose.msra.mxu0 0
    %492 = vmatpush.bf16.xpose.msra.mxu0 0
    %493 = vmatpush.bf16.xpose.msra.mxu0 0
    %494 = vmatpush.bf16.xpose.msra.mxu0 0
    %495 = vmatpush.bf16.xpose.msra.mxu0 0
    %496 = vmatpush.bf16.xpose.msra.mxu0 %v487
    %497 = vmatmul.bf16.gmra.mxu0 %v484
    %v498 = vpop.f32.mrf.mxu0
    %v499 = vadd.f32 0.0, %v498
    %v500 = vpop.f32.mrf.mxu0
    %501 = vdwg.mxu0
    %v502 = vsel %vm386, %v476, -inf
    %503 = vmax.xlane.f32.xlu0 %v502
    %v504 = vpop.xlane.xlu0 %503
    %v505 = vsel %vm386, %v499, -inf
    %506 = vmax.xlane.f32.xlu0 %v505
    %v507 = vpop.xlane.xlu0 %506
    %v508 = vsub.f32 %v476, %v504
    %v509 = vsub.f32 %v499, %v507
    %v510 = vmul.f32 %v508, 1.442695
    %v511 = vpow.pop %v510
    %v512 = vmul.f32 %v509, 1.442695
    %v513 = vpow.pop %v512
    %v514 = vsel %vm386, %v511, 0.0
    %515 = vadd.xlane.f32.xlu0 %v514
    %v516 = vpop.xlane.xlu0 %515
    %v517 = vsel %vm386, %v513, 0.0
    %518 = vadd.xlane.f32.xlu0 %v517
    %v519 = vpop.xlane.xlu0 %518
    %v520 = vrcp.pop %v516
    %v521 = vrcp.pop %v519
    %v522 = vmul.f32 %v511, %v520
    %v523 = vmul.f32 %v513, %v521
    %v524 = vpack.c.bf16 %v522, %v522
    %v525 = vpack.c.bf16 %v523, %v523
    %v527 = vunpack.c.l.b16 %v411
    %v528 = vpack.c.b16 %v527, %v527
    %529 = vrot.lane.b32.xlu0 %v528, 112
    %v530 = vpop.permute.xlu0 %529
    %v532 = vsel %vm386, %v524, 0
    %v535 = vsel %vm416, %v530, 0
    %537 = vmatpush.bf16.msra.mxu0 0
    %538 = vmatpush.bf16.msra.mxu0 0
    %539 = vmatpush.bf16.msra.mxu0 0
    %540 = vmatpush.bf16.msra.mxu0 0
    %541 = vmatpush.bf16.msra.mxu0 0
    %542 = vmatpush.bf16.msra.mxu0 0
    %543 = vmatpush.bf16.msra.mxu0 0
    %544 = vmatpush.bf16.msra.mxu0 %v535
    %545 = vmatmul.bf16.gmra.mxu0 %v532
    %v546 = vpop.f32.mrf.mxu0
    %v547 = vadd.f32 0.0, %v546
    %v548 = vpop.f32.mrf.mxu0
    %549 = vdwg.mxu0
    %v551 = vunpack.c.l.b16 %v412
    %v552 = vpack.c.b16 %v551, %v551
    %553 = vrot.lane.b32.xlu0 %v552, 112
    %v554 = vpop.permute.xlu0 %553
    %v556 = vsel %vm386, %v525, 0
    %v559 = vsel %vm416, %v554, 0
    %561 = vmatpush.bf16.msra.mxu0 0
    %562 = vmatpush.bf16.msra.mxu0 0
    %563 = vmatpush.bf16.msra.mxu0 0
    %564 = vmatpush.bf16.msra.mxu0 0
    %565 = vmatpush.bf16.msra.mxu0 0
    %566 = vmatpush.bf16.msra.mxu0 0
    %567 = vmatpush.bf16.msra.mxu0 0
    %568 = vmatpush.bf16.msra.mxu0 %v559
    %569 = vmatmul.bf16.gmra.mxu0 %v556
    %v570 = vpop.f32.mrf.mxu0
    %v571 = vadd.f32 0.0, %v570
    %v572 = vpop.f32.mrf.mxu0
    %573 = vdwg.mxu0
    %s574 = scalar_lea.vmem %s6, 16
    %v575 = vld [vmem:[%s574] sm:$0xff]
    %v576 = vld [vmem:[%s574 + $0x8] sm:$0xff]
    %v577 = vpack.c.bf16 %v571, %v547
    %v578 = vpack.c.bf16 %v576, %v575
    %v580 = vsel %vm342, %v577, 0
    %582 = vmatpush.bf16.msra.mxu0 0
    %583 = vmatpush.bf16.msra.mxu0 0
    %584 = vmatpush.bf16.msra.mxu0 0
    %585 = vmatpush.bf16.msra.mxu0 0
    %586 = vmatpush.bf16.msra.mxu0 0
    %587 = vmatpush.bf16.msra.mxu0 0
    %588 = vmatpush.bf16.msra.mxu0 0
    %589 = vmatpush.bf16.msra.mxu0 %v578
    %590 = vmatmul.bf16.gmra.mxu0 %v580
    %v591 = vpop.f32.mrf.mxu0
    %v592 = vadd.f32 0.0, %v591
    %v593 = vpop.f32.mrf.mxu0
    %v594 = vadd.f32 0.0, %v593
    %595 = vdwg.mxu0
    %v597 = vsel %vm342, %v454, 0
    %599 = vmatpush.bf16.msra.mxu0 0
    %600 = vmatpush.bf16.msra.mxu0 0
    %601 = vmatpush.bf16.msra.mxu0 0
    %602 = vmatpush.bf16.msra.mxu0 0
    %603 = vmatpush.bf16.msra.mxu0 0
    %604 = vmatpush.bf16.msra.mxu0 0
    %605 = vmatpush.bf16.msra.mxu0 0
    %606 = vmatpush.bf16.msra.mxu0 %v455
    %607 = vmatmul.bf16.gmra.mxu0 %v597
    %v608 = vpop.f32.mrf.mxu0
    %v609 = vadd.f32 %v592, %v608
    %v610 = vpop.f32.mrf.mxu0
    %v611 = vadd.f32 %v594, %v610
    %612 = vdwg.mxu0
    %613 = vrot.lane.b32.xlu0 %v339, 96
    %v614 = vpop.permute.xlu0 %613
    %615 = vrot.lane.b32.xlu0 %v339, 32
    %v616 = vpop.permute.xlu0 %615
    %v618 = vsel %vm342, %v614, 0
    %v621 = vsel %vm342, %v616, 0
    %623 = vmatpush.bf16.xpose.msra.mxu0 0
    %624 = vmatpush.bf16.xpose.msra.mxu0 0
    %625 = vmatpush.bf16.xpose.msra.mxu0 0
    %626 = vmatpush.bf16.xpose.msra.mxu0 0
    %627 = vmatpush.bf16.xpose.msra.mxu0 0
    %628 = vmatpush.bf16.xpose.msra.mxu0 0
    %629 = vmatpush.bf16.xpose.msra.mxu0 0
    %630 = vmatpush.bf16.xpose.msra.mxu0 %v621
    %631 = vmatmul.bf16.gmra.mxu0 %v618
    %v632 = vpop.f32.mrf.mxu0
    %v633 = vadd.f32 0.0, %v632
    %v634 = vpop.f32.mrf.mxu0
    %635 = vdwg.mxu0
    %636 = vrot.lane.b32.xlu0 %v364, 96
    %v637 = vpop.permute.xlu0 %636
    %638 = vrot.lane.b32.xlu0 %v364, 32
    %v639 = vpop.permute.xlu0 %638
    %v641 = vsel %vm342, %v637, 0
    %v644 = vsel %vm342, %v639, 0
    %646 = vmatpush.bf16.xpose.msra.mxu0 0
    %647 = vmatpush.bf16.xpose.msra.mxu0 0
    %648 = vmatpush.bf16.xpose.msra.mxu0 0
    %649 = vmatpush.bf16.xpose.msra.mxu0 0
    %650 = vmatpush.bf16.xpose.msra.mxu0 0
    %651 = vmatpush.bf16.xpose.msra.mxu0 0
    %652 = vmatpush.bf16.xpose.msra.mxu0 0
    %653 = vmatpush.bf16.xpose.msra.mxu0 %v644
    %654 = vmatmul.bf16.gmra.mxu0 %v641
    %v655 = vpop.f32.mrf.mxu0
    %v656 = vadd.f32 0.0, %v655
    %v657 = vpop.f32.mrf.mxu0
    %658 = vdwg.mxu0
    %v659 = vsel %vm386, %v633, -inf
    %660 = vmax.xlane.f32.xlu0 %v659
    %v661 = vpop.xlane.xlu0 %660
    %v662 = vsel %vm386, %v656, -inf
    %663 = vmax.xlane.f32.xlu0 %v662
    %v664 = vpop.xlane.xlu0 %663
    %v665 = vsub.f32 %v633, %v661
    %v666 = vsub.f32 %v656, %v664
    %v667 = vmul.f32 %v665, 1.442695
    %v668 = vpow.pop %v667
    %v669 = vmul.f32 %v666, 1.442695
    %v670 = vpow.pop %v669
    %v671 = vsel %vm386, %v668, 0.0
    %672 = vadd.xlane.f32.xlu0 %v671
    %v673 = vpop.xlane.xlu0 %672
    %v674 = vsel %vm386, %v670, 0.0
    %675 = vadd.xlane.f32.xlu0 %v674
    %v676 = vpop.xlane.xlu0 %675
    %v677 = vrcp.pop %v673
    %v678 = vrcp.pop %v676
    %v679 = vmul.f32 %v668, %v677
    %v680 = vmul.f32 %v670, %v678
    %v681 = vpack.c.bf16 %v679, %v679
    %v682 = vpack.c.bf16 %v680, %v680
    %683 = vrot.lane.b32.xlu0 %v528, 96
    %v684 = vpop.permute.xlu0 %683
    %v686 = vsel %vm386, %v681, 0
    %v689 = vsel %vm416, %v684, 0
    %691 = vmatpush.bf16.msra.mxu0 0
    %692 = vmatpush.bf16.msra.mxu0 0
    %693 = vmatpush.bf16.msra.mxu0 0
    %694 = vmatpush.bf16.msra.mxu0 0
    %695 = vmatpush.bf16.msra.mxu0 0
    %696 = vmatpush.bf16.msra.mxu0 0
    %697 = vmatpush.bf16.msra.mxu0 0
    %698 = vmatpush.bf16.msra.mxu0 %v689
    %699 = vmatmul.bf16.gmra.mxu0 %v686
    %v700 = vpop.f32.mrf.mxu0
    %v701 = vadd.f32 0.0, %v700
    %v702 = vpop.f32.mrf.mxu0
    %703 = vdwg.mxu0
    %704 = vrot.lane.b32.xlu0 %v552, 96
    %v705 = vpop.permute.xlu0 %704
    %v707 = vsel %vm386, %v682, 0
    %v710 = vsel %vm416, %v705, 0
    %712 = vmatpush.bf16.msra.mxu0 0
    %713 = vmatpush.bf16.msra.mxu0 0
    %714 = vmatpush.bf16.msra.mxu0 0
    %715 = vmatpush.bf16.msra.mxu0 0
    %716 = vmatpush.bf16.msra.mxu0 0
    %717 = vmatpush.bf16.msra.mxu0 0
    %718 = vmatpush.bf16.msra.mxu0 0
    %719 = vmatpush.bf16.msra.mxu0 %v710
    %720 = vmatmul.bf16.gmra.mxu0 %v707
    %v721 = vpop.f32.mrf.mxu0
    %v722 = vadd.f32 0.0, %v721
    %v723 = vpop.f32.mrf.mxu0
    %724 = vdwg.mxu0
    %s725 = scalar_lea.vmem %s6, 32
    %v726 = vld [vmem:[%s725] sm:$0xff]
    %v727 = vld [vmem:[%s725 + $0x8] sm:$0xff]
    %v728 = vpack.c.bf16 %v722, %v701
    %v729 = vpack.c.bf16 %v727, %v726
    %v731 = vsel %vm342, %v728, 0
    %733 = vmatpush.bf16.msra.mxu0 0
    %734 = vmatpush.bf16.msra.mxu0 0
    %735 = vmatpush.bf16.msra.mxu0 0
    %736 = vmatpush.bf16.msra.mxu0 0
    %737 = vmatpush.bf16.msra.mxu0 0
    %738 = vmatpush.bf16.msra.mxu0 0
    %739 = vmatpush.bf16.msra.mxu0 0
    %740 = vmatpush.bf16.msra.mxu0 %v729
    %741 = vmatmul.bf16.gmra.mxu0 %v731
    %v742 = vpop.f32.mrf.mxu0
    %v743 = vadd.f32 0.0, %v742
    %v744 = vpop.f32.mrf.mxu0
    %v745 = vadd.f32 0.0, %v744
    %746 = vdwg.mxu0
    %v747 = vadd.f32 %v609, %v743
    %v748 = vadd.f32 %v611, %v745
    %749 = vrot.lane.b32.xlu0 %v339, 80
    %v750 = vpop.permute.xlu0 %749
    %751 = vrot.lane.b32.xlu0 %v339, 16
    %v752 = vpop.permute.xlu0 %751
    %v754 = vsel %vm342, %v750, 0
    %v757 = vsel %vm342, %v752, 0
    %759 = vmatpush.bf16.xpose.msra.mxu0 0
    %760 = vmatpush.bf16.xpose.msra.mxu0 0
    %761 = vmatpush.bf16.xpose.msra.mxu0 0
    %762 = vmatpush.bf16.xpose.msra.mxu0 0
    %763 = vmatpush.bf16.xpose.msra.mxu0 0
    %764 = vmatpush.bf16.xpose.msra.mxu0 0
    %765 = vmatpush.bf16.xpose.msra.mxu0 0
    %766 = vmatpush.bf16.xpose.msra.mxu0 %v757
    %767 = vmatmul.bf16.gmra.mxu0 %v754
    %v768 = vpop.f32.mrf.mxu0
    %v769 = vadd.f32 0.0, %v768
    %v770 = vpop.f32.mrf.mxu0
    %771 = vdwg.mxu0
    %772 = vrot.lane.b32.xlu0 %v364, 80
    %v773 = vpop.permute.xlu0 %772
    %774 = vrot.lane.b32.xlu0 %v364, 16
    %v775 = vpop.permute.xlu0 %774
    %v777 = vsel %vm342, %v773, 0
    %v780 = vsel %vm342, %v775, 0
    %782 = vmatpush.bf16.xpose.msra.mxu0 0
    %783 = vmatpush.bf16.xpose.msra.mxu0 0
    %784 = vmatpush.bf16.xpose.msra.mxu0 0
    %785 = vmatpush.bf16.xpose.msra.mxu0 0
    %786 = vmatpush.bf16.xpose.msra.mxu0 0
    %787 = vmatpush.bf16.xpose.msra.mxu0 0
    %788 = vmatpush.bf16.xpose.msra.mxu0 0
    %789 = vmatpush.bf16.xpose.msra.mxu0 %v780
    %790 = vmatmul.bf16.gmra.mxu0 %v777
    %v791 = vpop.f32.mrf.mxu0
    %v792 = vadd.f32 0.0, %v791
    %v793 = vpop.f32.mrf.mxu0
    %794 = vdwg.mxu0
    %v795 = vsel %vm386, %v769, -inf
    %796 = vmax.xlane.f32.xlu0 %v795
    %v797 = vpop.xlane.xlu0 %796
    %v798 = vsel %vm386, %v792, -inf
    %799 = vmax.xlane.f32.xlu0 %v798
    %v800 = vpop.xlane.xlu0 %799
    %v801 = vsub.f32 %v769, %v797
    %v802 = vsub.f32 %v792, %v800
    %v803 = vmul.f32 %v801, 1.442695
    %v804 = vpow.pop %v803
    %v805 = vmul.f32 %v802, 1.442695
    %v806 = vpow.pop %v805
    %v807 = vsel %vm386, %v804, 0.0
    %808 = vadd.xlane.f32.xlu0 %v807
    %v809 = vpop.xlane.xlu0 %808
    %v810 = vsel %vm386, %v806, 0.0
    %811 = vadd.xlane.f32.xlu0 %v810
    %v812 = vpop.xlane.xlu0 %811
    %v813 = vrcp.pop %v809
    %v814 = vrcp.pop %v812
    %v815 = vmul.f32 %v804, %v813
    %v816 = vmul.f32 %v806, %v814
    %v817 = vpack.c.bf16 %v815, %v815
    %v818 = vpack.c.bf16 %v816, %v816
    %819 = vrot.lane.b32.xlu0 %v528, 80
    %v820 = vpop.permute.xlu0 %819
    %v822 = vsel %vm386, %v817, 0
    %v825 = vsel %vm416, %v820, 0
    %827 = vmatpush.bf16.msra.mxu0 0
    %828 = vmatpush.bf16.msra.mxu0 0
    %829 = vmatpush.bf16.msra.mxu0 0
    %830 = vmatpush.bf16.msra.mxu0 0
    %831 = vmatpush.bf16.msra.mxu0 0
    %832 = vmatpush.bf16.msra.mxu0 0
    %833 = vmatpush.bf16.msra.mxu0 0
    %834 = vmatpush.bf16.msra.mxu0 %v825
    %835 = vmatmul.bf16.gmra.mxu0 %v822
    %v836 = vpop.f32.mrf.mxu0
    %v837 = vadd.f32 0.0, %v836
    %v838 = vpop.f32.mrf.mxu0
    %839 = vdwg.mxu0
    %840 = vrot.lane.b32.xlu0 %v552, 80
    %v841 = vpop.permute.xlu0 %840
    %v843 = vsel %vm386, %v818, 0
    %v846 = vsel %vm416, %v841, 0
    %848 = vmatpush.bf16.msra.mxu0 0
    %849 = vmatpush.bf16.msra.mxu0 0
    %850 = vmatpush.bf16.msra.mxu0 0
    %851 = vmatpush.bf16.msra.mxu0 0
    %852 = vmatpush.bf16.msra.mxu0 0
    %853 = vmatpush.bf16.msra.mxu0 0
    %854 = vmatpush.bf16.msra.mxu0 0
    %855 = vmatpush.bf16.msra.mxu0 %v846
    %856 = vmatmul.bf16.gmra.mxu0 %v843
    %v857 = vpop.f32.mrf.mxu0
    %v858 = vadd.f32 0.0, %v857
    %v859 = vpop.f32.mrf.mxu0
    %860 = vdwg.mxu0
    %s861 = scalar_lea.vmem %s6, 48
    %v862 = vld [vmem:[%s861] sm:$0xff]
    %v863 = vld [vmem:[%s861 + $0x8] sm:$0xff]
    %v864 = vpack.c.bf16 %v858, %v837
    %v865 = vpack.c.bf16 %v863, %v862
    %v867 = vsel %vm342, %v864, 0
    %869 = vmatpush.bf16.msra.mxu0 0
    %870 = vmatpush.bf16.msra.mxu0 0
    %871 = vmatpush.bf16.msra.mxu0 0
    %872 = vmatpush.bf16.msra.mxu0 0
    %873 = vmatpush.bf16.msra.mxu0 0
    %874 = vmatpush.bf16.msra.mxu0 0
    %875 = vmatpush.bf16.msra.mxu0 0
    %876 = vmatpush.bf16.msra.mxu0 %v865
    %877 = vmatmul.bf16.gmra.mxu0 %v867
    %v878 = vpop.f32.mrf.mxu0
    %v879 = vadd.f32 0.0, %v878
    %v880 = vpop.f32.mrf.mxu0
    %v881 = vadd.f32 0.0, %v880
    %882 = vdwg.mxu0
    %v883 = vadd.f32 %v747, %v879
    %v884 = vadd.f32 %v748, %v881
    %v885 = vld [vmem:[#allocation10] sm:$0x1]
    %v887 = vperm.slane %v885, 0
    %v889 = vadd.f32 %v883, %v887
    %v890 = vadd.f32 %v884, %v887
    %v891 = vadd.f32 %v270, %v889
    %v892 = vadd.f32 %v271, %v890
    %v893 = vld [vmem:[#allocation11] sm:$0x1]
    %v894 = vld [vmem:[#allocation13] sm:$0x1]
    %v895 = vsel %vm303, %v891, 0.0
    %896 = vadd.xlane.f32.xlu0 %v895
    %v897 = vpop.xlane.xlu0 %896
    %v898 = vsel %vm303, %v892, 0.0
    %899 = vadd.xlane.f32.xlu0 %v898
    %v900 = vpop.xlane.xlu0 %899
    %v901 = vrcp.pop 64.0
    %v902 = vmul.f32 64.0, %v901
    %v903 = vsub.f32 1.0, %v902
    %v904 = vmul.f32 %v901, %v903
    %v905 = vadd.f32 %v901, %v904
    %vm906 = vweird.f32 %v901
    %v907 = vsel %vm906, %v901, %v905
    %v908 = vmul.f32 %v897, %v907
    %v909 = vmul.f32 %v900, %v907
    %v910 = vsub.f32 %v891, %v908
    %v911 = vsub.f32 %v892, %v909
    %v912 = vmul.f32 %v910, %v910
    %v913 = vmul.f32 %v911, %v911
    %v914 = vsel %vm303, %v912, 0.0
    %915 = vadd.xlane.f32.xlu0 %v914
    %v916 = vpop.xlane.xlu0 %915
    %v917 = vsel %vm303, %v913, 0.0
    %918 = vadd.xlane.f32.xlu0 %v917
    %v919 = vpop.xlane.xlu0 %918
    %v920 = vmul.f32 %v916, %v907
    %v921 = vmul.f32 %v919, %v907
    %v922 = vadd.f32 %v920, 1e-05
    %v923 = vadd.f32 %v921, 1e-05
    %v924 = vrsqrt.pop %v922
    %v925 = vmul.f32 %v924, %v922
    %v926 = vmul.f32 %v925, %v924
    %v927 = vmul.f32 0.5, %v926
    %v928 = vsub.f32 1.5, %v927
    %v929 = vmul.f32 %v924, %v928
    %vm930 = vweird.f32 %v922
    %vm931 = vweird.f32 %v924
    %vm932 = vmor %vm930, %vm931
    %v933 = vsel %vm932, %v924, %v929
    %v934 = vrsqrt.pop %v923
    %v935 = vmul.f32 %v934, %v923
    %v936 = vmul.f32 %v935, %v934
    %v937 = vmul.f32 0.5, %v936
    %v938 = vsub.f32 1.5, %v937
    %v939 = vmul.f32 %v934, %v938
    %vm940 = vweird.f32 %v923
    %vm941 = vweird.f32 %v934
    %vm942 = vmor %vm940, %vm941
    %v943 = vsel %vm942, %v934, %v939
    %v944 = vmul.f32 %v910, %v933
    %v945 = vmul.f32 %v911, %v943
    %v947 = vperm.slane %v893, 0
    %v949 = vmul.f32 %v944, %v947
    %v950 = vmul.f32 %v945, %v947
    %v952 = vperm.slane %v894, 0
    %v954 = vadd.f32 %v949, %v952
    %v955 = vadd.f32 %v950, %v952
    %v956 = vld [vmem:[#allocation14] sm:$0xff]
    %v957 = vld [vmem:[#allocation14 + $0x8] sm:$0xff]
    %v958 = vld [vmem:[#allocation14 + $0x10] sm:$0xff]
    %v959 = vld [vmem:[#allocation14 + $0x18] sm:$0xff]
    %v960 = vld [vmem:[#allocation14 + $0x20] sm:$0xff]
    %v961 = vld [vmem:[#allocation14 + $0x28] sm:$0xff]
    %v962 = vld [vmem:[#allocation14 + $0x30] sm:$0xff]
    %v963 = vld [vmem:[#allocation14 + $0x38] sm:$0xff]
    %v964 = vpack.c.bf16 %v955, %v954
    %v965 = vpack.c.bf16 %v957, %v956
    %v966 = vpack.c.bf16 %v959, %v958
    %v967 = vpack.c.bf16 %v961, %v960
    %v968 = vpack.c.bf16 %v963, %v962
    %v969 = vld [vmem:[%s11] sm:$0x1]
    %v971 = vperm.slane %v969, 0
    %v974 = vsel %vm303, %v964, 0
    %976 = vmatpush.bf16.msra.mxu0 0
    %977 = vmatpush.bf16.msra.mxu0 0
    %978 = vmatpush.bf16.msra.mxu0 0
    %979 = vmatpush.bf16.msra.mxu0 0
    %980 = vmatpush.bf16.msra.mxu0 %v968
    %981 = vmatpush.bf16.msra.mxu0 %v967
    %982 = vmatpush.bf16.msra.mxu0 %v966
    %983 = vmatpush.bf16.msra.mxu0 %v965
    %984 = vmatmul.bf16.gmra.mxu0 %v974
    %v985 = vpop.f32.mrf.mxu0
    %v986 = vadd.f32 %v971, %v985
    %v987 = vpop.f32.mrf.mxu0
    %v988 = vadd.f32 %v971, %v987
    %989 = vdwg.mxu0
    %v990 = vmax.f32 %v986, 0.0
    %v991 = vmax.f32 %v988, 0.0
    %v992 = vld [vmem:[%s12] sm:$0xff]
    %v993 = vld [vmem:[%s12 + $0x8] sm:$0xff]
    %v994 = vld [vmem:[%s12 + $0x10] sm:$0xff]
    %v995 = vld [vmem:[%s12 + $0x18] sm:$0xff]
    %v996 = vld [vmem:[%s12 + $0x20] sm:$0xff]
    %v997 = vld [vmem:[%s12 + $0x28] sm:$0xff]
    %v998 = vld [vmem:[%s12 + $0x30] sm:$0xff]
    %v999 = vld [vmem:[%s12 + $0x38] sm:$0xff]
    %v1000 = vld [vmem:[%s12 + $0x40] sm:$0xff]
    %v1001 = vld [vmem:[%s12 + $0x48] sm:$0xff]
    %v1002 = vld [vmem:[%s12 + $0x50] sm:$0xff]
    %v1003 = vld [vmem:[%s12 + $0x58] sm:$0xff]
    %v1004 = vld [vmem:[%s12 + $0x60] sm:$0xff]
    %v1005 = vld [vmem:[%s12 + $0x68] sm:$0xff]
    %v1006 = vld [vmem:[%s12 + $0x70] sm:$0xff]
    %v1007 = vld [vmem:[%s12 + $0x78] sm:$0xff]
    %v1008 = vpack.c.bf16 %v991, %v990
    %v1009 = vpack.c.bf16 %v993, %v992
    %v1010 = vpack.c.bf16 %v995, %v994
    %v1011 = vpack.c.bf16 %v997, %v996
    %v1012 = vpack.c.bf16 %v999, %v998
    %v1013 = vpack.c.bf16 %v1001, %v1000
    %v1014 = vpack.c.bf16 %v1003, %v1002
    %v1015 = vpack.c.bf16 %v1005, %v1004
    %v1016 = vpack.c.bf16 %v1007, %v1006
    %v1017 = vld [vmem:[%s13] sm:$0x1]
    %v1019 = vperm.slane %v1017, 0
    %1021 = vmatpush.bf16.msra.mxu0 %v1016
    %1022 = vmatpush.bf16.msra.mxu0 %v1015
    %1023 = vmatpush.bf16.msra.mxu0 %v1014
    %1024 = vmatpush.bf16.msra.mxu0 %v1013
    %1025 = vmatpush.bf16.msra.mxu0 %v1012
    %1026 = vmatpush.bf16.msra.mxu0 %v1011
    %1027 = vmatpush.bf16.msra.mxu0 %v1010
    %1028 = vmatpush.bf16.msra.mxu0 %v1009
    %1029 = vmatmul.bf16.gmra.mxu0 %v1008
    %v1030 = vpop.f32.mrf.mxu0
    %v1031 = vadd.f32 %v1019, %v1030
    %v1032 = vpop.f32.mrf.mxu0
    %v1033 = vadd.f32 %v1019, %v1032
    %1034 = vdwg.mxu0
    %v1035 = vadd.f32 %v954, %v1031
    %v1036 = vadd.f32 %v955, %v1033
    %v1037 = vld [vmem:[#allocation16] sm:$0x1]
    %v1038 = vld [vmem:[%s15] sm:$0x1]
    %v1039 = vsel %vm303, %v1035, 0.0
    %1040 = vadd.xlane.f32.xlu0 %v1039
    %v1041 = vpop.xlane.xlu0 %1040
    %v1042 = vsel %vm303, %v1036, 0.0
    %1043 = vadd.xlane.f32.xlu0 %v1042
    %v1044 = vpop.xlane.xlu0 %1043
    %v1045 = vmul.f32 %v1041, %v907
    %v1046 = vmul.f32 %v1044, %v907
    %v1047 = vsub.f32 %v1035, %v1045
    %v1048 = vsub.f32 %v1036, %v1046
    %v1049 = vmul.f32 %v1047, %v1047
    %v1050 = vmul.f32 %v1048, %v1048
    %v1051 = vsel %vm303, %v1049, 0.0
    %1052 = vadd.xlane.f32.xlu0 %v1051
    %v1053 = vpop.xlane.xlu0 %1052
    %v1054 = vsel %vm303, %v1050, 0.0
    %1055 = vadd.xlane.f32.xlu0 %v1054
    %v1056 = vpop.xlane.xlu0 %1055
    %v1057 = vmul.f32 %v1053, %v907
    %v1058 = vmul.f32 %v1056, %v907
    %v1059 = vadd.f32 %v1057, 1e-05
    %v1060 = vadd.f32 %v1058, 1e-05
    %v1061 = vrsqrt.pop %v1059
    %v1062 = vmul.f32 %v1061, %v1059
    %v1063 = vmul.f32 %v1062, %v1061
    %v1064 = vmul.f32 0.5, %v1063
    %v1065 = vsub.f32 1.5, %v1064
    %v1066 = vmul.f32 %v1061, %v1065
    %vm1067 = vweird.f32 %v1059
    %vm1068 = vweird.f32 %v1061
    %vm1069 = vmor %vm1067, %vm1068
    %v1070 = vsel %vm1069, %v1061, %v1066
    %v1071 = vrsqrt.pop %v1060
    %v1072 = vmul.f32 %v1071, %v1060
    %v1073 = vmul.f32 %v1072, %v1071
    %v1074 = vmul.f32 0.5, %v1073
    %v1075 = vsub.f32 1.5, %v1074
    %v1076 = vmul.f32 %v1071, %v1075
    %vm1077 = vweird.f32 %v1060
    %vm1078 = vweird.f32 %v1071
    %vm1079 = vmor %vm1077, %vm1078
    %v1080 = vsel %vm1079, %v1071, %v1076
    %v1081 = vmul.f32 %v1047, %v1070
    %v1082 = vmul.f32 %v1048, %v1080
    %v1084 = vperm.slane %v1037, 0
    %v1086 = vmul.f32 %v1081, %v1084
    %v1087 = vmul.f32 %v1082, %v1084
    %v1089 = vperm.slane %v1038, 0
    %v1091 = vadd.f32 %v1086, %v1089
    %v1092 = vadd.f32 %v1087, %v1089
    %s1093 = scalar_lea.vmem %s4, 128
    %v1094 = vld [vmem:[%s1093] sm:$0xff]
    %v1095 = vld [vmem:[%s1093 + $0x8] sm:$0xff]
    %v1096 = vld [vmem:[%s1093 + $0x10] sm:$0xff]
    %v1097 = vld [vmem:[%s1093 + $0x18] sm:$0xff]
    %v1098 = vld [vmem:[%s1093 + $0x20] sm:$0xff]
    %v1099 = vld [vmem:[%s1093 + $0x28] sm:$0xff]
    %v1100 = vld [vmem:[%s1093 + $0x30] sm:$0xff]
    %v1101 = vld [vmem:[%s1093 + $0x38] sm:$0xff]
    %v1102 = vld [vmem:[%s1093 + $0x40] sm:$0xff]
    %v1103 = vld [vmem:[%s1093 + $0x48] sm:$0xff]
    %v1104 = vld [vmem:[%s1093 + $0x50] sm:$0xff]
    %v1105 = vld [vmem:[%s1093 + $0x58] sm:$0xff]
    %v1106 = vld [vmem:[%s1093 + $0x60] sm:$0xff]
    %v1107 = vld [vmem:[%s1093 + $0x68] sm:$0xff]
    %v1108 = vld [vmem:[%s1093 + $0x70] sm:$0xff]
    %v1109 = vld [vmem:[%s1093 + $0x78] sm:$0xff]
    %v1110 = vpack.c.bf16 %v1092, %v1091
    %v1111 = vpack.c.bf16 %v1096, %v1094
    %v1112 = vpack.c.bf16 %v1097, %v1095
    %v1113 = vpack.c.bf16 %v1100, %v1098
    %v1114 = vpack.c.bf16 %v1101, %v1099
    %v1115 = vpack.c.bf16 %v1104, %v1102
    %v1116 = vpack.c.bf16 %v1105, %v1103
    %v1117 = vpack.c.bf16 %v1108, %v1106
    %v1118 = vpack.c.bf16 %v1109, %v1107
    %s1119 = scalar_lea.vmem %s5, 2
    %v1120 = vld [vmem:[%s1119] sm:$0x3]
    %v1122 = vperm.slane %v1120, 0
    %v1123 = vperm.slane %v1120, 1
    %v1127 = vsel %vm303, %v1110, 0
    %1129 = vmatpush.bf16.msra.mxu0 0
    %1130 = vmatpush.bf16.msra.mxu0 0
    %1131 = vmatpush.bf16.msra.mxu0 0
    %1132 = vmatpush.bf16.msra.mxu0 0
    %1133 = vmatpush.bf16.msra.mxu0 %v1117
    %1134 = vmatpush.bf16.msra.mxu0 %v1115
    %1135 = vmatpush.bf16.msra.mxu0 %v1113
    %1136 = vmatpush.bf16.msra.mxu0 %v1111
    %1137 = vmatmul.bf16.gmra.mxu0 %v1127
    %v1138 = vpop.f32.mrf.mxu0
    %v1139 = vadd.f32 %v1122, %v1138
    %v1140 = vpop.f32.mrf.mxu0
    %v1141 = vadd.f32 %v1122, %v1140
    %1142 = vdwg.mxu0
    %1143 = vmatpush.bf16.msra.mxu0 0
    %1144 = vmatpush.bf16.msra.mxu0 0
    %1145 = vmatpush.bf16.msra.mxu0 0
    %1146 = vmatpush.bf16.msra.mxu0 0
    %1147 = vmatpush.bf16.msra.mxu0 %v1118
    %1148 = vmatpush.bf16.msra.mxu0 %v1116
    %1149 = vmatpush.bf16.msra.mxu0 %v1114
    %1150 = vmatpush.bf16.msra.mxu0 %v1112
    %1151 = vmatmul.bf16.gmra.mxu0 %v1127
    %v1152 = vpop.f32.mrf.mxu0
    %v1153 = vadd.f32 %v1123, %v1152
    %v1154 = vpop.f32.mrf.mxu0
    %v1155 = vadd.f32 %v1123, %v1154
    %1156 = vdwg.mxu0
    %v1157 = vpack.c.bf16 %v1139, %v1139
    %v1158 = vpack.c.bf16 %v1141, %v1141
    %v1160 = vunpack.c.l.b16 %v1157
    %v1161 = vpack.c.b16 %v1160, %v1160
    %1162 = vrot.lane.b32.xlu0 %v1161, 64
    %v1163 = vpop.permute.xlu0 %1162
    %v1165 = vsel %vm342, %v1157, 0
    %v1168 = vsel %vm342, %v1163, 0
    %1170 = vmatpush.bf16.xpose.msra.mxu0 0
    %1171 = vmatpush.bf16.xpose.msra.mxu0 0
    %1172 = vmatpush.bf16.xpose.msra.mxu0 0
    %1173 = vmatpush.bf16.xpose.msra.mxu0 0
    %1174 = vmatpush.bf16.xpose.msra.mxu0 0
    %1175 = vmatpush.bf16.xpose.msra.mxu0 0
    %1176 = vmatpush.bf16.xpose.msra.mxu0 0
    %1177 = vmatpush.bf16.xpose.msra.mxu0 %v1168
    %1178 = vmatmul.bf16.gmra.mxu0 %v1165
    %v1179 = vpop.f32.mrf.mxu0
    %v1180 = vadd.f32 0.0, %v1179
    %v1181 = vpop.f32.mrf.mxu0
    %1182 = vdwg.mxu0
    %v1184 = vunpack.c.l.b16 %v1158
    %v1185 = vpack.c.b16 %v1184, %v1184
    %1186 = vrot.lane.b32.xlu0 %v1185, 64
    %v1187 = vpop.permute.xlu0 %1186
    %v1189 = vsel %vm342, %v1158, 0
    %v1192 = vsel %vm342, %v1187, 0
    %1194 = vmatpush.bf16.xpose.msra.mxu0 0
    %1195 = vmatpush.bf16.xpose.msra.mxu0 0
    %1196 = vmatpush.bf16.xpose.msra.mxu0 0
    %1197 = vmatpush.bf16.xpose.msra.mxu0 0
    %1198 = vmatpush.bf16.xpose.msra.mxu0 0
    %1199 = vmatpush.bf16.xpose.msra.mxu0 0
    %1200 = vmatpush.bf16.xpose.msra.mxu0 0
    %1201 = vmatpush.bf16.xpose.msra.mxu0 %v1192
    %1202 = vmatmul.bf16.gmra.mxu0 %v1189
    %v1203 = vpop.f32.mrf.mxu0
    %v1204 = vadd.f32 0.0, %v1203
    %v1205 = vpop.f32.mrf.mxu0
    %1206 = vdwg.mxu0
    %v1207 = vsel %vm386, %v1180, -inf
    %1208 = vmax.xlane.f32.xlu0 %v1207
    %v1209 = vpop.xlane.xlu0 %1208
    %v1210 = vsel %vm386, %v1204, -inf
    %1211 = vmax.xlane.f32.xlu0 %v1210
    %v1212 = vpop.xlane.xlu0 %1211
    %v1213 = vsub.f32 %v1180, %v1209
    %v1214 = vsub.f32 %v1204, %v1212
    %v1215 = vmul.f32 %v1213, 1.442695
    %v1216 = vpow.pop %v1215
    %v1217 = vmul.f32 %v1214, 1.442695
    %v1218 = vpow.pop %v1217
    %v1219 = vsel %vm386, %v1216, 0.0
    %1220 = vadd.xlane.f32.xlu0 %v1219
    %v1221 = vpop.xlane.xlu0 %1220
    %v1222 = vsel %vm386, %v1218, 0.0
    %1223 = vadd.xlane.f32.xlu0 %v1222
    %v1224 = vpop.xlane.xlu0 %1223
    %v1225 = vrcp.pop %v1221
    %v1226 = vrcp.pop %v1224
    %v1227 = vmul.f32 %v1216, %v1225
    %v1228 = vmul.f32 %v1218, %v1226
    %v1229 = vpack.c.bf16 %v1227, %v1227
    %v1230 = vpack.c.bf16 %v1228, %v1228
    %v1231 = vpack.c.bf16 %v1153, %v1153
    %v1232 = vpack.c.bf16 %v1155, %v1155
    %v1234 = vsel %vm386, %v1229, 0
    %v1237 = vsel %vm416, %v1231, 0
    %1239 = vmatpush.bf16.msra.mxu0 0
    %1240 = vmatpush.bf16.msra.mxu0 0
    %1241 = vmatpush.bf16.msra.mxu0 0
    %1242 = vmatpush.bf16.msra.mxu0 0
    %1243 = vmatpush.bf16.msra.mxu0 0
    %1244 = vmatpush.bf16.msra.mxu0 0
    %1245 = vmatpush.bf16.msra.mxu0 0
    %1246 = vmatpush.bf16.msra.mxu0 %v1237
    %1247 = vmatmul.bf16.gmra.mxu0 %v1234
    %v1248 = vpop.f32.mrf.mxu0
    %v1249 = vadd.f32 0.0, %v1248
    %v1250 = vpop.f32.mrf.mxu0
    %1251 = vdwg.mxu0
    %v1253 = vsel %vm386, %v1230, 0
    %v1256 = vsel %vm416, %v1232, 0
    %1258 = vmatpush.bf16.msra.mxu0 0
    %1259 = vmatpush.bf16.msra.mxu0 0
    %1260 = vmatpush.bf16.msra.mxu0 0
    %1261 = vmatpush.bf16.msra.mxu0 0
    %1262 = vmatpush.bf16.msra.mxu0 0
    %1263 = vmatpush.bf16.msra.mxu0 0
    %1264 = vmatpush.bf16.msra.mxu0 0
    %1265 = vmatpush.bf16.msra.mxu0 %v1256
    %1266 = vmatmul.bf16.gmra.mxu0 %v1253
    %v1267 = vpop.f32.mrf.mxu0
    %v1268 = vadd.f32 0.0, %v1267
    %v1269 = vpop.f32.mrf.mxu0
    %1270 = vdwg.mxu0
    %s1271 = scalar_lea.vmem %s6, 64
    %v1272 = vld [vmem:[%s1271] sm:$0xff]
    %v1273 = vld [vmem:[%s1271 + $0x8] sm:$0xff]
    %v1274 = vpack.c.bf16 %v1268, %v1249
    %v1275 = vpack.c.bf16 %v1273, %v1272
    %1276 = vrot.lane.b32.xlu0 %v1161, 112
    %v1277 = vpop.permute.xlu0 %1276
    %1278 = vrot.lane.b32.xlu0 %v1161, 48
    %v1279 = vpop.permute.xlu0 %1278
    %v1281 = vsel %vm342, %v1277, 0
    %v1284 = vsel %vm342, %v1279, 0
    %1286 = vmatpush.bf16.xpose.msra.mxu0 0
    %1287 = vmatpush.bf16.xpose.msra.mxu0 0
    %1288 = vmatpush.bf16.xpose.msra.mxu0 0
    %1289 = vmatpush.bf16.xpose.msra.mxu0 0
    %1290 = vmatpush.bf16.xpose.msra.mxu0 0
    %1291 = vmatpush.bf16.xpose.msra.mxu0 0
    %1292 = vmatpush.bf16.xpose.msra.mxu0 0
    %1293 = vmatpush.bf16.xpose.msra.mxu0 %v1284
    %1294 = vmatmul.bf16.gmra.mxu0 %v1281
    %v1295 = vpop.f32.mrf.mxu0
    %v1296 = vadd.f32 0.0, %v1295
    %v1297 = vpop.f32.mrf.mxu0
    %1298 = vdwg.mxu0
    %1299 = vrot.lane.b32.xlu0 %v1185, 112
    %v1300 = vpop.permute.xlu0 %1299
    %1301 = vrot.lane.b32.xlu0 %v1185, 48
    %v1302 = vpop.permute.xlu0 %1301
    %v1304 = vsel %vm342, %v1300, 0
    %v1307 = vsel %vm342, %v1302, 0
    %1309 = vmatpush.bf16.xpose.msra.mxu0 0
    %1310 = vmatpush.bf16.xpose.msra.mxu0 0
    %1311 = vmatpush.bf16.xpose.msra.mxu0 0
    %1312 = vmatpush.bf16.xpose.msra.mxu0 0
    %1313 = vmatpush.bf16.xpose.msra.mxu0 0
    %1314 = vmatpush.bf16.xpose.msra.mxu0 0
    %1315 = vmatpush.bf16.xpose.msra.mxu0 0
    %1316 = vmatpush.bf16.xpose.msra.mxu0 %v1307
    %1317 = vmatmul.bf16.gmra.mxu0 %v1304
    %v1318 = vpop.f32.mrf.mxu0
    %v1319 = vadd.f32 0.0, %v1318
    %v1320 = vpop.f32.mrf.mxu0
    %1321 = vdwg.mxu0
    %v1322 = vsel %vm386, %v1296, -inf
    %1323 = vmax.xlane.f32.xlu0 %v1322
    %v1324 = vpop.xlane.xlu0 %1323
    %v1325 = vsel %vm386, %v1319, -inf
    %1326 = vmax.xlane.f32.xlu0 %v1325
    %v1327 = vpop.xlane.xlu0 %1326
    %v1328 = vsub.f32 %v1296, %v1324
    %v1329 = vsub.f32 %v1319, %v1327
    %v1330 = vmul.f32 %v1328, 1.442695
    %v1331 = vpow.pop %v1330
    %v1332 = vmul.f32 %v1329, 1.442695
    %v1333 = vpow.pop %v1332
    %v1334 = vsel %vm386, %v1331, 0.0
    %1335 = vadd.xlane.f32.xlu0 %v1334
    %v1336 = vpop.xlane.xlu0 %1335
    %v1337 = vsel %vm386, %v1333, 0.0
    %1338 = vadd.xlane.f32.xlu0 %v1337
    %v1339 = vpop.xlane.xlu0 %1338
    %v1340 = vrcp.pop %v1336
    %v1341 = vrcp.pop %v1339
    %v1342 = vmul.f32 %v1331, %v1340
    %v1343 = vmul.f32 %v1333, %v1341
    %v1344 = vpack.c.bf16 %v1342, %v1342
    %v1345 = vpack.c.bf16 %v1343, %v1343
    %v1347 = vunpack.c.l.b16 %v1231
    %v1348 = vpack.c.b16 %v1347, %v1347
    %1349 = vrot.lane.b32.xlu0 %v1348, 112
    %v1350 = vpop.permute.xlu0 %1349
    %v1352 = vsel %vm386, %v1344, 0
    %v1355 = vsel %vm416, %v1350, 0
    %1357 = vmatpush.bf16.msra.mxu0 0
    %1358 = vmatpush.bf16.msra.mxu0 0
    %1359 = vmatpush.bf16.msra.mxu0 0
    %1360 = vmatpush.bf16.msra.mxu0 0
    %1361 = vmatpush.bf16.msra.mxu0 0
    %1362 = vmatpush.bf16.msra.mxu0 0
    %1363 = vmatpush.bf16.msra.mxu0 0
    %1364 = vmatpush.bf16.msra.mxu0 %v1355
    %1365 = vmatmul.bf16.gmra.mxu0 %v1352
    %v1366 = vpop.f32.mrf.mxu0
    %v1367 = vadd.f32 0.0, %v1366
    %v1368 = vpop.f32.mrf.mxu0
    %1369 = vdwg.mxu0
    %v1371 = vunpack.c.l.b16 %v1232
    %v1372 = vpack.c.b16 %v1371, %v1371
    %1373 = vrot.lane.b32.xlu0 %v1372, 112
    %v1374 = vpop.permute.xlu0 %1373
    %v1376 = vsel %vm386, %v1345, 0
    %v1379 = vsel %vm416, %v1374, 0
    %1381 = vmatpush.bf16.msra.mxu0 0
    %1382 = vmatpush.bf16.msra.mxu0 0
    %1383 = vmatpush.bf16.msra.mxu0 0
    %1384 = vmatpush.bf16.msra.mxu0 0
    %1385 = vmatpush.bf16.msra.mxu0 0
    %1386 = vmatpush.bf16.msra.mxu0 0
    %1387 = vmatpush.bf16.msra.mxu0 0
    %1388 = vmatpush.bf16.msra.mxu0 %v1379
    %1389 = vmatmul.bf16.gmra.mxu0 %v1376
    %v1390 = vpop.f32.mrf.mxu0
    %v1391 = vadd.f32 0.0, %v1390
    %v1392 = vpop.f32.mrf.mxu0
    %1393 = vdwg.mxu0
    %s1394 = scalar_lea.vmem %s6, 80
    %v1395 = vld [vmem:[%s1394] sm:$0xff]
    %v1396 = vld [vmem:[%s1394 + $0x8] sm:$0xff]
    %v1397 = vpack.c.bf16 %v1391, %v1367
    %v1398 = vpack.c.bf16 %v1396, %v1395
    %v1400 = vsel %vm342, %v1397, 0
    %1402 = vmatpush.bf16.msra.mxu0 0
    %1403 = vmatpush.bf16.msra.mxu0 0
    %1404 = vmatpush.bf16.msra.mxu0 0
    %1405 = vmatpush.bf16.msra.mxu0 0
    %1406 = vmatpush.bf16.msra.mxu0 0
    %1407 = vmatpush.bf16.msra.mxu0 0
    %1408 = vmatpush.bf16.msra.mxu0 0
    %1409 = vmatpush.bf16.msra.mxu0 %v1398
    %1410 = vmatmul.bf16.gmra.mxu0 %v1400
    %v1411 = vpop.f32.mrf.mxu0
    %v1412 = vadd.f32 0.0, %v1411
    %v1413 = vpop.f32.mrf.mxu0
    %v1414 = vadd.f32 0.0, %v1413
    %1415 = vdwg.mxu0
    %v1417 = vsel %vm342, %v1274, 0
    %1419 = vmatpush.bf16.msra.mxu0 0
    %1420 = vmatpush.bf16.msra.mxu0 0
    %1421 = vmatpush.bf16.msra.mxu0 0
    %1422 = vmatpush.bf16.msra.mxu0 0
    %1423 = vmatpush.bf16.msra.mxu0 0
    %1424 = vmatpush.bf16.msra.mxu0 0
    %1425 = vmatpush.bf16.msra.mxu0 0
    %1426 = vmatpush.bf16.msra.mxu0 %v1275
    %1427 = vmatmul.bf16.gmra.mxu0 %v1417
    %v1428 = vpop.f32.mrf.mxu0
    %v1429 = vadd.f32 %v1412, %v1428
    %v1430 = vpop.f32.mrf.mxu0
    %v1431 = vadd.f32 %v1414, %v1430
    %1432 = vdwg.mxu0
    %1433 = vrot.lane.b32.xlu0 %v1161, 96
    %v1434 = vpop.permute.xlu0 %1433
    %1435 = vrot.lane.b32.xlu0 %v1161, 32
    %v1436 = vpop.permute.xlu0 %1435
    %v1438 = vsel %vm342, %v1434, 0
    %v1441 = vsel %vm342, %v1436, 0
    %1443 = vmatpush.bf16.xpose.msra.mxu0 0
    %1444 = vmatpush.bf16.xpose.msra.mxu0 0
    %1445 = vmatpush.bf16.xpose.msra.mxu0 0
    %1446 = vmatpush.bf16.xpose.msra.mxu0 0
    %1447 = vmatpush.bf16.xpose.msra.mxu0 0
    %1448 = vmatpush.bf16.xpose.msra.mxu0 0
    %1449 = vmatpush.bf16.xpose.msra.mxu0 0
    %1450 = vmatpush.bf16.xpose.msra.mxu0 %v1441
    %1451 = vmatmul.bf16.gmra.mxu0 %v1438
    %v1452 = vpop.f32.mrf.mxu0
    %v1453 = vadd.f32 0.0, %v1452
    %v1454 = vpop.f32.mrf.mxu0
    %1455 = vdwg.mxu0
    %1456 = vrot.lane.b32.xlu0 %v1185, 96
    %v1457 = vpop.permute.xlu0 %1456
    %1458 = vrot.lane.b32.xlu0 %v1185, 32
    %v1459 = vpop.permute.xlu0 %1458
    %v1461 = vsel %vm342, %v1457, 0
    %v1464 = vsel %vm342, %v1459, 0
    %1466 = vmatpush.bf16.xpose.msra.mxu0 0
    %1467 = vmatpush.bf16.xpose.msra.mxu0 0
    %1468 = vmatpush.bf16.xpose.msra.mxu0 0
    %1469 = vmatpush.bf16.xpose.msra.mxu0 0
    %1470 = vmatpush.bf16.xpose.msra.mxu0 0
    %1471 = vmatpush.bf16.xpose.msra.mxu0 0
    %1472 = vmatpush.bf16.xpose.msra.mxu0 0
    %1473 = vmatpush.bf16.xpose.msra.mxu0 %v1464
    %1474 = vmatmul.bf16.gmra.mxu0 %v1461
    %v1475 = vpop.f32.mrf.mxu0
    %v1476 = vadd.f32 0.0, %v1475
    %v1477 = vpop.f32.mrf.mxu0
    %1478 = vdwg.mxu0
    %v1479 = vsel %vm386, %v1453, -inf
    %1480 = vmax.xlane.f32.xlu0 %v1479
    %v1481 = vpop.xlane.xlu0 %1480
    %v1482 = vsel %vm386, %v1476, -inf
    %1483 = vmax.xlane.f32.xlu0 %v1482
    %v1484 = vpop.xlane.xlu0 %1483
    %v1485 = vsub.f32 %v1453, %v1481
    %v1486 = vsub.f32 %v1476, %v1484
    %v1487 = vmul.f32 %v1485, 1.442695
    %v1488 = vpow.pop %v1487
    %v1489 = vmul.f32 %v1486, 1.442695
    %v1490 = vpow.pop %v1489
    %v1491 = vsel %vm386, %v1488, 0.0
    %1492 = vadd.xlane.f32.xlu0 %v1491
    %v1493 = vpop.xlane.xlu0 %1492
    %v1494 = vsel %vm386, %v1490, 0.0
    %1495 = vadd.xlane.f32.xlu0 %v1494
    %v1496 = vpop.xlane.xlu0 %1495
    %v1497 = vrcp.pop %v1493
    %v1498 = vrcp.pop %v1496
    %v1499 = vmul.f32 %v1488, %v1497
    %v1500 = vmul.f32 %v1490, %v1498
    %v1501 = vpack.c.bf16 %v1499, %v1499
    %v1502 = vpack.c.bf16 %v1500, %v1500
    %1503 = vrot.lane.b32.xlu0 %v1348, 96
    %v1504 = vpop.permute.xlu0 %1503
    %v1506 = vsel %vm386, %v1501, 0
    %v1509 = vsel %vm416, %v1504, 0
    %1511 = vmatpush.bf16.msra.mxu0 0
    %1512 = vmatpush.bf16.msra.mxu0 0
    %1513 = vmatpush.bf16.msra.mxu0 0
    %1514 = vmatpush.bf16.msra.mxu0 0
    %1515 = vmatpush.bf16.msra.mxu0 0
    %1516 = vmatpush.bf16.msra.mxu0 0
    %1517 = vmatpush.bf16.msra.mxu0 0
    %1518 = vmatpush.bf16.msra.mxu0 %v1509
    %1519 = vmatmul.bf16.gmra.mxu0 %v1506
    %v1520 = vpop.f32.mrf.mxu0
    %v1521 = vadd.f32 0.0, %v1520
    %v1522 = vpop.f32.mrf.mxu0
    %1523 = vdwg.mxu0
    %1524 = vrot.lane.b32.xlu0 %v1372, 96
    %v1525 = vpop.permute.xlu0 %1524
    %v1527 = vsel %vm386, %v1502, 0
    %v1530 = vsel %vm416, %v1525, 0
    %1532 = vmatpush.bf16.msra.mxu0 0
    %1533 = vmatpush.bf16.msra.mxu0 0
    %1534 = vmatpush.bf16.msra.mxu0 0
    %1535 = vmatpush.bf16.msra.mxu0 0
    %1536 = vmatpush.bf16.msra.mxu0 0
    %1537 = vmatpush.bf16.msra.mxu0 0
    %1538 = vmatpush.bf16.msra.mxu0 0
    %1539 = vmatpush.bf16.msra.mxu0 %v1530
    %1540 = vmatmul.bf16.gmra.mxu0 %v1527
    %v1541 = vpop.f32.mrf.mxu0
    %v1542 = vadd.f32 0.0, %v1541
    %v1543 = vpop.f32.mrf.mxu0
    %1544 = vdwg.mxu0
    %s1545 = scalar_lea.vmem %s6, 96
    %v1546 = vld [vmem:[%s1545] sm:$0xff]
    %v1547 = vld [vmem:[%s1545 + $0x8] sm:$0xff]
    %v1548 = vpack.c.bf16 %v1542, %v1521
    %v1549 = vpack.c.bf16 %v1547, %v1546
    %v1551 = vsel %vm342, %v1548, 0
    %1553 = vmatpush.bf16.msra.mxu0 0
    %1554 = vmatpush.bf16.msra.mxu0 0
    %1555 = vmatpush.bf16.msra.mxu0 0
    %1556 = vmatpush.bf16.msra.mxu0 0
    %1557 = vmatpush.bf16.msra.mxu0 0
    %1558 = vmatpush.bf16.msra.mxu0 0
    %1559 = vmatpush.bf16.msra.mxu0 0
    %1560 = vmatpush.bf16.msra.mxu0 %v1549
    %1561 = vmatmul.bf16.gmra.mxu0 %v1551
    %v1562 = vpop.f32.mrf.mxu0
    %v1563 = vadd.f32 0.0, %v1562
    %v1564 = vpop.f32.mrf.mxu0
    %v1565 = vadd.f32 0.0, %v1564
    %1566 = vdwg.mxu0
    %v1567 = vadd.f32 %v1429, %v1563
    %v1568 = vadd.f32 %v1431, %v1565
    %1569 = vrot.lane.b32.xlu0 %v1161, 80
    %v1570 = vpop.permute.xlu0 %1569
    %1571 = vrot.lane.b32.xlu0 %v1161, 16
    %v1572 = vpop.permute.xlu0 %1571
    %v1574 = vsel %vm342, %v1570, 0
    %v1577 = vsel %vm342, %v1572, 0
    %1579 = vmatpush.bf16.xpose.msra.mxu0 0
    %1580 = vmatpush.bf16.xpose.msra.mxu0 0
    %1581 = vmatpush.bf16.xpose.msra.mxu0 0
    %1582 = vmatpush.bf16.xpose.msra.mxu0 0
    %1583 = vmatpush.bf16.xpose.msra.mxu0 0
    %1584 = vmatpush.bf16.xpose.msra.mxu0 0
    %1585 = vmatpush.bf16.xpose.msra.mxu0 0
    %1586 = vmatpush.bf16.xpose.msra.mxu0 %v1577
    %1587 = vmatmul.bf16.gmra.mxu0 %v1574
    %v1588 = vpop.f32.mrf.mxu0
    %v1589 = vadd.f32 0.0, %v1588
    %v1590 = vpop.f32.mrf.mxu0
    %1591 = vdwg.mxu0
    %1592 = vrot.lane.b32.xlu0 %v1185, 80
    %v1593 = vpop.permute.xlu0 %1592
    %1594 = vrot.lane.b32.xlu0 %v1185, 16
    %v1595 = vpop.permute.xlu0 %1594
    %v1597 = vsel %vm342, %v1593, 0
    %v1600 = vsel %vm342, %v1595, 0
    %1602 = vmatpush.bf16.xpose.msra.mxu0 0
    %1603 = vmatpush.bf16.xpose.msra.mxu0 0
    %1604 = vmatpush.bf16.xpose.msra.mxu0 0
    %1605 = vmatpush.bf16.xpose.msra.mxu0 0
    %1606 = vmatpush.bf16.xpose.msra.mxu0 0
    %1607 = vmatpush.bf16.xpose.msra.mxu0 0
    %1608 = vmatpush.bf16.xpose.msra.mxu0 0
    %1609 = vmatpush.bf16.xpose.msra.mxu0 %v1600
    %1610 = vmatmul.bf16.gmra.mxu0 %v1597
    %v1611 = vpop.f32.mrf.mxu0
    %v1612 = vadd.f32 0.0, %v1611
    %v1613 = vpop.f32.mrf.mxu0
    %1614 = vdwg.mxu0
    %v1615 = vsel %vm386, %v1589, -inf
    %1616 = vmax.xlane.f32.xlu0 %v1615
    %v1617 = vpop.xlane.xlu0 %1616
    %v1618 = vsel %vm386, %v1612, -inf
    %1619 = vmax.xlane.f32.xlu0 %v1618
    %v1620 = vpop.xlane.xlu0 %1619
    %v1621 = vsub.f32 %v1589, %v1617
    %v1622 = vsub.f32 %v1612, %v1620
    %v1623 = vmul.f32 %v1621, 1.442695
    %v1624 = vpow.pop %v1623
    %v1625 = vmul.f32 %v1622, 1.442695
    %v1626 = vpow.pop %v1625
    %v1627 = vsel %vm386, %v1624, 0.0
    %1628 = vadd.xlane.f32.xlu0 %v1627
    %v1629 = vpop.xlane.xlu0 %1628
    %v1630 = vsel %vm386, %v1626, 0.0
    %1631 = vadd.xlane.f32.xlu0 %v1630
    %v1632 = vpop.xlane.xlu0 %1631
    %v1633 = vrcp.pop %v1629
    %v1634 = vrcp.pop %v1632
    %v1635 = vmul.f32 %v1624, %v1633
    %v1636 = vmul.f32 %v1626, %v1634
    %v1637 = vpack.c.bf16 %v1635, %v1635
    %v1638 = vpack.c.bf16 %v1636, %v1636
    %1639 = vrot.lane.b32.xlu0 %v1348, 80
    %v1640 = vpop.permute.xlu0 %1639
    %v1642 = vsel %vm386, %v1637, 0
    %v1645 = vsel %vm416, %v1640, 0
    %1647 = vmatpush.bf16.msra.mxu0 0
    %1648 = vmatpush.bf16.msra.mxu0 0
    %1649 = vmatpush.bf16.msra.mxu0 0
    %1650 = vmatpush.bf16.msra.mxu0 0
    %1651 = vmatpush.bf16.msra.mxu0 0
    %1652 = vmatpush.bf16.msra.mxu0 0
    %1653 = vmatpush.bf16.msra.mxu0 0
    %1654 = vmatpush.bf16.msra.mxu0 %v1645
    %1655 = vmatmul.bf16.gmra.mxu0 %v1642
    %v1656 = vpop.f32.mrf.mxu0
    %v1657 = vadd.f32 0.0, %v1656
    %v1658 = vpop.f32.mrf.mxu0
    %1659 = vdwg.mxu0
    %1660 = vrot.lane.b32.xlu0 %v1372, 80
    %v1661 = vpop.permute.xlu0 %1660
    %v1663 = vsel %vm386, %v1638, 0
    %v1666 = vsel %vm416, %v1661, 0
    %1668 = vmatpush.bf16.msra.mxu0 0
    %1669 = vmatpush.bf16.msra.mxu0 0
    %1670 = vmatpush.bf16.msra.mxu0 0
    %1671 = vmatpush.bf16.msra.mxu0 0
    %1672 = vmatpush.bf16.msra.mxu0 0
    %1673 = vmatpush.bf16.msra.mxu0 0
    %1674 = vmatpush.bf16.msra.mxu0 0
    %1675 = vmatpush.bf16.msra.mxu0 %v1666
    %1676 = vmatmul.bf16.gmra.mxu0 %v1663
    %v1677 = vpop.f32.mrf.mxu0
    %v1678 = vadd.f32 0.0, %v1677
    %v1679 = vpop.f32.mrf.mxu0
    %1680 = vdwg.mxu0
    %s1681 = scalar_lea.vmem %s6, 112
    %v1682 = vld [vmem:[%s1681] sm:$0xff]
    %v1683 = vld [vmem:[%s1681 + $0x8] sm:$0xff]
    %v1684 = vpack.c.bf16 %v1678, %v1657
    %v1685 = vpack.c.bf16 %v1683, %v1682
    %v1687 = vsel %vm342, %v1684, 0
    %1689 = vmatpush.bf16.msra.mxu0 0
    %1690 = vmatpush.bf16.msra.mxu0 0
    %1691 = vmatpush.bf16.msra.mxu0 0
    %1692 = vmatpush.bf16.msra.mxu0 0
    %1693 = vmatpush.bf16.msra.mxu0 0
    %1694 = vmatpush.bf16.msra.mxu0 0
    %1695 = vmatpush.bf16.msra.mxu0 0
    %1696 = vmatpush.bf16.msra.mxu0 %v1685
    %1697 = vmatmul.bf16.gmra.mxu0 %v1687
    %v1698 = vpop.f32.mrf.mxu0
    %v1699 = vadd.f32 0.0, %v1698
    %v1700 = vpop.f32.mrf.mxu0
    %v1701 = vadd.f32 0.0, %v1700
    %1702 = vdwg.mxu0
    %v1703 = vadd.f32 %v1567, %v1699
    %v1704 = vadd.f32 %v1568, %v1701
    %s1705 = scalar_lea.vmem [#allocation10], 1
    %v1706 = vld [vmem:[%s1705] sm:$0x1]
    %v1708 = vperm.slane %v1706, 0
    %v1710 = vadd.f32 %v1703, %v1708
    %v1711 = vadd.f32 %v1704, %v1708
    %v1712 = vadd.f32 %v1091, %v1710
    %v1713 = vadd.f32 %v1092, %v1711
    %s1714 = scalar_lea.vmem [#allocation11], 1
    %v1715 = vld [vmem:[%s1714] sm:$0x1]
    %s1716 = scalar_lea.vmem [#allocation13], 1
    %v1717 = vld [vmem:[%s1716] sm:$0x1]
    %v1718 = vsel %vm303, %v1712, 0.0
    %1719 = vadd.xlane.f32.xlu0 %v1718
    %v1720 = vpop.xlane.xlu0 %1719
    %v1721 = vsel %vm303, %v1713, 0.0
    %1722 = vadd.xlane.f32.xlu0 %v1721
    %v1723 = vpop.xlane.xlu0 %1722
    %v1724 = vmul.f32 %v1720, %v907
    %v1725 = vmul.f32 %v1723, %v907
    %v1726 = vsub.f32 %v1712, %v1724
    %v1727 = vsub.f32 %v1713, %v1725
    %v1728 = vmul.f32 %v1726, %v1726
    %v1729 = vmul.f32 %v1727, %v1727
    %v1730 = vsel %vm303, %v1728, 0.0
    %1731 = vadd.xlane.f32.xlu0 %v1730
    %v1732 = vpop.xlane.xlu0 %1731
    %v1733 = vsel %vm303, %v1729, 0.0
    %1734 = vadd.xlane.f32.xlu0 %v1733
    %v1735 = vpop.xlane.xlu0 %1734
    %v1736 = vmul.f32 %v1732, %v907
    %v1737 = vmul.f32 %v1735, %v907
    %v1738 = vadd.f32 %v1736, 1e-05
    %v1739 = vadd.f32 %v1737, 1e-05
    %v1740 = vrsqrt.pop %v1738
    %v1741 = vmul.f32 %v1740, %v1738
    %v1742 = vmul.f32 %v1741, %v1740
    %v1743 = vmul.f32 0.5, %v1742
    %v1744 = vsub.f32 1.5, %v1743
    %v1745 = vmul.f32 %v1740, %v1744
    %vm1746 = vweird.f32 %v1738
    %vm1747 = vweird.f32 %v1740
    %vm1748 = vmor %vm1746, %vm1747
    %v1749 = vsel %vm1748, %v1740, %v1745
    %v1750 = vrsqrt.pop %v1739
    %v1751 = vmul.f32 %v1750, %v1739
    %v1752 = vmul.f32 %v1751, %v1750
    %v1753 = vmul.f32 0.5, %v1752
    %v1754 = vsub.f32 1.5, %v1753
    %v1755 = vmul.f32 %v1750, %v1754
    %vm1756 = vweird.f32 %v1739
    %vm1757 = vweird.f32 %v1750
    %vm1758 = vmor %vm1756, %vm1757
    %v1759 = vsel %vm1758, %v1750, %v1755
    %v1760 = vmul.f32 %v1726, %v1749
    %v1761 = vmul.f32 %v1727, %v1759
    %v1763 = vperm.slane %v1715, 0
    %v1765 = vmul.f32 %v1760, %v1763
    %v1766 = vmul.f32 %v1761, %v1763
    %v1768 = vperm.slane %v1717, 0
    %v1770 = vadd.f32 %v1765, %v1768
    %v1771 = vadd.f32 %v1766, %v1768
    %s1772 = scalar_lea.vmem [#allocation14], 64
    %v1773 = vld [vmem:[%s1772] sm:$0xff]
    %v1774 = vld [vmem:[%s1772 + $0x8] sm:$0xff]
    %v1775 = vld [vmem:[%s1772 + $0x10] sm:$0xff]
    %v1776 = vld [vmem:[%s1772 + $0x18] sm:$0xff]
    %v1777 = vld [vmem:[%s1772 + $0x20] sm:$0xff]
    %v1778 = vld [vmem:[%s1772 + $0x28] sm:$0xff]
    %v1779 = vld [vmem:[%s1772 + $0x30] sm:$0xff]
    %v1780 = vld [vmem:[%s1772 + $0x38] sm:$0xff]
    %v1781 = vpack.c.bf16 %v1771, %v1770
    %v1782 = vpack.c.bf16 %v1774, %v1773
    %v1783 = vpack.c.bf16 %v1776, %v1775
    %v1784 = vpack.c.bf16 %v1778, %v1777
    %v1785 = vpack.c.bf16 %v1780, %v1779
    %s1786 = scalar_lea.vmem %s11, 1
    %v1787 = vld [vmem:[%s1786] sm:$0x1]
    %v1789 = vperm.slane %v1787, 0
    %v1792 = vsel %vm303, %v1781, 0
    %1794 = vmatpush.bf16.msra.mxu0 0
    %1795 = vmatpush.bf16.msra.mxu0 0
    %1796 = vmatpush.bf16.msra.mxu0 0
    %1797 = vmatpush.bf16.msra.mxu0 0
    %1798 = vmatpush.bf16.msra.mxu0 %v1785
    %1799 = vmatpush.bf16.msra.mxu0 %v1784
    %1800 = vmatpush.bf16.msra.mxu0 %v1783
    %1801 = vmatpush.bf16.msra.mxu0 %v1782
    %1802 = vmatmul.bf16.gmra.mxu0 %v1792
    %v1803 = vpop.f32.mrf.mxu0
    %v1804 = vadd.f32 %v1789, %v1803
    %v1805 = vpop.f32.mrf.mxu0
    %v1806 = vadd.f32 %v1789, %v1805
    %1807 = vdwg.mxu0
    %v1808 = vmax.f32 %v1804, 0.0
    %v1809 = vmax.f32 %v1806, 0.0
    %s1810 = scalar_lea.vmem %s12, 128
    %v1811 = vld [vmem:[%s1810] sm:$0xff]
    %v1812 = vld [vmem:[%s1810 + $0x8] sm:$0xff]
    %v1813 = vld [vmem:[%s1810 + $0x10] sm:$0xff]
    %v1814 = vld [vmem:[%s1810 + $0x18] sm:$0xff]
    %v1815 = vld [vmem:[%s1810 + $0x20] sm:$0xff]
    %v1816 = vld [vmem:[%s1810 + $0x28] sm:$0xff]
    %v1817 = vld [vmem:[%s1810 + $0x30] sm:$0xff]
    %v1818 = vld [vmem:[%s1810 + $0x38] sm:$0xff]
    %v1819 = vld [vmem:[%s1810 + $0x40] sm:$0xff]
    %v1820 = vld [vmem:[%s1810 + $0x48] sm:$0xff]
    %v1821 = vld [vmem:[%s1810 + $0x50] sm:$0xff]
    %v1822 = vld [vmem:[%s1810 + $0x58] sm:$0xff]
    %v1823 = vld [vmem:[%s1810 + $0x60] sm:$0xff]
    %v1824 = vld [vmem:[%s1810 + $0x68] sm:$0xff]
    %v1825 = vld [vmem:[%s1810 + $0x70] sm:$0xff]
    %v1826 = vld [vmem:[%s1810 + $0x78] sm:$0xff]
    %v1827 = vpack.c.bf16 %v1809, %v1808
    %v1828 = vpack.c.bf16 %v1812, %v1811
    %v1829 = vpack.c.bf16 %v1814, %v1813
    %v1830 = vpack.c.bf16 %v1816, %v1815
    %v1831 = vpack.c.bf16 %v1818, %v1817
    %v1832 = vpack.c.bf16 %v1820, %v1819
    %v1833 = vpack.c.bf16 %v1822, %v1821
    %v1834 = vpack.c.bf16 %v1824, %v1823
    %v1835 = vpack.c.bf16 %v1826, %v1825
    %s1836 = scalar_lea.vmem %s13, 1
    %v1837 = vld [vmem:[%s1836] sm:$0x1]
    %v1839 = vperm.slane %v1837, 0
    %1841 = vmatpush.bf16.msra.mxu0 %v1835
    %1842 = vmatpush.bf16.msra.mxu0 %v1834
    %1843 = vmatpush.bf16.msra.mxu0 %v1833
    %1844 = vmatpush.bf16.msra.mxu0 %v1832
    %1845 = vmatpush.bf16.msra.mxu0 %v1831
    %1846 = vmatpush.bf16.msra.mxu0 %v1830
    %1847 = vmatpush.bf16.msra.mxu0 %v1829
    %1848 = vmatpush.bf16.msra.mxu0 %v1828
    %1849 = vmatmul.bf16.gmra.mxu0 %v1827
    %v1850 = vpop.f32.mrf.mxu0
    %v1851 = vadd.f32 %v1839, %v1850
    %v1852 = vpop.f32.mrf.mxu0
    %v1853 = vadd.f32 %v1839, %v1852
    %1854 = vdwg.mxu0
    %v1855 = vadd.f32 %v1770, %v1851
    %v1856 = vadd.f32 %v1771, %v1853
    %s1857 = scalar_lea.vmem [#allocation16], 1
    %v1858 = vld [vmem:[%s1857] sm:$0x1]
    %s1859 = scalar_lea.vmem %s15, 1
    %v1860 = vld [vmem:[%s1859] sm:$0x1]
    %v1861 = vsel %vm303, %v1855, 0.0
    %1862 = vadd.xlane.f32.xlu0 %v1861
    %v1863 = vpop.xlane.xlu0 %1862
    %v1864 = vsel %vm303, %v1856, 0.0
    %1865 = vadd.xlane.f32.xlu0 %v1864
    %v1866 = vpop.xlane.xlu0 %1865
    %v1867 = vmul.f32 %v1863, %v907
    %v1868 = vmul.f32 %v1866, %v907
    %v1869 = vsub.f32 %v1855, %v1867
    %v1870 = vsub.f32 %v1856, %v1868
    %v1871 = vmul.f32 %v1869, %v1869
    %v1872 = vmul.f32 %v1870, %v1870
    %v1873 = vsel %vm303, %v1871, 0.0
    %1874 = vadd.xlane.f32.xlu0 %v1873
    %v1875 = vpop.xlane.xlu0 %1874
    %v1876 = vsel %vm303, %v1872, 0.0
    %1877 = vadd.xlane.f32.xlu0 %v1876
    %v1878 = vpop.xlane.xlu0 %1877
    %v1879 = vmul.f32 %v1875, %v907
    %v1880 = vmul.f32 %v1878, %v907
    %v1881 = vadd.f32 %v1879, 1e-05
    %v1882 = vadd.f32 %v1880, 1e-05
    %v1883 = vrsqrt.pop %v1881
    %v1884 = vmul.f32 %v1883, %v1881
    %v1885 = vmul.f32 %v1884, %v1883
    %v1886 = vmul.f32 0.5, %v1885
    %v1887 = vsub.f32 1.5, %v1886
    %v1888 = vmul.f32 %v1883, %v1887
    %vm1889 = vweird.f32 %v1881
    %vm1890 = vweird.f32 %v1883
    %vm1891 = vmor %vm1889, %vm1890
    %v1892 = vsel %vm1891, %v1883, %v1888
    %v1893 = vrsqrt.pop %v1882
    %v1894 = vmul.f32 %v1893, %v1882
    %v1895 = vmul.f32 %v1894, %v1893
    %v1896 = vmul.f32 0.5, %v1895
    %v1897 = vsub.f32 1.5, %v1896
    %v1898 = vmul.f32 %v1893, %v1897
    %vm1899 = vweird.f32 %v1882
    %vm1900 = vweird.f32 %v1893
    %vm1901 = vmor %vm1899, %vm1900
    %v1902 = vsel %vm1901, %v1893, %v1898
    %v1903 = vmul.f32 %v1869, %v1892
    %v1904 = vmul.f32 %v1870, %v1902
    %v1906 = vperm.slane %v1858, 0
    %v1908 = vmul.f32 %v1903, %v1906
    %v1909 = vmul.f32 %v1904, %v1906
    %v1911 = vperm.slane %v1860, 0
    %v1913 = vadd.f32 %v1908, %v1911
    %v1914 = vadd.f32 %v1909, %v1911
    %v1915 = vsel %vm303, %v1913, 0.0
    %v1916 = vrot.slane %v1915, 4
    %v1917 = vadd.f32 %v1915, %v1916
    %v1918 = vrot.slane %v1917, 2
    %v1919 = vadd.f32 %v1917, %v1918
    %v1920 = vrot.slane %v1919, 1
    %v1921 = vadd.f32 %v1919, %v1920
    %v1922 = vsel %vm303, %v1914, 0.0
    %v1923 = vrot.slane %v1922, 4
    %v1924 = vadd.f32 %v1922, %v1923
    %v1925 = vrot.slane %v1924, 2
    %v1926 = vadd.f32 %v1924, %v1925
    %v1927 = vrot.slane %v1926, 1
    %v1928 = vadd.f32 %v1926, %v1927
    %v1929 = vld [vmem:[#allocation17] sm:$0xff]
    %v1930 = vld [vmem:[#allocation17 + $0x8] sm:$0xff]
    %v1931 = vld [vmem:[#allocation17 + $0x10] sm:$0xff]
    %v1932 = vld [vmem:[#allocation17 + $0x18] sm:$0xff]
    %v1933 = vld [vmem:[#allocation17 + $0x20] sm:$0xff]
    %v1934 = vld [vmem:[#allocation17 + $0x28] sm:$0xff]
    %v1935 = vld [vmem:[#allocation17 + $0x30] sm:$0xff]
    %v1936 = vld [vmem:[#allocation17 + $0x38] sm:$0xff]
    %v1937 = vpack.c.bf16 %v1921, %v1921
    %v1938 = vpack.c.bf16 %v1928, %v1928
    %v1939 = vpack.c.bf16 %v1930, %v1929
    %v1940 = vpack.c.bf16 %v1932, %v1931
    %v1941 = vpack.c.bf16 %v1934, %v1933
    %v1942 = vpack.c.bf16 %v1936, %v1935
    %v1943 = vld [vmem:[%s17] sm:$0x1]
    %v1945 = vperm.slane %v1943, 0
    %v1949 = vunpack.c.l.b16 %v1937
    %v1950 = vunpack.c.l.b16 %v1938
    %vm1951 = vcmask 1041409
    %v1952 = vsel %vm1951, %v1950, %v1949
    %v1953 = vpack.c.b16 %v1952, %v1952
    %v1955 = vsel %vm303, %v1953, 0
    %1957 = vmatpush.bf16.msra.mxu0 0
    %1958 = vmatpush.bf16.msra.mxu0 0
    %1959 = vmatpush.bf16.msra.mxu0 0
    %1960 = vmatpush.bf16.msra.mxu0 0
    %1961 = vmatpush.bf16.msra.mxu0 %v1942
    %1962 = vmatpush.bf16.msra.mxu0 %v1941
    %1963 = vmatpush.bf16.msra.mxu0 %v1940
    %1964 = vmatpush.bf16.msra.mxu0 %v1939
    %1965 = vmatmul.bf16.gmra.mxu0 %v1955
    %v1966 = vpop.f32.mrf.mxu0
    %v1967 = vadd.f32 %v1945, %v1966
    %v1968 = vpop.f32.mrf.mxu0
    %1969 = vdwg.mxu0
    %v1970 = vmax.f32 %v1967, 0.0
    %v1971 = vld [vmem:[#allocation19] sm:$0xff]
    %v1972 = vld [vmem:[#allocation19 + $0x8] sm:$0xff]
    %v1973 = vld [vmem:[#allocation19 + $0x10] sm:$0xff]
    %v1974 = vld [vmem:[#allocation19 + $0x18] sm:$0xff]
    %v1975 = vld [vmem:[#allocation19 + $0x20] sm:$0xff]
    %v1976 = vld [vmem:[#allocation19 + $0x28] sm:$0xff]
    %v1977 = vld [vmem:[#allocation19 + $0x30] sm:$0xff]
    %v1978 = vld [vmem:[#allocation19 + $0x38] sm:$0xff]
    %v1979 = vld [vmem:[#allocation19 + $0x40] sm:$0xff]
    %v1980 = vld [vmem:[#allocation19 + $0x48] sm:$0xff]
    %v1981 = vld [vmem:[#allocation19 + $0x50] sm:$0xff]
    %v1982 = vld [vmem:[#allocation19 + $0x58] sm:$0xff]
    %v1983 = vld [vmem:[#allocation19 + $0x60] sm:$0xff]
    %v1984 = vld [vmem:[#allocation19 + $0x68] sm:$0xff]
    %v1985 = vld [vmem:[#allocation19 + $0x70] sm:$0xff]
    %v1986 = vld [vmem:[#allocation19 + $0x78] sm:$0xff]
    %v1987 = vpack.c.bf16 %v1970, %v1970
    %v1988 = vpack.c.bf16 %v1972, %v1971
    %v1989 = vpack.c.bf16 %v1974, %v1973
    %v1990 = vpack.c.bf16 %v1976, %v1975
    %v1991 = vpack.c.bf16 %v1978, %v1977
    %v1992 = vpack.c.bf16 %v1980, %v1979
    %v1993 = vpack.c.bf16 %v1982, %v1981
    %v1994 = vpack.c.bf16 %v1984, %v1983
    %v1995 = vpack.c.bf16 %v1986, %v1985
    %v1996 = vld [vmem:[%s19] sm:$0x1]
    %v1998 = vperm.slane %v1996, 0
    %2000 = vmatpush.bf16.msra.mxu0 %v1995
    %2001 = vmatpush.bf16.msra.mxu0 %v1994
    %2002 = vmatpush.bf16.msra.mxu0 %v1993
    %2003 = vmatpush.bf16.msra.mxu0 %v1992
    %2004 = vmatpush.bf16.msra.mxu0 %v1991
    %2005 = vmatpush.bf16.msra.mxu0 %v1990
    %2006 = vmatpush.bf16.msra.mxu0 %v1989
    %2007 = vmatpush.bf16.msra.mxu0 %v1988
    %2008 = vmatmul.bf16.gmra.mxu0 %v1987
    %v2009 = vpop.f32.mrf.mxu0
    %v2010 = vadd.f32 %v1998, %v2009
    %v2011 = vpop.f32.mrf.mxu0
    %2012 = vdwg.mxu0
    %2013 = vst [vmem:[#allocation20] sm:$0x3] %v2010
    // Predicated region
    $region126: #{tpu_custom_call.1} parent=1 // pred_check
      _
    $region127: #{tpu_custom_call.1} parent=1 // pred_check_branch
      %2015 = sbr.rel (0) target = $region129
    $region128: #{tpu_custom_call.1} parent=1 // pred_region
      %2017 = vsyncadd [#allocation4], 0
      %s2019 = sshll.u32 [#allocation20], 4
      %s2020 = int_to_ptr.vmem [resolvable:$true] %s2019
      %s2021 = sshll.u32 %s20, 4
      %s2022 = int_to_ptr.hbm [resolvable:$true] %s2021
      %2024 = dma.vmem_to_hbm [thread:$0]  %s2020, 32, %s2022, [#allocation4]
    $region129: #{tpu_custom_call.1} parent=1 // pred_fallthru
      _
    // Predicated region
    $region130: #{tpu_custom_call.1} parent=1 // pred_check
      _
    $region131: #{tpu_custom_call.1} parent=1 // pred_check_branch
      %2026 = sbr.rel (0) target = $region133
    $region132: #{tpu_custom_call.1} parent=1 // pred_region
      %2028 = dma.done [#allocation4], 32
    $region133: #{tpu_custom_call.1} parent=1 // pred_fallthru
      _
    %2029 = vsyncpa [#allocation3], 1
    %2030 = vsyncpa [#allocation6], 1
    %2031 = vsyncpa [#allocation9], 1
    %2032 = vsyncpa [#allocation12], 1
    %2033 = vsyncpa [#allocation15], 1
    %2034 = vsyncpa [#allocation18], 1
    %2035 = vsyncpa [#allocation4], 1

</llo_original>
